<compile_context>
chip_gen: v6e
topology: v6e:2x2x1
jax: 0.10.0
libtpu: 0.0.40
codegen_flags: <defaults>
</compile_context>

<pallas_src>
import numpy as np
import jax
import jax.numpy as jnp
from jax.experimental import pallas as pl
from jax.experimental.pallas import tpu as pltpu

SIZE = 3                      # Abstracter(size=3)
CHANNELS = 512                # fixed by the 512*size**2 Linear layers
HID = 8                       # bottleneck width of down/up
S2 = SIZE * SIZE              # 9
FEAT = CHANNELS * S2          # 4608
KPACK = S2 * HID              # 72  (packed (s, j) axis)


def _interp_matrix(in_len, out_len):
    """Bilinear, align_corners=True resampling matrix of shape (out_len, in_len)."""
    w = np.zeros((out_len, in_len), dtype=np.float32)
    if out_len == 1:
        w[0, 0] = 1.0
        return w
    scale = (in_len - 1) / (out_len - 1)
    for o in range(out_len):
        pos = o * scale
        i0 = min(int(np.floor(pos)), in_len - 1)
        i1 = min(i0 + 1, in_len - 1)
        f = pos - i0
        w[o, i0] += 1.0 - f
        w[o, i1] += f
    return w


def _resample_matrix(H, W, size):
    """M[h*W+w, oh*size+ow] = Wh[oh,h] * Ww[ow,w]  -> shape (H*W, size*size)."""
    wh = _interp_matrix(H, size)
    ww = _interp_matrix(W, size)
    m = np.einsum('oh,pw->hwop', wh, ww).reshape(H * W, size * size)
    return m.astype(np.float32)


def prepare_params(wd, bd, wu, bu):
    """One-time (host side) packing of the Linear params.

    Expects the i@W convention (transposed w.r.t. PyTorch nn.Linear.weight):
      wd: (FEAT, HID)   bd: (1, HID)   wu: (HID, FEAT)   bu: (1, FEAT)
    """
    wd = np.asarray(wd, np.float32).reshape(FEAT, HID)
    bd = np.asarray(bd, np.float32).reshape(1, HID)
    wu = np.asarray(wu, np.float32).reshape(HID, FEAT)
    bu = np.asarray(bu, np.float32).reshape(1, FEAT)
    # WdS[c, s*HID + j] = wd[c*9 + s, j]  (row-major reshape does exactly this).
    wds = np.ascontiguousarray(wd.reshape(CHANNELS, KPACK))           # (512, 72)
    # WuBig[s*HID + j, f] = wu[j, f]
    wub = np.ascontiguousarray(np.tile(wu, (S2, 1)))                  # (72, 4608)
    # mask[s_row, s*HID + j] = 1.0 iff s_row == s
    mask = np.ascontiguousarray(
        np.repeat(np.eye(S2, dtype=np.float32), HID, axis=1))         # (9, 72)
    # Fold the down bias through the up projection: (i@Wd+bd)@Wu+bu = i@Wd@Wu + (bd@Wu+bu)
    bfold = bd @ wu + bu                                              # (1, 4608)
    return dict(
        wds=jnp.asarray(wds),
        wub=jnp.asarray(wub),
        mask=jnp.asarray(mask),
        bfold=jnp.asarray(bfold),
    )


def _make_kernel(tb):
    """Fused kernel over one batch block of `tb` images."""

    def kernel(x_ref, mt_ref, wds_ref, mask_ref, wub_ref, bf_ref, i_ref, o_ref):
        # x_ref:   (tb, HW, C)  channels-last image block (lane-dense, C=512)
        # mt_ref:  (9, HW)      transposed bilinear resample matrix
        # wds_ref: (C, 72)      WdS[c, s*8+j] = Wd[c*9+s, j]
        # mask_ref:(9, 72)      mask[s_row, s*8+j] = (s_row == s)
        # wub_ref: (72, F)      WuBig[s*8+j, f] = Wu[j, f]
        # bf_ref:  (1, F)       folded bias bd@Wu + bu
        # i_ref:   (tb, 9, C)   resized features (transposed layout, lane-dense)
        # o_ref:   (1, tb, F)   relu(up(down(i))), single lane-dense store
        mt = mt_ref[...]
        wds = wds_ref[...]
        mask = mask_ref[...]
        rows = []
        for t in range(tb):                      # tb <= 8: static unroll, tiny live ranges
            # --- resize on the MXU: i^T = M^T @ x_t  -> (9, C) ------------
            it = jnp.dot(mt, x_ref[t], preferred_element_type=jnp.float32)
            i_ref[t] = it                        # lane-dense (9, 512) store
            # --- down projection on the MXU -------------------------------
            # P[s_row, s*8+j] = sum_c i[t,c,s_row] * Wd[c*9+s, j]
            p = jnp.dot(it, wds, preferred_element_type=jnp.float32)   # (9, 72)
            # keep only s_row == s and sum the 9 rows:
            # R_t[0, s*8+j] = sum_c i[t,c,s] * Wd[c*9+s, j]
            rows.append(jnp.sum(p * mask, axis=0, keepdims=True))      # (1, 72)
        r = jnp.concatenate(rows, axis=0)                              # (tb, 72)
        # --- batched up projection on the MXU + folded bias + ReLU -------
        # sum over the packed (s, j) axis against WuBig reconstitutes h @ Wu.
        o = jnp.dot(r, wub_ref[...], preferred_element_type=jnp.float32) + bf_ref[...]
        o_ref[0] = jnp.maximum(o, 0.0)           # single lane-dense (tb, 4608) store

    return kernel


def _padded_block_bytes(shape, itemsize=4):
    """f32 VMEM footprint of a block after (8, 128) tiling of the last two dims."""
    s = list(shape)
    s[-1] = -(-s[-1] // 128) * 128
    if len(s) >= 2:
        s[-2] = -(-s[-2] // 8) * 8
    n = 1
    for d in s:
        n *= d
    return n * itemsize


@jax.jit
def abstracter_forward(x, params):
    """Eval-mode forward of Abstracter: returns (i, o).

    x: (B, 512, H, W) float32; params from prepare_params().
    """
    # TODO(synk): nn.Dropout(0.5) is training-only; eval-mode forward is identity, so omitted.
    B, C, H, W = x.shape
    assert C == CHANNELS, "Abstracter is hard-wired to 512 input channels"
    HW = H * W
    F = FEAT

    # Batch tile: 4 (>=2 grid steps at B>=8 for v7x megacore / pipelining),
    # 8 for larger batches to amortize per-step overhead; shrink if the x block
    # would be too large (big H*W).  Batch is padded to a multiple of tb.
    tb = 8 if B >= 16 else 4
    while tb > 1 and 2 * tb * HW * C * 4 > (16 << 20):
        tb //= 2
    Bp = -(-B // tb) * tb
    if Bp != B:
        x = jnp.pad(x, ((0, Bp - B), (0, 0), (0, 0), (0, 0)))
    grid = (Bp // tb,)

    # Channels-last, lane-dense input layout (one cheap XLA transpose outside).
    xcl = jnp.transpose(x, (0, 2, 3, 1)).reshape(Bp, HW, C)

    # Resampling matrix is a trace-time constant (depends only on H, W).
    mt = jnp.asarray(_resample_matrix(H, W, SIZE).T)                  # (9, HW)

    # VMEM budget from actual padded block sizes (double-buffered) + headroom.
    blocks = [(tb, HW, C), (S2, HW), (C, KPACK), (S2, KPACK),
              (KPACK, F), (1, F), (tb, S2, C), (1, tb, F)]
    vmem = 2 * sum(_padded_block_bytes(b) for b in blocks) + (4 << 20)
    vmem = int(min(max(vmem, 16 << 20), 48 << 20))

    flops = Bp * (2 * S2 * HW * C + 2 * S2 * C * KPACK + 2 * KPACK * F)
    bytes_accessed = 4 * (Bp * HW * C + Bp * S2 * C + Bp * F
                          + S2 * HW + C * KPACK + S2 * KPACK + KPACK * F + F)

    i_k, o_k = pl.pallas_call(
        _make_kernel(tb),
        out_shape=(jax.ShapeDtypeStruct((Bp, S2, C), jnp.float32),     # i (transposed layout)
                   jax.ShapeDtypeStruct((grid[0], tb, F), jnp.float32)),  # o (lane-dense)
        grid=grid,
        in_specs=[
            pl.BlockSpec((tb, HW, C), lambda b: (b, 0, 0)),            # x block (channels-last)
            pl.BlockSpec((S2, HW), lambda b: (0, 0)),                  # M^T (resident)
            pl.BlockSpec((C, KPACK), lambda b: (0, 0)),                # WdS (resident)
            pl.BlockSpec((S2, KPACK), lambda b: (0, 0)),               # mask (resident)
            pl.BlockSpec((KPACK, F), lambda b: (0, 0)),                # WuBig (resident)
            pl.BlockSpec((1, F), lambda b: (0, 0)),                    # folded bias (resident)
        ],
        out_specs=(
            pl.BlockSpec((tb, S2, C), lambda b: (b, 0, 0)),
            pl.BlockSpec((1, tb, F), lambda b: (b, 0, 0)),
        ),
        compiler_params=pltpu.CompilerParams(
            dimension_semantics=("parallel",),
            vmem_limit_bytes=vmem),
        cost_estimate=pl.CostEstimate(flops=flops, transcendentals=0,
                                      bytes_accessed=bytes_accessed),
    )(xcl, mt, params["wds"], params["mask"], params["wub"], params["bfold"])

    # i_k[t, s, c] = resize(x)[t, c, s]; recover torch's .view(-1, 4608) layout
    # with one tiny XLA transpose (B*18 KB) outside the kernel.
    i = jnp.transpose(i_k, (0, 2, 1)).reshape(Bp, F)[:B]
    o = o_k.reshape(Bp, F)[:B]
    return i, o


if __name__ == "__main__":
    key = jax.random.PRNGKey(0)
    kx, k1, k2, k3, k4 = jax.random.split(key, 5)

    B, C, H, W = 2, CHANNELS, 8, 8
    x = jax.random.normal(kx, (B, C, H, W), dtype=jnp.float32)

    # nn.Linear-style init U(-1/sqrt(fan_in), +1/sqrt(fan_in)); weights stored
    # transposed w.r.t. PyTorch so the math is i @ W.
    kd = 1.0 / np.sqrt(FEAT)
    ku = 1.0 / np.sqrt(HID)
    wd = jax.random.uniform(k1, (FEAT, HID), minval=-kd, maxval=kd, dtype=jnp.float32)
    bd = jax.random.uniform(k2, (1, HID), minval=-kd, maxval=kd, dtype=jnp.float32)
    wu = jax.random.uniform(k3, (HID, FEAT), minval=-ku, maxval=ku, dtype=jnp.float32)
    bu = jax.random.uniform(k4, (1, FEAT), minval=-ku, maxval=ku, dtype=jnp.float32)

    params = prepare_params(np.asarray(wd), np.asarray(bd),
                            np.asarray(wu), np.asarray(bu))

    i_out, o_out = abstracter_forward(x, params)
    jax.block_until_ready((i_out, o_out))

    assert i_out.shape == (B, FEAT)
    assert o_out.shape == (B, FEAT)

    # float64 numpy reference (original, un-folded math) for a sanity check.
    xn = np.asarray(x, dtype=np.float64)
    wh = _interp_matrix(H, SIZE).astype(np.float64)
    ww = _interp_matrix(W, SIZE).astype(np.float64)
    i_ref = np.einsum('bchw,oh,pw->bcop', xn, wh, ww).reshape(B, FEAT)
    h_ref = i_ref @ np.asarray(wd, np.float64) + np.asarray(bd, np.float64)
    o_ref = np.maximum(h_ref @ np.asarray(wu, np.float64) + np.asarray(bu, np.float64), 0.0)

    assert np.allclose(np.asarray(i_out), i_ref, atol=1e-2, rtol=1e-2)
    assert np.allclose(np.asarray(o_out), o_ref, atol=1e-2, rtol=1e-2)

    print("KERNEL_OK")
</pallas_src>

<mosaic_0001>
module attributes {stable_mosaic.version = 11 : i64} {
  func.func @kernel(%arg0: i32, %arg1: memref<4x64x512xf32, #tpu.memory_space<vmem>>, %arg2: memref<9x64xf32, #tpu.memory_space<vmem>>, %arg3: memref<512x72xf32, #tpu.memory_space<vmem>>, %arg4: memref<9x72xf32, #tpu.memory_space<vmem>>, %arg5: memref<72x4608xf32, #tpu.memory_space<vmem>>, %arg6: memref<1x4608xf32, #tpu.memory_space<vmem>>, %arg7: memref<4x9x512xf32, #tpu.memory_space<vmem>>, %arg8: memref<1x4x4608xf32, #tpu.memory_space<vmem>>) attributes {dimension_semantics = [#tpu.dimension_semantics<parallel>], iteration_bounds = array<i64: 1>, scalar_prefetch = 0 : i64, scratch_operands = 0 : i64, tpu.core_type = #tpu.core_type<tc>, window_params = [{transform_indices = @transform_0, window_bounds = array<i64: 4, 64, 512>}, {pipeline_mode = #tpu.pipeline_mode<synchronous>, transform_indices = @transform_1, window_bounds = array<i64: 9, 64>}, {pipeline_mode = #tpu.pipeline_mode<synchronous>, transform_indices = @transform_2, window_bounds = array<i64: 512, 72>}, {pipeline_mode = #tpu.pipeline_mode<synchronous>, transform_indices = @transform_3, window_bounds = array<i64: 9, 72>}, {pipeline_mode = #tpu.pipeline_mode<synchronous>, transform_indices = @transform_4, window_bounds = array<i64: 72, 4608>}, {pipeline_mode = #tpu.pipeline_mode<synchronous>, transform_indices = @transform_5, window_bounds = array<i64: 1, 4608>}, {transform_indices = @transform_6, window_bounds = array<i64: 4, 9, 512>}, {transform_indices = @transform_7, window_bounds = array<i64: 1, 4, 4608>}]} {
    %c0 = arith.constant 0 : index
    %c0_0 = arith.constant 0 : index
    %0 = vector.load %arg2[%c0, %c0_0] : memref<9x64xf32, #tpu.memory_space<vmem>>, vector<9x64xf32>
    %c0_1 = arith.constant 0 : index
    %c0_2 = arith.constant 0 : index
    %1 = vector.load %arg3[%c0_1, %c0_2] : memref<512x72xf32, #tpu.memory_space<vmem>>, vector<512x72xf32>
    %c0_3 = arith.constant 0 : index
    %c0_4 = arith.constant 0 : index
    %2 = vector.load %arg4[%c0_3, %c0_4] : memref<9x72xf32, #tpu.memory_space<vmem>>, vector<9x72xf32>
    %c0_5 = arith.constant 0 : index
    %c0_6 = arith.constant 0 : index
    %c0_7 = arith.constant 0 : index
    %3 = vector.load %arg1[%c0_5, %c0_6, %c0_7] : memref<4x64x512xf32, #tpu.memory_space<vmem>>, vector<1x64x512xf32>
    %4 = vector.shape_cast %3 : vector<1x64x512xf32> to vector<64x512xf32>
    %cst = arith.constant dense<0.000000e+00> : vector<9x512xf32>
    %5 = tpu.matmul %0, %4, %cst {dimension_numbers = #tpu.dot_dimension_numbers<[1], [0], [0], [1], [0, 0, 1, 1], [], []>} : vector<9x64xf32>, vector<64x512xf32>, vector<9x512xf32> -> vector<9x512xf32>
    %c0_8 = arith.constant 0 : index
    %c0_9 = arith.constant 0 : index
    %c0_10 = arith.constant 0 : index
    %6 = vector.load %arg7[%c0_8, %c0_9, %c0_10] : memref<4x9x512xf32, #tpu.memory_space<vmem>>, vector<1x9x512xf32>
    %7 = vector.shape_cast %6 : vector<1x9x512xf32> to vector<9x512xf32>
    %8 = vector.shape_cast %5 : vector<9x512xf32> to vector<1x9x512xf32>
    tpu.vector_store %arg7[%c0_8, %c0_9, %c0_10], %8 {strides = array<i32>} : memref<4x9x512xf32, #tpu.memory_space<vmem>>, vector<1x9x512xf32>,
    %cst_11 = arith.constant dense<0.000000e+00> : vector<9x72xf32>
    %9 = tpu.matmul %5, %1, %cst_11 {dimension_numbers = #tpu.dot_dimension_numbers<[1], [0], [0], [1], [0, 0, 1, 1], [], []>} : vector<9x512xf32>, vector<512x72xf32>, vector<9x72xf32> -> vector<9x72xf32>
    %10 = arith.mulf %9, %2 : vector<9x72xf32>
    %cst_12 = arith.constant dense<0.000000e+00> : vector<72xf32>
    %11 = vector.multi_reduction <add>, %10, %cst_12 [0] : vector<9x72xf32> to vector<72xf32>
    %12 = vector.shape_cast %11 : vector<72xf32> to vector<1x72xf32>
    %c1 = arith.constant 1 : index
    %c0_13 = arith.constant 0 : index
    %c0_14 = arith.constant 0 : index
    %13 = vector.load %arg1[%c1, %c0_13, %c0_14] : memref<4x64x512xf32, #tpu.memory_space<vmem>>, vector<1x64x512xf32>
    %14 = vector.shape_cast %13 : vector<1x64x512xf32> to vector<64x512xf32>
    %cst_15 = arith.constant dense<0.000000e+00> : vector<9x512xf32>
    %15 = tpu.matmul %0, %14, %cst_15 {dimension_numbers = #tpu.dot_dimension_numbers<[1], [0], [0], [1], [0, 0, 1, 1], [], []>} : vector<9x64xf32>, vector<64x512xf32>, vector<9x512xf32> -> vector<9x512xf32>
    %c1_16 = arith.constant 1 : index
    %c0_17 = arith.constant 0 : index
    %c0_18 = arith.constant 0 : index
    %16 = vector.load %arg7[%c1_16, %c0_17, %c0_18] : memref<4x9x512xf32, #tpu.memory_space<vmem>>, vector<1x9x512xf32>
    %17 = vector.shape_cast %16 : vector<1x9x512xf32> to vector<9x512xf32>
    %18 = vector.shape_cast %15 : vector<9x512xf32> to vector<1x9x512xf32>
    tpu.vector_store %arg7[%c1_16, %c0_17, %c0_18], %18 {strides = array<i32>} : memref<4x9x512xf32, #tpu.memory_space<vmem>>, vector<1x9x512xf32>,
    %cst_19 = arith.constant dense<0.000000e+00> : vector<9x72xf32>
    %19 = tpu.matmul %15, %1, %cst_19 {dimension_numbers = #tpu.dot_dimension_numbers<[1], [0], [0], [1], [0, 0, 1, 1], [], []>} : vector<9x512xf32>, vector<512x72xf32>, vector<9x72xf32> -> vector<9x72xf32>
    %20 = arith.mulf %19, %2 : vector<9x72xf32>
    %cst_20 = arith.constant dense<0.000000e+00> : vector<72xf32>
    %21 = vector.multi_reduction <add>, %20, %cst_20 [0] : vector<9x72xf32> to vector<72xf32>
    %22 = vector.shape_cast %21 : vector<72xf32> to vector<1x72xf32>
    %c2 = arith.constant 2 : index
    %c0_21 = arith.constant 0 : index
    %c0_22 = arith.constant 0 : index
    %23 = vector.load %arg1[%c2, %c0_21, %c0_22] : memref<4x64x512xf32, #tpu.memory_space<vmem>>, vector<1x64x512xf32>
    %24 = vector.shape_cast %23 : vector<1x64x512xf32> to vector<64x512xf32>
    %cst_23 = arith.constant dense<0.000000e+00> : vector<9x512xf32>
    %25 = tpu.matmul %0, %24, %cst_23 {dimension_numbers = #tpu.dot_dimension_numbers<[1], [0], [0], [1], [0, 0, 1, 1], [], []>} : vector<9x64xf32>, vector<64x512xf32>, vector<9x512xf32> -> vector<9x512xf32>
    %c2_24 = arith.constant 2 : index
    %c0_25 = arith.constant 0 : index
    %c0_26 = arith.constant 0 : index
    %26 = vector.load %arg7[%c2_24, %c0_25, %c0_26] : memref<4x9x512xf32, #tpu.memory_space<vmem>>, vector<1x9x512xf32>
    %27 = vector.shape_cast %26 : vector<1x9x512xf32> to vector<9x512xf32>
    %28 = vector.shape_cast %25 : vector<9x512xf32> to vector<1x9x512xf32>
    tpu.vector_store %arg7[%c2_24, %c0_25, %c0_26], %28 {strides = array<i32>} : memref<4x9x512xf32, #tpu.memory_space<vmem>>, vector<1x9x512xf32>,
    %cst_27 = arith.constant dense<0.000000e+00> : vector<9x72xf32>
    %29 = tpu.matmul %25, %1, %cst_27 {dimension_numbers = #tpu.dot_dimension_numbers<[1], [0], [0], [1], [0, 0, 1, 1], [], []>} : vector<9x512xf32>, vector<512x72xf32>, vector<9x72xf32> -> vector<9x72xf32>
    %30 = arith.mulf %29, %2 : vector<9x72xf32>
    %cst_28 = arith.constant dense<0.000000e+00> : vector<72xf32>
    %31 = vector.multi_reduction <add>, %30, %cst_28 [0] : vector<9x72xf32> to vector<72xf32>
    %32 = vector.shape_cast %31 : vector<72xf32> to vector<1x72xf32>
    %c3 = arith.constant 3 : index
    %c0_29 = arith.constant 0 : index
    %c0_30 = arith.constant 0 : index
    %33 = vector.load %arg1[%c3, %c0_29, %c0_30] : memref<4x64x512xf32, #tpu.memory_space<vmem>>, vector<1x64x512xf32>
    %34 = vector.shape_cast %33 : vector<1x64x512xf32> to vector<64x512xf32>
    %cst_31 = arith.constant dense<0.000000e+00> : vector<9x512xf32>
    %35 = tpu.matmul %0, %34, %cst_31 {dimension_numbers = #tpu.dot_dimension_numbers<[1], [0], [0], [1], [0, 0, 1, 1], [], []>} : vector<9x64xf32>, vector<64x512xf32>, vector<9x512xf32> -> vector<9x512xf32>
    %c3_32 = arith.constant 3 : index
    %c0_33 = arith.constant 0 : index
    %c0_34 = arith.constant 0 : index
    %36 = vector.load %arg7[%c3_32, %c0_33, %c0_34] : memref<4x9x512xf32, #tpu.memory_space<vmem>>, vector<1x9x512xf32>
    %37 = vector.shape_cast %36 : vector<1x9x512xf32> to vector<9x512xf32>
    %38 = vector.shape_cast %35 : vector<9x512xf32> to vector<1x9x512xf32>
    tpu.vector_store %arg7[%c3_32, %c0_33, %c0_34], %38 {strides = array<i32>} : memref<4x9x512xf32, #tpu.memory_space<vmem>>, vector<1x9x512xf32>,
    %cst_35 = arith.constant dense<0.000000e+00> : vector<9x72xf32>
    %39 = tpu.matmul %35, %1, %cst_35 {dimension_numbers = #tpu.dot_dimension_numbers<[1], [0], [0], [1], [0, 0, 1, 1], [], []>} : vector<9x512xf32>, vector<512x72xf32>, vector<9x72xf32> -> vector<9x72xf32>
    %40 = arith.mulf %39, %2 : vector<9x72xf32>
    %cst_36 = arith.constant dense<0.000000e+00> : vector<72xf32>
    %41 = vector.multi_reduction <add>, %40, %cst_36 [0] : vector<9x72xf32> to vector<72xf32>
    %42 = vector.shape_cast %41 : vector<72xf32> to vector<1x72xf32>
    %43 = tpu.concatenate %12, %22, %32, %42 in 0 : vector<1x72xf32>, vector<1x72xf32>, vector<1x72xf32>, vector<1x72xf32> -> vector<4x72xf32>
    %c0_37 = arith.constant 0 : index
    %c0_38 = arith.constant 0 : index
    %44 = vector.load %arg5[%c0_37, %c0_38] : memref<72x4608xf32, #tpu.memory_space<vmem>>, vector<72x4608xf32>
    %cst_39 = arith.constant dense<0.000000e+00> : vector<4x4608xf32>
    %45 = tpu.matmul %43, %44, %cst_39 {dimension_numbers = #tpu.dot_dimension_numbers<[1], [0], [0], [1], [0, 0, 1, 1], [], []>} : vector<4x72xf32>, vector<72x4608xf32>, vector<4x4608xf32> -> vector<4x4608xf32>
    %c0_40 = arith.constant 0 : index
    %c0_41 = arith.constant 0 : index
    %46 = vector.load %arg6[%c0_40, %c0_41] : memref<1x4608xf32, #tpu.memory_space<vmem>>, vector<1x4608xf32>
    %47 = vector.broadcast %46 : vector<1x4608xf32> to vector<4x4608xf32>
    %48 = arith.addf %45, %47 : vector<4x4608xf32>
    %cst_42 = arith.constant 0.000000e+00 : f32
    %49 = vector.broadcast %cst_42 : f32 to vector<4x4608xf32>
    %50 = arith.maximumf %48, %49 : vector<4x4608xf32>
    %c0_43 = arith.constant 0 : index
    %c0_44 = arith.constant 0 : index
    %c0_45 = arith.constant 0 : index
    %51 = vector.load %arg8[%c0_43, %c0_44, %c0_45] : memref<1x4x4608xf32, #tpu.memory_space<vmem>>, vector<1x4x4608xf32>
    %52 = vector.shape_cast %51 : vector<1x4x4608xf32> to vector<4x4608xf32>
    %53 = vector.shape_cast %50 : vector<4x4608xf32> to vector<1x4x4608xf32>
    tpu.vector_store %arg8[%c0_43, %c0_44, %c0_45], %53 {strides = array<i32>} : memref<1x4x4608xf32, #tpu.memory_space<vmem>>, vector<1x4x4608xf32>,
    return
  }
  func.func @transform_0(%arg0: i32) -> (i32, i32, i32) {
    %c0_i32 = arith.constant 0 : i32
    %c0_i32_0 = arith.constant 0 : i32
    %c0_i32_1 = arith.constant 0 : i32
    return %arg0, %c0_i32, %c0_i32_0 : i32, i32, i32
  }
  func.func @transform_1(%arg0: i32) -> (i32, i32) {
    %c0_i32 = arith.constant 0 : i32
    %c0_i32_0 = arith.constant 0 : i32
    %c0_i32_1 = arith.constant 0 : i32
    return %c0_i32, %c0_i32_0 : i32, i32
  }
  func.func @transform_2(%arg0: i32) -> (i32, i32) {
    %c0_i32 = arith.constant 0 : i32
    %c0_i32_0 = arith.constant 0 : i32
    %c0_i32_1 = arith.constant 0 : i32
    return %c0_i32, %c0_i32_0 : i32, i32
  }
  func.func @transform_3(%arg0: i32) -> (i32, i32) {
    %c0_i32 = arith.constant 0 : i32
    %c0_i32_0 = arith.constant 0 : i32
    %c0_i32_1 = arith.constant 0 : i32
    return %c0_i32, %c0_i32_0 : i32, i32
  }
  func.func @transform_4(%arg0: i32) -> (i32, i32) {
    %c0_i32 = arith.constant 0 : i32
    %c0_i32_0 = arith.constant 0 : i32
    %c0_i32_1 = arith.constant 0 : i32
    return %c0_i32, %c0_i32_0 : i32, i32
  }
  func.func @transform_5(%arg0: i32) -> (i32, i32) {
    %c0_i32 = arith.constant 0 : i32
    %c0_i32_0 = arith.constant 0 : i32
    %c0_i32_1 = arith.constant 0 : i32
    return %c0_i32, %c0_i32_0 : i32, i32
  }
  func.func @transform_6(%arg0: i32) -> (i32, i32, i32) {
    %c0_i32 = arith.constant 0 : i32
    %c0_i32_0 = arith.constant 0 : i32
    %c0_i32_1 = arith.constant 0 : i32
    return %arg0, %c0_i32, %c0_i32_0 : i32, i32, i32
  }
  func.func @transform_7(%arg0: i32) -> (i32, i32, i32) {
    %c0_i32 = arith.constant 0 : i32
    %c0_i32_0 = arith.constant 0 : i32
    %c0_i32_1 = arith.constant 0 : i32
    return %arg0, %c0_i32, %c0_i32_0 : i32, i32, i32
  }
}

</mosaic_0001>

<llo_original>
// kernel: abstracter_forward.1
$region0: #{abstracter_forward.1}
  #allocation0 [shape = 'u32[]', space=smem, size = 0x4, offset = 0x4, fixed_abs, tag = 'smem constant byte address 0x4 - core index']
  #allocation1 [shape = 'u32[144,128]{1,0:T(1,128)}', space=vmem, size = 0x12000, scoped, tag = 'internal scratch']
  %s0 = inlined_call_operand.vmem [shape: f32[4,64,512], index: 0, kind: input, shape index: {}]
  %s1 = inlined_call_operand.hbm [shape: f32[9,64], index: 1, kind: input, shape index: {}]
  %s2 = inlined_call_operand.vmem [shape: f32[512,72], index: 2, kind: input, shape index: {}]
  %s3 = inlined_call_operand.hbm [shape: f32[9,72], index: 3, kind: input, shape index: {}]
  %s4 = inlined_call_operand.hbm [shape: f32[72,4608], index: 4, kind: input, shape index: {}]
  %s5 = inlined_call_operand.hbm [shape: f32[1,4608], index: 5, kind: input, shape index: {}]
  %s6 = inlined_call_operand.vmem [shape: f32[4,9,512], index: 6, kind: output, shape index: {0}]
  %s7 = inlined_call_operand.vmem [shape: f32[1,4,4608], index: 7, kind: output, shape index: {1}]
  %8 = xla_tuple %s6, %s7
  %s9 = sld [smem:[#allocation0]]
  $region58: #{abstracter_forward.1} parent=0
    _
  %s11 = ssub.s32 1, %s9
  %s12 = scalar_select 0, %s11, %s9
  $region1: #{abstracter_forward.1} parent=0
    #allocation2 [shape = 'u8[8192]{0}', space=vmem, size = 0x2000, scoped, tag = 'input window, operand 1, single buffered']
    #allocation3 [shape = 's32[1]{0}', space=sflag, size = 0x4, scoped, tag = 'scoped memory for abstracter_forward.1']
    #allocation4 [shape = 'u8[8192]{0}', space=vmem, size = 0x2000, scoped, tag = 'input window, operand 3, single buffered']
    #allocation5 [shape = 's32[1]{0}', space=sflag, size = 0x4, scoped, tag = 'scoped memory for abstracter_forward.1']
    #allocation6 [shape = 'u8[1327104]{0}', space=vmem, size = 0x144000, scoped, tag = 'input window, operand 4, single buffered']
    #allocation7 [shape = 'u8[18432]{0}', space=vmem, size = 0x4800, scoped, tag = 'input window, operand 5, single buffered']
    #allocation8 [shape = 's32[1]{0}', space=sflag, size = 0x4, scoped, tag = 'scoped memory for abstracter_forward.1']
    %13 = vsyncpa [#allocation3], 0
    %14 = vsyncpa [#allocation5], 0
    %15 = vsyncpa [#allocation8], 0
    // Predicated region
    $region2: #{abstracter_forward.1} parent=1 // pred_check
      _
    $region3: #{abstracter_forward.1} parent=1 // pred_check_branch
      %17 = sbr.rel (0) target = $region5
    $region4: #{abstracter_forward.1} parent=1 // pred_region
      _
    $region5: #{abstracter_forward.1} parent=1 // pred_fallthru
      _
    // Predicated region
    $region6: #{abstracter_forward.1} parent=1 // pred_check
      _
    $region7: #{abstracter_forward.1} parent=1 // pred_check_branch
      %19 = sbr.rel (0) target = $region9
    $region8: #{abstracter_forward.1} parent=1 // pred_region
      %s21 = ssub.s32 256, 256
      %22 = vsyncadd [#allocation3], %s21
      %s23 = sshll.u32 [#allocation2], 4
      %s24 = int_to_ptr.vmem [resolvable:$true] %s23
      %29 = dma.hbm_to_vmem [thread:$0]  %s1, 256, %s24, [#allocation3], 128, 128, 8
    $region9: #{abstracter_forward.1} parent=1 // pred_fallthru
      _
    // Predicated region
    $region10: #{abstracter_forward.1} parent=1 // pred_check
      _
    $region11: #{abstracter_forward.1} parent=1 // pred_check_branch
      %31 = sbr.rel (0) target = $region13
    $region12: #{abstracter_forward.1} parent=1 // pred_region
      _
    $region13: #{abstracter_forward.1} parent=1 // pred_fallthru
      _
    // Predicated region
    $region14: #{abstracter_forward.1} parent=1 // pred_check
      _
    $region15: #{abstracter_forward.1} parent=1 // pred_check_branch
      %33 = sbr.rel (0) target = $region17
    $region16: #{abstracter_forward.1} parent=1 // pred_region
      %s35 = ssub.s32 256, 256
      %36 = vsyncadd [#allocation5], %s35
      %s37 = sshll.u32 [#allocation4], 4
      %s38 = int_to_ptr.vmem [resolvable:$true] %s37
      %43 = dma.hbm_to_vmem [thread:$0]  %s3, 256, %s38, [#allocation5], 128, 128, 8
    $region17: #{abstracter_forward.1} parent=1 // pred_fallthru
      _
    // Predicated region
    $region18: #{abstracter_forward.1} parent=1 // pred_check
      _
    $region19: #{abstracter_forward.1} parent=1 // pred_check_branch
      %45 = sbr.rel (0) target = $region21
    $region20: #{abstracter_forward.1} parent=1 // pred_region
      %s47 = ssub.s32 41472, 41472
      %48 = vsyncadd [#allocation5], %s47
      %s49 = sshll.u32 [#allocation6], 4
      %s50 = int_to_ptr.vmem [resolvable:$true] %s49
      %55 = dma.hbm_to_vmem [thread:$0]  %s4, 41472, %s50, [#allocation5], 4608, 4608, 288
    $region21: #{abstracter_forward.1} parent=1 // pred_fallthru
      _
    // Predicated region
    $region22: #{abstracter_forward.1} parent=1 // pred_check
      _
    $region23: #{abstracter_forward.1} parent=1 // pred_check_branch
      %57 = sbr.rel (0) target = $region25
    $region24: #{abstracter_forward.1} parent=1 // pred_region
      %s59 = ssub.s32 576, 576
      %60 = vsyncadd [#allocation8], %s59
      %s62 = sshll.u32 [#allocation7], 4
      %s63 = int_to_ptr.vmem [resolvable:$true] %s62
      %65 = dma.hbm_to_vmem [thread:$0]  %s5, 576, %s63, [#allocation8]
    $region25: #{abstracter_forward.1} parent=1 // pred_fallthru
      _
    // Predicated region
    $region26: #{abstracter_forward.1} parent=1 // pred_check
      _
    $region27: #{abstracter_forward.1} parent=1 // pred_check_branch
      %67 = sbr.rel (0) target = $region29
    $region28: #{abstracter_forward.1} parent=1 // pred_region
      %68 = dma.done [#allocation3], 256
    $region29: #{abstracter_forward.1} parent=1 // pred_fallthru
      _
    // Predicated region
    $region30: #{abstracter_forward.1} parent=1 // pred_check
      _
    $region31: #{abstracter_forward.1} parent=1 // pred_check_branch
      %70 = sbr.rel (0) target = $region33
    $region32: #{abstracter_forward.1} parent=1 // pred_region
      %71 = dma.done [#allocation5], 256
    $region33: #{abstracter_forward.1} parent=1 // pred_fallthru
      _
    // Predicated region
    $region34: #{abstracter_forward.1} parent=1 // pred_check
      _
    $region35: #{abstracter_forward.1} parent=1 // pred_check_branch
      %73 = sbr.rel (0) target = $region37
    $region36: #{abstracter_forward.1} parent=1 // pred_region
      %74 = dma.done [#allocation5], 41472
    $region37: #{abstracter_forward.1} parent=1 // pred_fallthru
      _
    // Predicated region
    $region38: #{abstracter_forward.1} parent=1 // pred_check
      _
    $region39: #{abstracter_forward.1} parent=1 // pred_check_branch
      %76 = sbr.rel (0) target = $region41
    $region40: #{abstracter_forward.1} parent=1 // pred_region
      %77 = dma.done [#allocation8], 576
    $region41: #{abstracter_forward.1} parent=1 // pred_fallthru
      _
    %v78 = vld [vmem:[#allocation2] sm:$0xff]
    %v79 = vld [vmem:[#allocation2 + $0x8] sm:$0x1]
    %v80 = vld [vmem:[%s2] sm:$0xff]
    %v81 = vld [vmem:[%s2 + $0x8] sm:$0xff]
    %v82 = vld [vmem:[%s2 + $0x10] sm:$0xff]
    %v83 = vld [vmem:[%s2 + $0x18] sm:$0xff]
    %v84 = vld [vmem:[%s2 + $0x20] sm:$0xff]
    %v85 = vld [vmem:[%s2 + $0x28] sm:$0xff]
    %v86 = vld [vmem:[%s2 + $0x30] sm:$0xff]
    %v87 = vld [vmem:[%s2 + $0x38] sm:$0xff]
    %v88 = vld [vmem:[%s2 + $0x40] sm:$0xff]
    %v89 = vld [vmem:[%s2 + $0x48] sm:$0xff]
    %v90 = vld [vmem:[%s2 + $0x50] sm:$0xff]
    %v91 = vld [vmem:[%s2 + $0x58] sm:$0xff]
    %v92 = vld [vmem:[%s2 + $0x60] sm:$0xff]
    %v93 = vld [vmem:[%s2 + $0x68] sm:$0xff]
    %v94 = vld [vmem:[%s2 + $0x70] sm:$0xff]
    %v95 = vld [vmem:[%s2 + $0x78] sm:$0xff]
    %v96 = vld [vmem:[%s2 + $0x80] sm:$0xff]
    %v97 = vld [vmem:[%s2 + $0x88] sm:$0xff]
    %v98 = vld [vmem:[%s2 + $0x90] sm:$0xff]
    %v99 = vld [vmem:[%s2 + $0x98] sm:$0xff]
    %v100 = vld [vmem:[%s2 + $0xa0] sm:$0xff]
    %v101 = vld [vmem:[%s2 + $0xa8] sm:$0xff]
    %v102 = vld [vmem:[%s2 + $0xb0] sm:$0xff]
    %v103 = vld [vmem:[%s2 + $0xb8] sm:$0xff]
    %v104 = vld [vmem:[%s2 + $0xc0] sm:$0xff]
    %v105 = vld [vmem:[%s2 + $0xc8] sm:$0xff]
    %v106 = vld [vmem:[%s2 + $0xd0] sm:$0xff]
    %v107 = vld [vmem:[%s2 + $0xd8] sm:$0xff]
    %v108 = vld [vmem:[%s2 + $0xe0] sm:$0xff]
    %v109 = vld [vmem:[%s2 + $0xe8] sm:$0xff]
    %v110 = vld [vmem:[%s2 + $0xf0] sm:$0xff]
    %v111 = vld [vmem:[%s2 + $0xf8] sm:$0xff]
    %v112 = vld [vmem:[%s2 + $0x100] sm:$0xff]
    %v113 = vld [vmem:[%s2 + $0x108] sm:$0xff]
    %v114 = vld [vmem:[%s2 + $0x110] sm:$0xff]
    %v115 = vld [vmem:[%s2 + $0x118] sm:$0xff]
    %v116 = vld [vmem:[%s2 + $0x120] sm:$0xff]
    %v117 = vld [vmem:[%s2 + $0x128] sm:$0xff]
    %v118 = vld [vmem:[%s2 + $0x130] sm:$0xff]
    %v119 = vld [vmem:[%s2 + $0x138] sm:$0xff]
    %v120 = vld [vmem:[%s2 + $0x140] sm:$0xff]
    %v121 = vld [vmem:[%s2 + $0x148] sm:$0xff]
    %v122 = vld [vmem:[%s2 + $0x150] sm:$0xff]
    %v123 = vld [vmem:[%s2 + $0x158] sm:$0xff]
    %v124 = vld [vmem:[%s2 + $0x160] sm:$0xff]
    %v125 = vld [vmem:[%s2 + $0x168] sm:$0xff]
    %v126 = vld [vmem:[%s2 + $0x170] sm:$0xff]
    %v127 = vld [vmem:[%s2 + $0x178] sm:$0xff]
    %v128 = vld [vmem:[%s2 + $0x180] sm:$0xff]
    %v129 = vld [vmem:[%s2 + $0x188] sm:$0xff]
    %v130 = vld [vmem:[%s2 + $0x190] sm:$0xff]
    %v131 = vld [vmem:[%s2 + $0x198] sm:$0xff]
    %v132 = vld [vmem:[%s2 + $0x1a0] sm:$0xff]
    %v133 = vld [vmem:[%s2 + $0x1a8] sm:$0xff]
    %v134 = vld [vmem:[%s2 + $0x1b0] sm:$0xff]
    %v135 = vld [vmem:[%s2 + $0x1b8] sm:$0xff]
    %v136 = vld [vmem:[%s2 + $0x1c0] sm:$0xff]
    %v137 = vld [vmem:[%s2 + $0x1c8] sm:$0xff]
    %v138 = vld [vmem:[%s2 + $0x1d0] sm:$0xff]
    %v139 = vld [vmem:[%s2 + $0x1d8] sm:$0xff]
    %v140 = vld [vmem:[%s2 + $0x1e0] sm:$0xff]
    %v141 = vld [vmem:[%s2 + $0x1e8] sm:$0xff]
    %v142 = vld [vmem:[%s2 + $0x1f0] sm:$0xff]
    %v143 = vld [vmem:[%s2 + $0x1f8] sm:$0xff]
    %v144 = vld [vmem:[#allocation4] sm:$0xff]
    %v145 = vld [vmem:[#allocation4 + $0x8] sm:$0x1]
    %v146 = vld [vmem:[%s0] sm:$0xff]
    %v147 = vld [vmem:[%s0 + $0x8] sm:$0xff]
    %v148 = vld [vmem:[%s0 + $0x10] sm:$0xff]
    %v149 = vld [vmem:[%s0 + $0x18] sm:$0xff]
    %v150 = vld [vmem:[%s0 + $0x20] sm:$0xff]
    %v151 = vld [vmem:[%s0 + $0x28] sm:$0xff]
    %v152 = vld [vmem:[%s0 + $0x30] sm:$0xff]
    %v153 = vld [vmem:[%s0 + $0x38] sm:$0xff]
    %v154 = vld [vmem:[%s0 + $0x40] sm:$0xff]
    %v155 = vld [vmem:[%s0 + $0x48] sm:$0xff]
    %v156 = vld [vmem:[%s0 + $0x50] sm:$0xff]
    %v157 = vld [vmem:[%s0 + $0x58] sm:$0xff]
    %v158 = vld [vmem:[%s0 + $0x60] sm:$0xff]
    %v159 = vld [vmem:[%s0 + $0x68] sm:$0xff]
    %v160 = vld [vmem:[%s0 + $0x70] sm:$0xff]
    %v161 = vld [vmem:[%s0 + $0x78] sm:$0xff]
    %v162 = vld [vmem:[%s0 + $0x80] sm:$0xff]
    %v163 = vld [vmem:[%s0 + $0x88] sm:$0xff]
    %v164 = vld [vmem:[%s0 + $0x90] sm:$0xff]
    %v165 = vld [vmem:[%s0 + $0x98] sm:$0xff]
    %v166 = vld [vmem:[%s0 + $0xa0] sm:$0xff]
    %v167 = vld [vmem:[%s0 + $0xa8] sm:$0xff]
    %v168 = vld [vmem:[%s0 + $0xb0] sm:$0xff]
    %v169 = vld [vmem:[%s0 + $0xb8] sm:$0xff]
    %v170 = vld [vmem:[%s0 + $0xc0] sm:$0xff]
    %v171 = vld [vmem:[%s0 + $0xc8] sm:$0xff]
    %v172 = vld [vmem:[%s0 + $0xd0] sm:$0xff]
    %v173 = vld [vmem:[%s0 + $0xd8] sm:$0xff]
    %v174 = vld [vmem:[%s0 + $0xe0] sm:$0xff]
    %v175 = vld [vmem:[%s0 + $0xe8] sm:$0xff]
    %v176 = vld [vmem:[%s0 + $0xf0] sm:$0xff]
    %v177 = vld [vmem:[%s0 + $0xf8] sm:$0xff]
    %vm178 = vcmask 523264
    %v180 = vsel %vm178, %v78, 0
    %v183 = vsel %vm178, %v79, 0
    %185 = vmatprep.subr.mxu0 0.0
    %186 = vmatpush1.msra.mxu0 0.0
    %187 = vmatprep.subr.mxu0 0.0
    %188 = vmatpush1.msra.mxu0 0.0
    %189 = vmatprep.subr.mxu0 0.0
    %190 = vmatpush1.msra.mxu0 0.0
    %191 = vmatprep.subr.mxu0 0.0
    %192 = vmatpush1.msra.mxu0 0.0
    %193 = vmatprep.subr.mxu0 0.0
    %194 = vmatpush1.msra.mxu0 0.0
    %195 = vmatprep.subr.mxu0 0.0
    %196 = vmatpush1.msra.mxu0 0.0
    %197 = vmatprep.subr.mxu0 0.0
    %198 = vmatpush1.msra.mxu0 0.0
    %199 = vmatprep.subr.mxu0 0.0
    %200 = vmatpush1.msra.mxu0 0.0
    %201 = vmatprep.subr.mxu0 %v175
    %202 = vmatpush1.msra.mxu0 %v174
    %203 = vmatprep.subr.mxu0 %v171
    %204 = vmatpush1.msra.mxu0 %v170
    %205 = vmatprep.subr.mxu0 %v167
    %206 = vmatpush1.msra.mxu0 %v166
    %207 = vmatprep.subr.mxu0 %v163
    %208 = vmatpush1.msra.mxu0 %v162
    %209 = vmatprep.subr.mxu0 %v159
    %210 = vmatpush1.msra.mxu0 %v158
    %211 = vmatprep.subr.mxu0 %v155
    %212 = vmatpush1.msra.mxu0 %v154
    %213 = vmatprep.subr.mxu0 %v151
    %214 = vmatpush1.msra.mxu0 %v150
    %215 = vmatprep.subr.mxu0 %v147
    %216 = vmatpush1.msra.mxu0 %v146
    %217 = vmatprep.subr.mxu0 0.0
    %218 = vmatpush2.msra.mxu0 0.0
    %219 = vmatprep.subr.mxu0 0.0
    %220 = vmatpush2.msra.mxu0 0.0
    %221 = vmatprep.subr.mxu0 0.0
    %222 = vmatpush2.msra.mxu0 0.0
    %223 = vmatprep.subr.mxu0 0.0
    %224 = vmatpush2.msra.mxu0 0.0
    %225 = vmatprep.subr.mxu0 0.0
    %226 = vmatpush2.msra.mxu0 0.0
    %227 = vmatprep.subr.mxu0 0.0
    %228 = vmatpush2.msra.mxu0 0.0
    %229 = vmatprep.subr.mxu0 0.0
    %230 = vmatpush2.msra.mxu0 0.0
    %231 = vmatprep.subr.mxu0 0.0
    %232 = vmatpush2.msra.mxu0 0.0
    %233 = vmatprep.subr.mxu0 0.0
    %234 = vmatpush2.msra.mxu0 0.0
    %235 = vmatprep.subr.mxu0 0.0
    %236 = vmatpush2.msra.mxu0 0.0
    %237 = vmatprep.subr.mxu0 0.0
    %238 = vmatpush2.msra.mxu0 0.0
    %239 = vmatprep.subr.mxu0 0.0
    %240 = vmatpush2.msra.mxu0 0.0
    %241 = vmatprep.subr.mxu0 0.0
    %242 = vmatpush2.msra.mxu0 0.0
    %243 = vmatprep.subr.mxu0 0.0
    %244 = vmatpush2.msra.mxu0 0.0
    %245 = vmatprep.subr.mxu0 0.0
    %246 = vmatpush2.msra.mxu0 0.0
    %247 = vmatprep.subr.mxu0 0.0
    %248 = vmatpush2.msra.mxu0 0.0
    %249 = vmatprep.mubr.f32.mxu0 0.0
    %250 = vmatmul.mubr.f32.gmra.mxu0 %v180
    %v251 = vpop.f32.mrf.mxu0
    %v252 = vadd.f32 0.0, %v251
    %v253 = vpop.f32.mrf.mxu0
    %v254 = vadd.f32 0.0, %v253
    %255 = vmatprep.mubr.f32.mxu0 0.0
    %256 = vmatmul.mubr.f32.gmra.mxu0 %v183
    %v257 = vpop.f32.mrf.mxu0
    %v258 = vadd.f32 0.0, %v257
    %v259 = vpop.f32.mrf.mxu0
    %v260 = vadd.f32 0.0, %v259
    %261 = vdwg.mxu0
    %262 = vmatprep.subr.mxu0 0.0
    %263 = vmatpush1.msra.mxu0 0.0
    %264 = vmatprep.subr.mxu0 0.0
    %265 = vmatpush1.msra.mxu0 0.0
    %266 = vmatprep.subr.mxu0 0.0
    %267 = vmatpush1.msra.mxu0 0.0
    %268 = vmatprep.subr.mxu0 0.0
    %269 = vmatpush1.msra.mxu0 0.0
    %270 = vmatprep.subr.mxu0 0.0
    %271 = vmatpush1.msra.mxu0 0.0
    %272 = vmatprep.subr.mxu0 0.0
    %273 = vmatpush1.msra.mxu0 0.0
    %274 = vmatprep.subr.mxu0 0.0
    %275 = vmatpush1.msra.mxu0 0.0
    %276 = vmatprep.subr.mxu0 0.0
    %277 = vmatpush1.msra.mxu0 0.0
    %278 = vmatprep.subr.mxu0 %v177
    %279 = vmatpush1.msra.mxu0 %v176
    %280 = vmatprep.subr.mxu0 %v173
    %281 = vmatpush1.msra.mxu0 %v172
    %282 = vmatprep.subr.mxu0 %v169
    %283 = vmatpush1.msra.mxu0 %v168
    %284 = vmatprep.subr.mxu0 %v165
    %285 = vmatpush1.msra.mxu0 %v164
    %286 = vmatprep.subr.mxu0 %v161
    %287 = vmatpush1.msra.mxu0 %v160
    %288 = vmatprep.subr.mxu0 %v157
    %289 = vmatpush1.msra.mxu0 %v156
    %290 = vmatprep.subr.mxu0 %v153
    %291 = vmatpush1.msra.mxu0 %v152
    %292 = vmatprep.subr.mxu0 %v149
    %293 = vmatpush1.msra.mxu0 %v148
    %294 = vmatprep.subr.mxu0 0.0
    %295 = vmatpush2.msra.mxu0 0.0
    %296 = vmatprep.subr.mxu0 0.0
    %297 = vmatpush2.msra.mxu0 0.0
    %298 = vmatprep.subr.mxu0 0.0
    %299 = vmatpush2.msra.mxu0 0.0
    %300 = vmatprep.subr.mxu0 0.0
    %301 = vmatpush2.msra.mxu0 0.0
    %302 = vmatprep.subr.mxu0 0.0
    %303 = vmatpush2.msra.mxu0 0.0
    %304 = vmatprep.subr.mxu0 0.0
    %305 = vmatpush2.msra.mxu0 0.0
    %306 = vmatprep.subr.mxu0 0.0
    %307 = vmatpush2.msra.mxu0 0.0
    %308 = vmatprep.subr.mxu0 0.0
    %309 = vmatpush2.msra.mxu0 0.0
    %310 = vmatprep.subr.mxu0 0.0
    %311 = vmatpush2.msra.mxu0 0.0
    %312 = vmatprep.subr.mxu0 0.0
    %313 = vmatpush2.msra.mxu0 0.0
    %314 = vmatprep.subr.mxu0 0.0
    %315 = vmatpush2.msra.mxu0 0.0
    %316 = vmatprep.subr.mxu0 0.0
    %317 = vmatpush2.msra.mxu0 0.0
    %318 = vmatprep.subr.mxu0 0.0
    %319 = vmatpush2.msra.mxu0 0.0
    %320 = vmatprep.subr.mxu0 0.0
    %321 = vmatpush2.msra.mxu0 0.0
    %322 = vmatprep.subr.mxu0 0.0
    %323 = vmatpush2.msra.mxu0 0.0
    %324 = vmatprep.subr.mxu0 0.0
    %325 = vmatpush2.msra.mxu0 0.0
    %326 = vmatprep.mubr.f32.mxu0 0.0
    %327 = vmatmul.mubr.f32.gmra.mxu0 %v180
    %v328 = vpop.f32.mrf.mxu0
    %v329 = vadd.f32 0.0, %v328
    %v330 = vpop.f32.mrf.mxu0
    %v331 = vadd.f32 0.0, %v330
    %332 = vmatprep.mubr.f32.mxu0 0.0
    %333 = vmatmul.mubr.f32.gmra.mxu0 %v183
    %v334 = vpop.f32.mrf.mxu0
    %v335 = vadd.f32 0.0, %v334
    %v336 = vpop.f32.mrf.mxu0
    %v337 = vadd.f32 0.0, %v336
    %338 = vdwg.mxu0
    %339 = vst [vmem:[%s6] sm:$0xff] %v252
    %340 = vst [vmem:[%s6 + $0x8] sm:$0xff] %v254
    %341 = vst [vmem:[%s6 + $0x10] sm:$0xff] %v329
    %342 = vst [vmem:[%s6 + $0x18] sm:$0xff] %v331
    %343 = vst [vmem:[%s6 + $0x20] sm:$0x1] %v258
    %344 = vst [vmem:[%s6 + $0x28] sm:$0x1] %v260
    %345 = vst [vmem:[%s6 + $0x30] sm:$0x1] %v335
    %346 = vst [vmem:[%s6 + $0x38] sm:$0x1] %v337
    %347 = vmatprep.subr.mxu0 0.0
    %348 = vmatpush1.msra.mxu0 %v95
    %349 = vmatprep.subr.mxu0 0.0
    %350 = vmatpush1.msra.mxu0 %v94
    %351 = vmatprep.subr.mxu0 0.0
    %352 = vmatpush1.msra.mxu0 %v93
    %353 = vmatprep.subr.mxu0 0.0
    %354 = vmatpush1.msra.mxu0 %v92
    %355 = vmatprep.subr.mxu0 0.0
    %356 = vmatpush1.msra.mxu0 %v91
    %357 = vmatprep.subr.mxu0 0.0
    %358 = vmatpush1.msra.mxu0 %v90
    %359 = vmatprep.subr.mxu0 0.0
    %360 = vmatpush1.msra.mxu0 %v89
    %361 = vmatprep.subr.mxu0 0.0
    %362 = vmatpush1.msra.mxu0 %v88
    %363 = vmatprep.subr.mxu0 0.0
    %364 = vmatpush1.msra.mxu0 %v87
    %365 = vmatprep.subr.mxu0 0.0
    %366 = vmatpush1.msra.mxu0 %v86
    %367 = vmatprep.subr.mxu0 0.0
    %368 = vmatpush1.msra.mxu0 %v85
    %369 = vmatprep.subr.mxu0 0.0
    %370 = vmatpush1.msra.mxu0 %v84
    %371 = vmatprep.subr.mxu0 0.0
    %372 = vmatpush1.msra.mxu0 %v83
    %373 = vmatprep.subr.mxu0 0.0
    %374 = vmatpush1.msra.mxu0 %v82
    %375 = vmatprep.subr.mxu0 0.0
    %376 = vmatpush1.msra.mxu0 %v81
    %377 = vmatprep.subr.mxu0 0.0
    %378 = vmatpush1.msra.mxu0 %v80
    %379 = vmatprep.subr.mxu0 0.0
    %380 = vmatpush2.msra.mxu0 %v111
    %381 = vmatprep.subr.mxu0 0.0
    %382 = vmatpush2.msra.mxu0 %v110
    %383 = vmatprep.subr.mxu0 0.0
    %384 = vmatpush2.msra.mxu0 %v109
    %385 = vmatprep.subr.mxu0 0.0
    %386 = vmatpush2.msra.mxu0 %v108
    %387 = vmatprep.subr.mxu0 0.0
    %388 = vmatpush2.msra.mxu0 %v107
    %389 = vmatprep.subr.mxu0 0.0
    %390 = vmatpush2.msra.mxu0 %v106
    %391 = vmatprep.subr.mxu0 0.0
    %392 = vmatpush2.msra.mxu0 %v105
    %393 = vmatprep.subr.mxu0 0.0
    %394 = vmatpush2.msra.mxu0 %v104
    %395 = vmatprep.subr.mxu0 0.0
    %396 = vmatpush2.msra.mxu0 %v103
    %397 = vmatprep.subr.mxu0 0.0
    %398 = vmatpush2.msra.mxu0 %v102
    %399 = vmatprep.subr.mxu0 0.0
    %400 = vmatpush2.msra.mxu0 %v101
    %401 = vmatprep.subr.mxu0 0.0
    %402 = vmatpush2.msra.mxu0 %v100
    %403 = vmatprep.subr.mxu0 0.0
    %404 = vmatpush2.msra.mxu0 %v99
    %405 = vmatprep.subr.mxu0 0.0
    %406 = vmatpush2.msra.mxu0 %v98
    %407 = vmatprep.subr.mxu0 0.0
    %408 = vmatpush2.msra.mxu0 %v97
    %409 = vmatprep.subr.mxu0 0.0
    %410 = vmatpush2.msra.mxu0 %v96
    %411 = vmatprep.mubr.f32.mxu0 %v254
    %412 = vmatmul.mubr.f32.gmra.mxu0 %v252
    %v413 = vpop.f32.mrf.mxu0
    %v414 = vadd.f32 0.0, %v413
    %v415 = vpop.f32.mrf.mxu0
    %416 = vmatprep.mubr.f32.mxu0 %v260
    %417 = vmatmul.mubr.f32.gmra.mxu0 %v258
    %v418 = vpop.f32.mrf.mxu0
    %v419 = vadd.f32 0.0, %v418
    %v420 = vpop.f32.mrf.mxu0
    %421 = vdwg.mxu0
    %422 = vmatprep.subr.mxu0 0.0
    %423 = vmatpush1.msra.mxu0 %v127
    %424 = vmatprep.subr.mxu0 0.0
    %425 = vmatpush1.msra.mxu0 %v126
    %426 = vmatprep.subr.mxu0 0.0
    %427 = vmatpush1.msra.mxu0 %v125
    %428 = vmatprep.subr.mxu0 0.0
    %429 = vmatpush1.msra.mxu0 %v124
    %430 = vmatprep.subr.mxu0 0.0
    %431 = vmatpush1.msra.mxu0 %v123
    %432 = vmatprep.subr.mxu0 0.0
    %433 = vmatpush1.msra.mxu0 %v122
    %434 = vmatprep.subr.mxu0 0.0
    %435 = vmatpush1.msra.mxu0 %v121
    %436 = vmatprep.subr.mxu0 0.0
    %437 = vmatpush1.msra.mxu0 %v120
    %438 = vmatprep.subr.mxu0 0.0
    %439 = vmatpush1.msra.mxu0 %v119
    %440 = vmatprep.subr.mxu0 0.0
    %441 = vmatpush1.msra.mxu0 %v118
    %442 = vmatprep.subr.mxu0 0.0
    %443 = vmatpush1.msra.mxu0 %v117
    %444 = vmatprep.subr.mxu0 0.0
    %445 = vmatpush1.msra.mxu0 %v116
    %446 = vmatprep.subr.mxu0 0.0
    %447 = vmatpush1.msra.mxu0 %v115
    %448 = vmatprep.subr.mxu0 0.0
    %449 = vmatpush1.msra.mxu0 %v114
    %450 = vmatprep.subr.mxu0 0.0
    %451 = vmatpush1.msra.mxu0 %v113
    %452 = vmatprep.subr.mxu0 0.0
    %453 = vmatpush1.msra.mxu0 %v112
    %454 = vmatprep.subr.mxu0 0.0
    %455 = vmatpush2.msra.mxu0 %v143
    %456 = vmatprep.subr.mxu0 0.0
    %457 = vmatpush2.msra.mxu0 %v142
    %458 = vmatprep.subr.mxu0 0.0
    %459 = vmatpush2.msra.mxu0 %v141
    %460 = vmatprep.subr.mxu0 0.0
    %461 = vmatpush2.msra.mxu0 %v140
    %462 = vmatprep.subr.mxu0 0.0
    %463 = vmatpush2.msra.mxu0 %v139
    %464 = vmatprep.subr.mxu0 0.0
    %465 = vmatpush2.msra.mxu0 %v138
    %466 = vmatprep.subr.mxu0 0.0
    %467 = vmatpush2.msra.mxu0 %v137
    %468 = vmatprep.subr.mxu0 0.0
    %469 = vmatpush2.msra.mxu0 %v136
    %470 = vmatprep.subr.mxu0 0.0
    %471 = vmatpush2.msra.mxu0 %v135
    %472 = vmatprep.subr.mxu0 0.0
    %473 = vmatpush2.msra.mxu0 %v134
    %474 = vmatprep.subr.mxu0 0.0
    %475 = vmatpush2.msra.mxu0 %v133
    %476 = vmatprep.subr.mxu0 0.0
    %477 = vmatpush2.msra.mxu0 %v132
    %478 = vmatprep.subr.mxu0 0.0
    %479 = vmatpush2.msra.mxu0 %v131
    %480 = vmatprep.subr.mxu0 0.0
    %481 = vmatpush2.msra.mxu0 %v130
    %482 = vmatprep.subr.mxu0 0.0
    %483 = vmatpush2.msra.mxu0 %v129
    %484 = vmatprep.subr.mxu0 0.0
    %485 = vmatpush2.msra.mxu0 %v128
    %486 = vmatprep.mubr.f32.mxu0 %v331
    %487 = vmatmul.mubr.f32.gmra.mxu0 %v329
    %v488 = vpop.f32.mrf.mxu0
    %v489 = vadd.f32 %v414, %v488
    %v490 = vpop.f32.mrf.mxu0
    %491 = vmatprep.mubr.f32.mxu0 %v337
    %492 = vmatmul.mubr.f32.gmra.mxu0 %v335
    %v493 = vpop.f32.mrf.mxu0
    %v494 = vadd.f32 %v419, %v493
    %v495 = vpop.f32.mrf.mxu0
    %496 = vdwg.mxu0
    %v497 = vmul.f32 %v489, %v144
    %v498 = vmul.f32 %v494, %v145
    %vm499 = vcmask 588800
    %v500 = vsel %vm499, %v497, 0.0
    %vm501 = vcmask 581632
    %v502 = vsel %vm501, %v498, 0.0
    %v503 = vadd.f32 %v500, %v502
    %v504 = vrot.slane %v503, 4
    %v505 = vadd.f32 %v503, %v504
    %v506 = vrot.slane %v505, 2
    %v507 = vadd.f32 %v505, %v506
    %v508 = vrot.slane %v507, 1
    %v509 = vadd.f32 %v507, %v508
    %s510 = scalar_lea.vmem %s0, 256
    %v511 = vld [vmem:[%s510] sm:$0xff]
    %v512 = vld [vmem:[%s510 + $0x8] sm:$0xff]
    %v513 = vld [vmem:[%s510 + $0x10] sm:$0xff]
    %v514 = vld [vmem:[%s510 + $0x18] sm:$0xff]
    %v515 = vld [vmem:[%s510 + $0x20] sm:$0xff]
    %v516 = vld [vmem:[%s510 + $0x28] sm:$0xff]
    %v517 = vld [vmem:[%s510 + $0x30] sm:$0xff]
    %v518 = vld [vmem:[%s510 + $0x38] sm:$0xff]
    %v519 = vld [vmem:[%s510 + $0x40] sm:$0xff]
    %v520 = vld [vmem:[%s510 + $0x48] sm:$0xff]
    %v521 = vld [vmem:[%s510 + $0x50] sm:$0xff]
    %v522 = vld [vmem:[%s510 + $0x58] sm:$0xff]
    %v523 = vld [vmem:[%s510 + $0x60] sm:$0xff]
    %v524 = vld [vmem:[%s510 + $0x68] sm:$0xff]
    %v525 = vld [vmem:[%s510 + $0x70] sm:$0xff]
    %v526 = vld [vmem:[%s510 + $0x78] sm:$0xff]
    %v527 = vld [vmem:[%s510 + $0x80] sm:$0xff]
    %v528 = vld [vmem:[%s510 + $0x88] sm:$0xff]
    %v529 = vld [vmem:[%s510 + $0x90] sm:$0xff]
    %v530 = vld [vmem:[%s510 + $0x98] sm:$0xff]
    %v531 = vld [vmem:[%s510 + $0xa0] sm:$0xff]
    %v532 = vld [vmem:[%s510 + $0xa8] sm:$0xff]
    %v533 = vld [vmem:[%s510 + $0xb0] sm:$0xff]
    %v534 = vld [vmem:[%s510 + $0xb8] sm:$0xff]
    %v535 = vld [vmem:[%s510 + $0xc0] sm:$0xff]
    %v536 = vld [vmem:[%s510 + $0xc8] sm:$0xff]
    %v537 = vld [vmem:[%s510 + $0xd0] sm:$0xff]
    %v538 = vld [vmem:[%s510 + $0xd8] sm:$0xff]
    %v539 = vld [vmem:[%s510 + $0xe0] sm:$0xff]
    %v540 = vld [vmem:[%s510 + $0xe8] sm:$0xff]
    %v541 = vld [vmem:[%s510 + $0xf0] sm:$0xff]
    %v542 = vld [vmem:[%s510 + $0xf8] sm:$0xff]
    %543 = vmatprep.subr.mxu0 0.0
    %544 = vmatpush1.msra.mxu0 0.0
    %545 = vmatprep.subr.mxu0 0.0
    %546 = vmatpush1.msra.mxu0 0.0
    %547 = vmatprep.subr.mxu0 0.0
    %548 = vmatpush1.msra.mxu0 0.0
    %549 = vmatprep.subr.mxu0 0.0
    %550 = vmatpush1.msra.mxu0 0.0
    %551 = vmatprep.subr.mxu0 0.0
    %552 = vmatpush1.msra.mxu0 0.0
    %553 = vmatprep.subr.mxu0 0.0
    %554 = vmatpush1.msra.mxu0 0.0
    %555 = vmatprep.subr.mxu0 0.0
    %556 = vmatpush1.msra.mxu0 0.0
    %557 = vmatprep.subr.mxu0 0.0
    %558 = vmatpush1.msra.mxu0 0.0
    %559 = vmatprep.subr.mxu0 %v540
    %560 = vmatpush1.msra.mxu0 %v539
    %561 = vmatprep.subr.mxu0 %v536
    %562 = vmatpush1.msra.mxu0 %v535
    %563 = vmatprep.subr.mxu0 %v532
    %564 = vmatpush1.msra.mxu0 %v531
    %565 = vmatprep.subr.mxu0 %v528
    %566 = vmatpush1.msra.mxu0 %v527
    %567 = vmatprep.subr.mxu0 %v524
    %568 = vmatpush1.msra.mxu0 %v523
    %569 = vmatprep.subr.mxu0 %v520
    %570 = vmatpush1.msra.mxu0 %v519
    %571 = vmatprep.subr.mxu0 %v516
    %572 = vmatpush1.msra.mxu0 %v515
    %573 = vmatprep.subr.mxu0 %v512
    %574 = vmatpush1.msra.mxu0 %v511
    %575 = vmatprep.subr.mxu0 0.0
    %576 = vmatpush2.msra.mxu0 0.0
    %577 = vmatprep.subr.mxu0 0.0
    %578 = vmatpush2.msra.mxu0 0.0
    %579 = vmatprep.subr.mxu0 0.0
    %580 = vmatpush2.msra.mxu0 0.0
    %581 = vmatprep.subr.mxu0 0.0
    %582 = vmatpush2.msra.mxu0 0.0
    %583 = vmatprep.subr.mxu0 0.0
    %584 = vmatpush2.msra.mxu0 0.0
    %585 = vmatprep.subr.mxu0 0.0
    %586 = vmatpush2.msra.mxu0 0.0
    %587 = vmatprep.subr.mxu0 0.0
    %588 = vmatpush2.msra.mxu0 0.0
    %589 = vmatprep.subr.mxu0 0.0
    %590 = vmatpush2.msra.mxu0 0.0
    %591 = vmatprep.subr.mxu0 0.0
    %592 = vmatpush2.msra.mxu0 0.0
    %593 = vmatprep.subr.mxu0 0.0
    %594 = vmatpush2.msra.mxu0 0.0
    %595 = vmatprep.subr.mxu0 0.0
    %596 = vmatpush2.msra.mxu0 0.0
    %597 = vmatprep.subr.mxu0 0.0
    %598 = vmatpush2.msra.mxu0 0.0
    %599 = vmatprep.subr.mxu0 0.0
    %600 = vmatpush2.msra.mxu0 0.0
    %601 = vmatprep.subr.mxu0 0.0
    %602 = vmatpush2.msra.mxu0 0.0
    %603 = vmatprep.subr.mxu0 0.0
    %604 = vmatpush2.msra.mxu0 0.0
    %605 = vmatprep.subr.mxu0 0.0
    %606 = vmatpush2.msra.mxu0 0.0
    %607 = vmatprep.mubr.f32.mxu0 0.0
    %608 = vmatmul.mubr.f32.gmra.mxu0 %v180
    %v609 = vpop.f32.mrf.mxu0
    %v610 = vadd.f32 0.0, %v609
    %v611 = vpop.f32.mrf.mxu0
    %v612 = vadd.f32 0.0, %v611
    %613 = vmatprep.mubr.f32.mxu0 0.0
    %614 = vmatmul.mubr.f32.gmra.mxu0 %v183
    %v615 = vpop.f32.mrf.mxu0
    %v616 = vadd.f32 0.0, %v615
    %v617 = vpop.f32.mrf.mxu0
    %v618 = vadd.f32 0.0, %v617
    %619 = vdwg.mxu0
    %620 = vmatprep.subr.mxu0 0.0
    %621 = vmatpush1.msra.mxu0 0.0
    %622 = vmatprep.subr.mxu0 0.0
    %623 = vmatpush1.msra.mxu0 0.0
    %624 = vmatprep.subr.mxu0 0.0
    %625 = vmatpush1.msra.mxu0 0.0
    %626 = vmatprep.subr.mxu0 0.0
    %627 = vmatpush1.msra.mxu0 0.0
    %628 = vmatprep.subr.mxu0 0.0
    %629 = vmatpush1.msra.mxu0 0.0
    %630 = vmatprep.subr.mxu0 0.0
    %631 = vmatpush1.msra.mxu0 0.0
    %632 = vmatprep.subr.mxu0 0.0
    %633 = vmatpush1.msra.mxu0 0.0
    %634 = vmatprep.subr.mxu0 0.0
    %635 = vmatpush1.msra.mxu0 0.0
    %636 = vmatprep.subr.mxu0 %v542
    %637 = vmatpush1.msra.mxu0 %v541
    %638 = vmatprep.subr.mxu0 %v538
    %639 = vmatpush1.msra.mxu0 %v537
    %640 = vmatprep.subr.mxu0 %v534
    %641 = vmatpush1.msra.mxu0 %v533
    %642 = vmatprep.subr.mxu0 %v530
    %643 = vmatpush1.msra.mxu0 %v529
    %644 = vmatprep.subr.mxu0 %v526
    %645 = vmatpush1.msra.mxu0 %v525
    %646 = vmatprep.subr.mxu0 %v522
    %647 = vmatpush1.msra.mxu0 %v521
    %648 = vmatprep.subr.mxu0 %v518
    %649 = vmatpush1.msra.mxu0 %v517
    %650 = vmatprep.subr.mxu0 %v514
    %651 = vmatpush1.msra.mxu0 %v513
    %652 = vmatprep.subr.mxu0 0.0
    %653 = vmatpush2.msra.mxu0 0.0
    %654 = vmatprep.subr.mxu0 0.0
    %655 = vmatpush2.msra.mxu0 0.0
    %656 = vmatprep.subr.mxu0 0.0
    %657 = vmatpush2.msra.mxu0 0.0
    %658 = vmatprep.subr.mxu0 0.0
    %659 = vmatpush2.msra.mxu0 0.0
    %660 = vmatprep.subr.mxu0 0.0
    %661 = vmatpush2.msra.mxu0 0.0
    %662 = vmatprep.subr.mxu0 0.0
    %663 = vmatpush2.msra.mxu0 0.0
    %664 = vmatprep.subr.mxu0 0.0
    %665 = vmatpush2.msra.mxu0 0.0
    %666 = vmatprep.subr.mxu0 0.0
    %667 = vmatpush2.msra.mxu0 0.0
    %668 = vmatprep.subr.mxu0 0.0
    %669 = vmatpush2.msra.mxu0 0.0
    %670 = vmatprep.subr.mxu0 0.0
    %671 = vmatpush2.msra.mxu0 0.0
    %672 = vmatprep.subr.mxu0 0.0
    %673 = vmatpush2.msra.mxu0 0.0
    %674 = vmatprep.subr.mxu0 0.0
    %675 = vmatpush2.msra.mxu0 0.0
    %676 = vmatprep.subr.mxu0 0.0
    %677 = vmatpush2.msra.mxu0 0.0
    %678 = vmatprep.subr.mxu0 0.0
    %679 = vmatpush2.msra.mxu0 0.0
    %680 = vmatprep.subr.mxu0 0.0
    %681 = vmatpush2.msra.mxu0 0.0
    %682 = vmatprep.subr.mxu0 0.0
    %683 = vmatpush2.msra.mxu0 0.0
    %684 = vmatprep.mubr.f32.mxu0 0.0
    %685 = vmatmul.mubr.f32.gmra.mxu0 %v180
    %v686 = vpop.f32.mrf.mxu0
    %v687 = vadd.f32 0.0, %v686
    %v688 = vpop.f32.mrf.mxu0
    %v689 = vadd.f32 0.0, %v688
    %690 = vmatprep.mubr.f32.mxu0 0.0
    %691 = vmatmul.mubr.f32.gmra.mxu0 %v183
    %v692 = vpop.f32.mrf.mxu0
    %v693 = vadd.f32 0.0, %v692
    %v694 = vpop.f32.mrf.mxu0
    %v695 = vadd.f32 0.0, %v694
    %696 = vdwg.mxu0
    %s697 = scalar_lea.vmem %s6, 64
    %698 = vst [vmem:[%s697] sm:$0xff] %v610
    %699 = vst [vmem:[%s697 + $0x8] sm:$0xff] %v612
    %700 = vst [vmem:[%s697 + $0x10] sm:$0xff] %v687
    %701 = vst [vmem:[%s697 + $0x18] sm:$0xff] %v689
    %702 = vst [vmem:[%s697 + $0x20] sm:$0x1] %v616
    %703 = vst [vmem:[%s697 + $0x28] sm:$0x1] %v618
    %704 = vst [vmem:[%s697 + $0x30] sm:$0x1] %v693
    %705 = vst [vmem:[%s697 + $0x38] sm:$0x1] %v695
    %706 = vmatprep.subr.mxu0 0.0
    %707 = vmatpush1.msra.mxu0 %v95
    %708 = vmatprep.subr.mxu0 0.0
    %709 = vmatpush1.msra.mxu0 %v94
    %710 = vmatprep.subr.mxu0 0.0
    %711 = vmatpush1.msra.mxu0 %v93
    %712 = vmatprep.subr.mxu0 0.0
    %713 = vmatpush1.msra.mxu0 %v92
    %714 = vmatprep.subr.mxu0 0.0
    %715 = vmatpush1.msra.mxu0 %v91
    %716 = vmatprep.subr.mxu0 0.0
    %717 = vmatpush1.msra.mxu0 %v90
    %718 = vmatprep.subr.mxu0 0.0
    %719 = vmatpush1.msra.mxu0 %v89
    %720 = vmatprep.subr.mxu0 0.0
    %721 = vmatpush1.msra.mxu0 %v88
    %722 = vmatprep.subr.mxu0 0.0
    %723 = vmatpush1.msra.mxu0 %v87
    %724 = vmatprep.subr.mxu0 0.0
    %725 = vmatpush1.msra.mxu0 %v86
    %726 = vmatprep.subr.mxu0 0.0
    %727 = vmatpush1.msra.mxu0 %v85
    %728 = vmatprep.subr.mxu0 0.0
    %729 = vmatpush1.msra.mxu0 %v84
    %730 = vmatprep.subr.mxu0 0.0
    %731 = vmatpush1.msra.mxu0 %v83
    %732 = vmatprep.subr.mxu0 0.0
    %733 = vmatpush1.msra.mxu0 %v82
    %734 = vmatprep.subr.mxu0 0.0
    %735 = vmatpush1.msra.mxu0 %v81
    %736 = vmatprep.subr.mxu0 0.0
    %737 = vmatpush1.msra.mxu0 %v80
    %738 = vmatprep.subr.mxu0 0.0
    %739 = vmatpush2.msra.mxu0 %v111
    %740 = vmatprep.subr.mxu0 0.0
    %741 = vmatpush2.msra.mxu0 %v110
    %742 = vmatprep.subr.mxu0 0.0
    %743 = vmatpush2.msra.mxu0 %v109
    %744 = vmatprep.subr.mxu0 0.0
    %745 = vmatpush2.msra.mxu0 %v108
    %746 = vmatprep.subr.mxu0 0.0
    %747 = vmatpush2.msra.mxu0 %v107
    %748 = vmatprep.subr.mxu0 0.0
    %749 = vmatpush2.msra.mxu0 %v106
    %750 = vmatprep.subr.mxu0 0.0
    %751 = vmatpush2.msra.mxu0 %v105
    %752 = vmatprep.subr.mxu0 0.0
    %753 = vmatpush2.msra.mxu0 %v104
    %754 = vmatprep.subr.mxu0 0.0
    %755 = vmatpush2.msra.mxu0 %v103
    %756 = vmatprep.subr.mxu0 0.0
    %757 = vmatpush2.msra.mxu0 %v102
    %758 = vmatprep.subr.mxu0 0.0
    %759 = vmatpush2.msra.mxu0 %v101
    %760 = vmatprep.subr.mxu0 0.0
    %761 = vmatpush2.msra.mxu0 %v100
    %762 = vmatprep.subr.mxu0 0.0
    %763 = vmatpush2.msra.mxu0 %v99
    %764 = vmatprep.subr.mxu0 0.0
    %765 = vmatpush2.msra.mxu0 %v98
    %766 = vmatprep.subr.mxu0 0.0
    %767 = vmatpush2.msra.mxu0 %v97
    %768 = vmatprep.subr.mxu0 0.0
    %769 = vmatpush2.msra.mxu0 %v96
    %770 = vmatprep.mubr.f32.mxu0 %v612
    %771 = vmatmul.mubr.f32.gmra.mxu0 %v610
    %v772 = vpop.f32.mrf.mxu0
    %v773 = vadd.f32 0.0, %v772
    %v774 = vpop.f32.mrf.mxu0
    %775 = vmatprep.mubr.f32.mxu0 %v618
    %776 = vmatmul.mubr.f32.gmra.mxu0 %v616
    %v777 = vpop.f32.mrf.mxu0
    %v778 = vadd.f32 0.0, %v777
    %v779 = vpop.f32.mrf.mxu0
    %780 = vdwg.mxu0
    %781 = vmatprep.subr.mxu0 0.0
    %782 = vmatpush1.msra.mxu0 %v127
    %783 = vmatprep.subr.mxu0 0.0
    %784 = vmatpush1.msra.mxu0 %v126
    %785 = vmatprep.subr.mxu0 0.0
    %786 = vmatpush1.msra.mxu0 %v125
    %787 = vmatprep.subr.mxu0 0.0
    %788 = vmatpush1.msra.mxu0 %v124
    %789 = vmatprep.subr.mxu0 0.0
    %790 = vmatpush1.msra.mxu0 %v123
    %791 = vmatprep.subr.mxu0 0.0
    %792 = vmatpush1.msra.mxu0 %v122
    %793 = vmatprep.subr.mxu0 0.0
    %794 = vmatpush1.msra.mxu0 %v121
    %795 = vmatprep.subr.mxu0 0.0
    %796 = vmatpush1.msra.mxu0 %v120
    %797 = vmatprep.subr.mxu0 0.0
    %798 = vmatpush1.msra.mxu0 %v119
    %799 = vmatprep.subr.mxu0 0.0
    %800 = vmatpush1.msra.mxu0 %v118
    %801 = vmatprep.subr.mxu0 0.0
    %802 = vmatpush1.msra.mxu0 %v117
    %803 = vmatprep.subr.mxu0 0.0
    %804 = vmatpush1.msra.mxu0 %v116
    %805 = vmatprep.subr.mxu0 0.0
    %806 = vmatpush1.msra.mxu0 %v115
    %807 = vmatprep.subr.mxu0 0.0
    %808 = vmatpush1.msra.mxu0 %v114
    %809 = vmatprep.subr.mxu0 0.0
    %810 = vmatpush1.msra.mxu0 %v113
    %811 = vmatprep.subr.mxu0 0.0
    %812 = vmatpush1.msra.mxu0 %v112
    %813 = vmatprep.subr.mxu0 0.0
    %814 = vmatpush2.msra.mxu0 %v143
    %815 = vmatprep.subr.mxu0 0.0
    %816 = vmatpush2.msra.mxu0 %v142
    %817 = vmatprep.subr.mxu0 0.0
    %818 = vmatpush2.msra.mxu0 %v141
    %819 = vmatprep.subr.mxu0 0.0
    %820 = vmatpush2.msra.mxu0 %v140
    %821 = vmatprep.subr.mxu0 0.0
    %822 = vmatpush2.msra.mxu0 %v139
    %823 = vmatprep.subr.mxu0 0.0
    %824 = vmatpush2.msra.mxu0 %v138
    %825 = vmatprep.subr.mxu0 0.0
    %826 = vmatpush2.msra.mxu0 %v137
    %827 = vmatprep.subr.mxu0 0.0
    %828 = vmatpush2.msra.mxu0 %v136
    %829 = vmatprep.subr.mxu0 0.0
    %830 = vmatpush2.msra.mxu0 %v135
    %831 = vmatprep.subr.mxu0 0.0
    %832 = vmatpush2.msra.mxu0 %v134
    %833 = vmatprep.subr.mxu0 0.0
    %834 = vmatpush2.msra.mxu0 %v133
    %835 = vmatprep.subr.mxu0 0.0
    %836 = vmatpush2.msra.mxu0 %v132
    %837 = vmatprep.subr.mxu0 0.0
    %838 = vmatpush2.msra.mxu0 %v131
    %839 = vmatprep.subr.mxu0 0.0
    %840 = vmatpush2.msra.mxu0 %v130
    %841 = vmatprep.subr.mxu0 0.0
    %842 = vmatpush2.msra.mxu0 %v129
    %843 = vmatprep.subr.mxu0 0.0
    %844 = vmatpush2.msra.mxu0 %v128
    %845 = vmatprep.mubr.f32.mxu0 %v689
    %846 = vmatmul.mubr.f32.gmra.mxu0 %v687
    %v847 = vpop.f32.mrf.mxu0
    %v848 = vadd.f32 %v773, %v847
    %v849 = vpop.f32.mrf.mxu0
    %850 = vmatprep.mubr.f32.mxu0 %v695
    %851 = vmatmul.mubr.f32.gmra.mxu0 %v693
    %v852 = vpop.f32.mrf.mxu0
    %v853 = vadd.f32 %v778, %v852
    %v854 = vpop.f32.mrf.mxu0
    %855 = vdwg.mxu0
    %v856 = vmul.f32 %v848, %v144
    %v857 = vmul.f32 %v853, %v145
    %v858 = vsel %vm499, %v856, 0.0
    %v859 = vsel %vm501, %v857, 0.0
    %v860 = vadd.f32 %v858, %v859
    %v861 = vrot.slane %v860, 4
    %v862 = vadd.f32 %v860, %v861
    %v863 = vrot.slane %v862, 2
    %v864 = vadd.f32 %v862, %v863
    %v865 = vrot.slane %v864, 1
    %v866 = vadd.f32 %v864, %v865
    %s867 = scalar_lea.vmem %s0, 512
    %v868 = vld [vmem:[%s867] sm:$0xff]
    %v869 = vld [vmem:[%s867 + $0x8] sm:$0xff]
    %v870 = vld [vmem:[%s867 + $0x10] sm:$0xff]
    %v871 = vld [vmem:[%s867 + $0x18] sm:$0xff]
    %v872 = vld [vmem:[%s867 + $0x20] sm:$0xff]
    %v873 = vld [vmem:[%s867 + $0x28] sm:$0xff]
    %v874 = vld [vmem:[%s867 + $0x30] sm:$0xff]
    %v875 = vld [vmem:[%s867 + $0x38] sm:$0xff]
    %v876 = vld [vmem:[%s867 + $0x40] sm:$0xff]
    %v877 = vld [vmem:[%s867 + $0x48] sm:$0xff]
    %v878 = vld [vmem:[%s867 + $0x50] sm:$0xff]
    %v879 = vld [vmem:[%s867 + $0x58] sm:$0xff]
    %v880 = vld [vmem:[%s867 + $0x60] sm:$0xff]
    %v881 = vld [vmem:[%s867 + $0x68] sm:$0xff]
    %v882 = vld [vmem:[%s867 + $0x70] sm:$0xff]
    %v883 = vld [vmem:[%s867 + $0x78] sm:$0xff]
    %v884 = vld [vmem:[%s867 + $0x80] sm:$0xff]
    %v885 = vld [vmem:[%s867 + $0x88] sm:$0xff]
    %v886 = vld [vmem:[%s867 + $0x90] sm:$0xff]
    %v887 = vld [vmem:[%s867 + $0x98] sm:$0xff]
    %v888 = vld [vmem:[%s867 + $0xa0] sm:$0xff]
    %v889 = vld [vmem:[%s867 + $0xa8] sm:$0xff]
    %v890 = vld [vmem:[%s867 + $0xb0] sm:$0xff]
    %v891 = vld [vmem:[%s867 + $0xb8] sm:$0xff]
    %v892 = vld [vmem:[%s867 + $0xc0] sm:$0xff]
    %v893 = vld [vmem:[%s867 + $0xc8] sm:$0xff]
    %v894 = vld [vmem:[%s867 + $0xd0] sm:$0xff]
    %v895 = vld [vmem:[%s867 + $0xd8] sm:$0xff]
    %v896 = vld [vmem:[%s867 + $0xe0] sm:$0xff]
    %v897 = vld [vmem:[%s867 + $0xe8] sm:$0xff]
    %v898 = vld [vmem:[%s867 + $0xf0] sm:$0xff]
    %v899 = vld [vmem:[%s867 + $0xf8] sm:$0xff]
    %900 = vmatprep.subr.mxu0 0.0
    %901 = vmatpush1.msra.mxu0 0.0
    %902 = vmatprep.subr.mxu0 0.0
    %903 = vmatpush1.msra.mxu0 0.0
    %904 = vmatprep.subr.mxu0 0.0
    %905 = vmatpush1.msra.mxu0 0.0
    %906 = vmatprep.subr.mxu0 0.0
    %907 = vmatpush1.msra.mxu0 0.0
    %908 = vmatprep.subr.mxu0 0.0
    %909 = vmatpush1.msra.mxu0 0.0
    %910 = vmatprep.subr.mxu0 0.0
    %911 = vmatpush1.msra.mxu0 0.0
    %912 = vmatprep.subr.mxu0 0.0
    %913 = vmatpush1.msra.mxu0 0.0
    %914 = vmatprep.subr.mxu0 0.0
    %915 = vmatpush1.msra.mxu0 0.0
    %916 = vmatprep.subr.mxu0 %v897
    %917 = vmatpush1.msra.mxu0 %v896
    %918 = vmatprep.subr.mxu0 %v893
    %919 = vmatpush1.msra.mxu0 %v892
    %920 = vmatprep.subr.mxu0 %v889
    %921 = vmatpush1.msra.mxu0 %v888
    %922 = vmatprep.subr.mxu0 %v885
    %923 = vmatpush1.msra.mxu0 %v884
    %924 = vmatprep.subr.mxu0 %v881
    %925 = vmatpush1.msra.mxu0 %v880
    %926 = vmatprep.subr.mxu0 %v877
    %927 = vmatpush1.msra.mxu0 %v876
    %928 = vmatprep.subr.mxu0 %v873
    %929 = vmatpush1.msra.mxu0 %v872
    %930 = vmatprep.subr.mxu0 %v869
    %931 = vmatpush1.msra.mxu0 %v868
    %932 = vmatprep.subr.mxu0 0.0
    %933 = vmatpush2.msra.mxu0 0.0
    %934 = vmatprep.subr.mxu0 0.0
    %935 = vmatpush2.msra.mxu0 0.0
    %936 = vmatprep.subr.mxu0 0.0
    %937 = vmatpush2.msra.mxu0 0.0
    %938 = vmatprep.subr.mxu0 0.0
    %939 = vmatpush2.msra.mxu0 0.0
    %940 = vmatprep.subr.mxu0 0.0
    %941 = vmatpush2.msra.mxu0 0.0
    %942 = vmatprep.subr.mxu0 0.0
    %943 = vmatpush2.msra.mxu0 0.0
    %944 = vmatprep.subr.mxu0 0.0
    %945 = vmatpush2.msra.mxu0 0.0
    %946 = vmatprep.subr.mxu0 0.0
    %947 = vmatpush2.msra.mxu0 0.0
    %948 = vmatprep.subr.mxu0 0.0
    %949 = vmatpush2.msra.mxu0 0.0
    %950 = vmatprep.subr.mxu0 0.0
    %951 = vmatpush2.msra.mxu0 0.0
    %952 = vmatprep.subr.mxu0 0.0
    %953 = vmatpush2.msra.mxu0 0.0
    %954 = vmatprep.subr.mxu0 0.0
    %955 = vmatpush2.msra.mxu0 0.0
    %956 = vmatprep.subr.mxu0 0.0
    %957 = vmatpush2.msra.mxu0 0.0
    %958 = vmatprep.subr.mxu0 0.0
    %959 = vmatpush2.msra.mxu0 0.0
    %960 = vmatprep.subr.mxu0 0.0
    %961 = vmatpush2.msra.mxu0 0.0
    %962 = vmatprep.subr.mxu0 0.0
    %963 = vmatpush2.msra.mxu0 0.0
    %964 = vmatprep.mubr.f32.mxu0 0.0
    %965 = vmatmul.mubr.f32.gmra.mxu0 %v180
    %v966 = vpop.f32.mrf.mxu0
    %v967 = vadd.f32 0.0, %v966
    %v968 = vpop.f32.mrf.mxu0
    %v969 = vadd.f32 0.0, %v968
    %970 = vmatprep.mubr.f32.mxu0 0.0
    %971 = vmatmul.mubr.f32.gmra.mxu0 %v183
    %v972 = vpop.f32.mrf.mxu0
    %v973 = vadd.f32 0.0, %v972
    %v974 = vpop.f32.mrf.mxu0
    %v975 = vadd.f32 0.0, %v974
    %976 = vdwg.mxu0
    %977 = vmatprep.subr.mxu0 0.0
    %978 = vmatpush1.msra.mxu0 0.0
    %979 = vmatprep.subr.mxu0 0.0
    %980 = vmatpush1.msra.mxu0 0.0
    %981 = vmatprep.subr.mxu0 0.0
    %982 = vmatpush1.msra.mxu0 0.0
    %983 = vmatprep.subr.mxu0 0.0
    %984 = vmatpush1.msra.mxu0 0.0
    %985 = vmatprep.subr.mxu0 0.0
    %986 = vmatpush1.msra.mxu0 0.0
    %987 = vmatprep.subr.mxu0 0.0
    %988 = vmatpush1.msra.mxu0 0.0
    %989 = vmatprep.subr.mxu0 0.0
    %990 = vmatpush1.msra.mxu0 0.0
    %991 = vmatprep.subr.mxu0 0.0
    %992 = vmatpush1.msra.mxu0 0.0
    %993 = vmatprep.subr.mxu0 %v899
    %994 = vmatpush1.msra.mxu0 %v898
    %995 = vmatprep.subr.mxu0 %v895
    %996 = vmatpush1.msra.mxu0 %v894
    %997 = vmatprep.subr.mxu0 %v891
    %998 = vmatpush1.msra.mxu0 %v890
    %999 = vmatprep.subr.mxu0 %v887
    %1000 = vmatpush1.msra.mxu0 %v886
    %1001 = vmatprep.subr.mxu0 %v883
    %1002 = vmatpush1.msra.mxu0 %v882
    %1003 = vmatprep.subr.mxu0 %v879
    %1004 = vmatpush1.msra.mxu0 %v878
    %1005 = vmatprep.subr.mxu0 %v875
    %1006 = vmatpush1.msra.mxu0 %v874
    %1007 = vmatprep.subr.mxu0 %v871
    %1008 = vmatpush1.msra.mxu0 %v870
    %1009 = vmatprep.subr.mxu0 0.0
    %1010 = vmatpush2.msra.mxu0 0.0
    %1011 = vmatprep.subr.mxu0 0.0
    %1012 = vmatpush2.msra.mxu0 0.0
    %1013 = vmatprep.subr.mxu0 0.0
    %1014 = vmatpush2.msra.mxu0 0.0
    %1015 = vmatprep.subr.mxu0 0.0
    %1016 = vmatpush2.msra.mxu0 0.0
    %1017 = vmatprep.subr.mxu0 0.0
    %1018 = vmatpush2.msra.mxu0 0.0
    %1019 = vmatprep.subr.mxu0 0.0
    %1020 = vmatpush2.msra.mxu0 0.0
    %1021 = vmatprep.subr.mxu0 0.0
    %1022 = vmatpush2.msra.mxu0 0.0
    %1023 = vmatprep.subr.mxu0 0.0
    %1024 = vmatpush2.msra.mxu0 0.0
    %1025 = vmatprep.subr.mxu0 0.0
    %1026 = vmatpush2.msra.mxu0 0.0
    %1027 = vmatprep.subr.mxu0 0.0
    %1028 = vmatpush2.msra.mxu0 0.0
    %1029 = vmatprep.subr.mxu0 0.0
    %1030 = vmatpush2.msra.mxu0 0.0
    %1031 = vmatprep.subr.mxu0 0.0
    %1032 = vmatpush2.msra.mxu0 0.0
    %1033 = vmatprep.subr.mxu0 0.0
    %1034 = vmatpush2.msra.mxu0 0.0
    %1035 = vmatprep.subr.mxu0 0.0
    %1036 = vmatpush2.msra.mxu0 0.0
    %1037 = vmatprep.subr.mxu0 0.0
    %1038 = vmatpush2.msra.mxu0 0.0
    %1039 = vmatprep.subr.mxu0 0.0
    %1040 = vmatpush2.msra.mxu0 0.0
    %1041 = vmatprep.mubr.f32.mxu0 0.0
    %1042 = vmatmul.mubr.f32.gmra.mxu0 %v180
    %v1043 = vpop.f32.mrf.mxu0
    %v1044 = vadd.f32 0.0, %v1043
    %v1045 = vpop.f32.mrf.mxu0
    %v1046 = vadd.f32 0.0, %v1045
    %1047 = vmatprep.mubr.f32.mxu0 0.0
    %1048 = vmatmul.mubr.f32.gmra.mxu0 %v183
    %v1049 = vpop.f32.mrf.mxu0
    %v1050 = vadd.f32 0.0, %v1049
    %v1051 = vpop.f32.mrf.mxu0
    %v1052 = vadd.f32 0.0, %v1051
    %1053 = vdwg.mxu0
    %s1054 = scalar_lea.vmem %s6, 128
    %1055 = vst [vmem:[%s1054] sm:$0xff] %v967
    %1056 = vst [vmem:[%s1054 + $0x8] sm:$0xff] %v969
    %1057 = vst [vmem:[%s1054 + $0x10] sm:$0xff] %v1044
    %1058 = vst [vmem:[%s1054 + $0x18] sm:$0xff] %v1046
    %1059 = vst [vmem:[%s1054 + $0x20] sm:$0x1] %v973
    %1060 = vst [vmem:[%s1054 + $0x28] sm:$0x1] %v975
    %1061 = vst [vmem:[%s1054 + $0x30] sm:$0x1] %v1050
    %1062 = vst [vmem:[%s1054 + $0x38] sm:$0x1] %v1052
    %1063 = vmatprep.subr.mxu0 0.0
    %1064 = vmatpush1.msra.mxu0 %v95
    %1065 = vmatprep.subr.mxu0 0.0
    %1066 = vmatpush1.msra.mxu0 %v94
    %1067 = vmatprep.subr.mxu0 0.0
    %1068 = vmatpush1.msra.mxu0 %v93
    %1069 = vmatprep.subr.mxu0 0.0
    %1070 = vmatpush1.msra.mxu0 %v92
    %1071 = vmatprep.subr.mxu0 0.0
    %1072 = vmatpush1.msra.mxu0 %v91
    %1073 = vmatprep.subr.mxu0 0.0
    %1074 = vmatpush1.msra.mxu0 %v90
    %1075 = vmatprep.subr.mxu0 0.0
    %1076 = vmatpush1.msra.mxu0 %v89
    %1077 = vmatprep.subr.mxu0 0.0
    %1078 = vmatpush1.msra.mxu0 %v88
    %1079 = vmatprep.subr.mxu0 0.0
    %1080 = vmatpush1.msra.mxu0 %v87
    %1081 = vmatprep.subr.mxu0 0.0
    %1082 = vmatpush1.msra.mxu0 %v86
    %1083 = vmatprep.subr.mxu0 0.0
    %1084 = vmatpush1.msra.mxu0 %v85
    %1085 = vmatprep.subr.mxu0 0.0
    %1086 = vmatpush1.msra.mxu0 %v84
    %1087 = vmatprep.subr.mxu0 0.0
    %1088 = vmatpush1.msra.mxu0 %v83
    %1089 = vmatprep.subr.mxu0 0.0
    %1090 = vmatpush1.msra.mxu0 %v82
    %1091 = vmatprep.subr.mxu0 0.0
    %1092 = vmatpush1.msra.mxu0 %v81
    %1093 = vmatprep.subr.mxu0 0.0
    %1094 = vmatpush1.msra.mxu0 %v80
    %1095 = vmatprep.subr.mxu0 0.0
    %1096 = vmatpush2.msra.mxu0 %v111
    %1097 = vmatprep.subr.mxu0 0.0
    %1098 = vmatpush2.msra.mxu0 %v110
    %1099 = vmatprep.subr.mxu0 0.0
    %1100 = vmatpush2.msra.mxu0 %v109
    %1101 = vmatprep.subr.mxu0 0.0
    %1102 = vmatpush2.msra.mxu0 %v108
    %1103 = vmatprep.subr.mxu0 0.0
    %1104 = vmatpush2.msra.mxu0 %v107
    %1105 = vmatprep.subr.mxu0 0.0
    %1106 = vmatpush2.msra.mxu0 %v106
    %1107 = vmatprep.subr.mxu0 0.0
    %1108 = vmatpush2.msra.mxu0 %v105
    %1109 = vmatprep.subr.mxu0 0.0
    %1110 = vmatpush2.msra.mxu0 %v104
    %1111 = vmatprep.subr.mxu0 0.0
    %1112 = vmatpush2.msra.mxu0 %v103
    %1113 = vmatprep.subr.mxu0 0.0
    %1114 = vmatpush2.msra.mxu0 %v102
    %1115 = vmatprep.subr.mxu0 0.0
    %1116 = vmatpush2.msra.mxu0 %v101
    %1117 = vmatprep.subr.mxu0 0.0
    %1118 = vmatpush2.msra.mxu0 %v100
    %1119 = vmatprep.subr.mxu0 0.0
    %1120 = vmatpush2.msra.mxu0 %v99
    %1121 = vmatprep.subr.mxu0 0.0
    %1122 = vmatpush2.msra.mxu0 %v98
    %1123 = vmatprep.subr.mxu0 0.0
    %1124 = vmatpush2.msra.mxu0 %v97
    %1125 = vmatprep.subr.mxu0 0.0
    %1126 = vmatpush2.msra.mxu0 %v96
    %1127 = vmatprep.mubr.f32.mxu0 %v969
    %1128 = vmatmul.mubr.f32.gmra.mxu0 %v967
    %v1129 = vpop.f32.mrf.mxu0
    %v1130 = vadd.f32 0.0, %v1129
    %v1131 = vpop.f32.mrf.mxu0
    %1132 = vmatprep.mubr.f32.mxu0 %v975
    %1133 = vmatmul.mubr.f32.gmra.mxu0 %v973
    %v1134 = vpop.f32.mrf.mxu0
    %v1135 = vadd.f32 0.0, %v1134
    %v1136 = vpop.f32.mrf.mxu0
    %1137 = vdwg.mxu0
    %1138 = vmatprep.subr.mxu0 0.0
    %1139 = vmatpush1.msra.mxu0 %v127
    %1140 = vmatprep.subr.mxu0 0.0
    %1141 = vmatpush1.msra.mxu0 %v126
    %1142 = vmatprep.subr.mxu0 0.0
    %1143 = vmatpush1.msra.mxu0 %v125
    %1144 = vmatprep.subr.mxu0 0.0
    %1145 = vmatpush1.msra.mxu0 %v124
    %1146 = vmatprep.subr.mxu0 0.0
    %1147 = vmatpush1.msra.mxu0 %v123
    %1148 = vmatprep.subr.mxu0 0.0
    %1149 = vmatpush1.msra.mxu0 %v122
    %1150 = vmatprep.subr.mxu0 0.0
    %1151 = vmatpush1.msra.mxu0 %v121
    %1152 = vmatprep.subr.mxu0 0.0
    %1153 = vmatpush1.msra.mxu0 %v120
    %1154 = vmatprep.subr.mxu0 0.0
    %1155 = vmatpush1.msra.mxu0 %v119
    %1156 = vmatprep.subr.mxu0 0.0
    %1157 = vmatpush1.msra.mxu0 %v118
    %1158 = vmatprep.subr.mxu0 0.0
    %1159 = vmatpush1.msra.mxu0 %v117
    %1160 = vmatprep.subr.mxu0 0.0
    %1161 = vmatpush1.msra.mxu0 %v116
    %1162 = vmatprep.subr.mxu0 0.0
    %1163 = vmatpush1.msra.mxu0 %v115
    %1164 = vmatprep.subr.mxu0 0.0
    %1165 = vmatpush1.msra.mxu0 %v114
    %1166 = vmatprep.subr.mxu0 0.0
    %1167 = vmatpush1.msra.mxu0 %v113
    %1168 = vmatprep.subr.mxu0 0.0
    %1169 = vmatpush1.msra.mxu0 %v112
    %1170 = vmatprep.subr.mxu0 0.0
    %1171 = vmatpush2.msra.mxu0 %v143
    %1172 = vmatprep.subr.mxu0 0.0
    %1173 = vmatpush2.msra.mxu0 %v142
    %1174 = vmatprep.subr.mxu0 0.0
    %1175 = vmatpush2.msra.mxu0 %v141
    %1176 = vmatprep.subr.mxu0 0.0
    %1177 = vmatpush2.msra.mxu0 %v140
    %1178 = vmatprep.subr.mxu0 0.0
    %1179 = vmatpush2.msra.mxu0 %v139
    %1180 = vmatprep.subr.mxu0 0.0
    %1181 = vmatpush2.msra.mxu0 %v138
    %1182 = vmatprep.subr.mxu0 0.0
    %1183 = vmatpush2.msra.mxu0 %v137
    %1184 = vmatprep.subr.mxu0 0.0
    %1185 = vmatpush2.msra.mxu0 %v136
    %1186 = vmatprep.subr.mxu0 0.0
    %1187 = vmatpush2.msra.mxu0 %v135
    %1188 = vmatprep.subr.mxu0 0.0
    %1189 = vmatpush2.msra.mxu0 %v134
    %1190 = vmatprep.subr.mxu0 0.0
    %1191 = vmatpush2.msra.mxu0 %v133
    %1192 = vmatprep.subr.mxu0 0.0
    %1193 = vmatpush2.msra.mxu0 %v132
    %1194 = vmatprep.subr.mxu0 0.0
    %1195 = vmatpush2.msra.mxu0 %v131
    %1196 = vmatprep.subr.mxu0 0.0
    %1197 = vmatpush2.msra.mxu0 %v130
    %1198 = vmatprep.subr.mxu0 0.0
    %1199 = vmatpush2.msra.mxu0 %v129
    %1200 = vmatprep.subr.mxu0 0.0
    %1201 = vmatpush2.msra.mxu0 %v128
    %1202 = vmatprep.mubr.f32.mxu0 %v1046
    %1203 = vmatmul.mubr.f32.gmra.mxu0 %v1044
    %v1204 = vpop.f32.mrf.mxu0
    %v1205 = vadd.f32 %v1130, %v1204
    %v1206 = vpop.f32.mrf.mxu0
    %1207 = vmatprep.mubr.f32.mxu0 %v1052
    %1208 = vmatmul.mubr.f32.gmra.mxu0 %v1050
    %v1209 = vpop.f32.mrf.mxu0
    %v1210 = vadd.f32 %v1135, %v1209
    %v1211 = vpop.f32.mrf.mxu0
    %1212 = vdwg.mxu0
    %v1213 = vmul.f32 %v1205, %v144
    %v1214 = vmul.f32 %v1210, %v145
    %v1215 = vsel %vm499, %v1213, 0.0
    %v1216 = vsel %vm501, %v1214, 0.0
    %v1217 = vadd.f32 %v1215, %v1216
    %v1218 = vrot.slane %v1217, 4
    %v1219 = vadd.f32 %v1217, %v1218
    %v1220 = vrot.slane %v1219, 2
    %v1221 = vadd.f32 %v1219, %v1220
    %v1222 = vrot.slane %v1221, 1
    %v1223 = vadd.f32 %v1221, %v1222
    %s1224 = scalar_lea.vmem %s0, 768
    %v1225 = vld [vmem:[%s1224] sm:$0xff]
    %v1226 = vld [vmem:[%s1224 + $0x8] sm:$0xff]
    %v1227 = vld [vmem:[%s1224 + $0x10] sm:$0xff]
    %v1228 = vld [vmem:[%s1224 + $0x18] sm:$0xff]
    %v1229 = vld [vmem:[%s1224 + $0x20] sm:$0xff]
    %v1230 = vld [vmem:[%s1224 + $0x28] sm:$0xff]
    %v1231 = vld [vmem:[%s1224 + $0x30] sm:$0xff]
    %v1232 = vld [vmem:[%s1224 + $0x38] sm:$0xff]
    %v1233 = vld [vmem:[%s1224 + $0x40] sm:$0xff]
    %v1234 = vld [vmem:[%s1224 + $0x48] sm:$0xff]
    %v1235 = vld [vmem:[%s1224 + $0x50] sm:$0xff]
    %v1236 = vld [vmem:[%s1224 + $0x58] sm:$0xff]
    %v1237 = vld [vmem:[%s1224 + $0x60] sm:$0xff]
    %v1238 = vld [vmem:[%s1224 + $0x68] sm:$0xff]
    %v1239 = vld [vmem:[%s1224 + $0x70] sm:$0xff]
    %v1240 = vld [vmem:[%s1224 + $0x78] sm:$0xff]
    %v1241 = vld [vmem:[%s1224 + $0x80] sm:$0xff]
    %v1242 = vld [vmem:[%s1224 + $0x88] sm:$0xff]
    %v1243 = vld [vmem:[%s1224 + $0x90] sm:$0xff]
    %v1244 = vld [vmem:[%s1224 + $0x98] sm:$0xff]
    %v1245 = vld [vmem:[%s1224 + $0xa0] sm:$0xff]
    %v1246 = vld [vmem:[%s1224 + $0xa8] sm:$0xff]
    %v1247 = vld [vmem:[%s1224 + $0xb0] sm:$0xff]
    %v1248 = vld [vmem:[%s1224 + $0xb8] sm:$0xff]
    %v1249 = vld [vmem:[%s1224 + $0xc0] sm:$0xff]
    %v1250 = vld [vmem:[%s1224 + $0xc8] sm:$0xff]
    %v1251 = vld [vmem:[%s1224 + $0xd0] sm:$0xff]
    %v1252 = vld [vmem:[%s1224 + $0xd8] sm:$0xff]
    %v1253 = vld [vmem:[%s1224 + $0xe0] sm:$0xff]
    %v1254 = vld [vmem:[%s1224 + $0xe8] sm:$0xff]
    %v1255 = vld [vmem:[%s1224 + $0xf0] sm:$0xff]
    %v1256 = vld [vmem:[%s1224 + $0xf8] sm:$0xff]
    %1257 = vmatprep.subr.mxu0 0.0
    %1258 = vmatpush1.msra.mxu0 0.0
    %1259 = vmatprep.subr.mxu0 0.0
    %1260 = vmatpush1.msra.mxu0 0.0
    %1261 = vmatprep.subr.mxu0 0.0
    %1262 = vmatpush1.msra.mxu0 0.0
    %1263 = vmatprep.subr.mxu0 0.0
    %1264 = vmatpush1.msra.mxu0 0.0
    %1265 = vmatprep.subr.mxu0 0.0
    %1266 = vmatpush1.msra.mxu0 0.0
    %1267 = vmatprep.subr.mxu0 0.0
    %1268 = vmatpush1.msra.mxu0 0.0
    %1269 = vmatprep.subr.mxu0 0.0
    %1270 = vmatpush1.msra.mxu0 0.0
    %1271 = vmatprep.subr.mxu0 0.0
    %1272 = vmatpush1.msra.mxu0 0.0
    %1273 = vmatprep.subr.mxu0 %v1254
    %1274 = vmatpush1.msra.mxu0 %v1253
    %1275 = vmatprep.subr.mxu0 %v1250
    %1276 = vmatpush1.msra.mxu0 %v1249
    %1277 = vmatprep.subr.mxu0 %v1246
    %1278 = vmatpush1.msra.mxu0 %v1245
    %1279 = vmatprep.subr.mxu0 %v1242
    %1280 = vmatpush1.msra.mxu0 %v1241
    %1281 = vmatprep.subr.mxu0 %v1238
    %1282 = vmatpush1.msra.mxu0 %v1237
    %1283 = vmatprep.subr.mxu0 %v1234
    %1284 = vmatpush1.msra.mxu0 %v1233
    %1285 = vmatprep.subr.mxu0 %v1230
    %1286 = vmatpush1.msra.mxu0 %v1229
    %1287 = vmatprep.subr.mxu0 %v1226
    %1288 = vmatpush1.msra.mxu0 %v1225
    %1289 = vmatprep.subr.mxu0 0.0
    %1290 = vmatpush2.msra.mxu0 0.0
    %1291 = vmatprep.subr.mxu0 0.0
    %1292 = vmatpush2.msra.mxu0 0.0
    %1293 = vmatprep.subr.mxu0 0.0
    %1294 = vmatpush2.msra.mxu0 0.0
    %1295 = vmatprep.subr.mxu0 0.0
    %1296 = vmatpush2.msra.mxu0 0.0
    %1297 = vmatprep.subr.mxu0 0.0
    %1298 = vmatpush2.msra.mxu0 0.0
    %1299 = vmatprep.subr.mxu0 0.0
    %1300 = vmatpush2.msra.mxu0 0.0
    %1301 = vmatprep.subr.mxu0 0.0
    %1302 = vmatpush2.msra.mxu0 0.0
    %1303 = vmatprep.subr.mxu0 0.0
    %1304 = vmatpush2.msra.mxu0 0.0
    %1305 = vmatprep.subr.mxu0 0.0
    %1306 = vmatpush2.msra.mxu0 0.0
    %1307 = vmatprep.subr.mxu0 0.0
    %1308 = vmatpush2.msra.mxu0 0.0
    %1309 = vmatprep.subr.mxu0 0.0
    %1310 = vmatpush2.msra.mxu0 0.0
    %1311 = vmatprep.subr.mxu0 0.0
    %1312 = vmatpush2.msra.mxu0 0.0
    %1313 = vmatprep.subr.mxu0 0.0
    %1314 = vmatpush2.msra.mxu0 0.0
    %1315 = vmatprep.subr.mxu0 0.0
    %1316 = vmatpush2.msra.mxu0 0.0
    %1317 = vmatprep.subr.mxu0 0.0
    %1318 = vmatpush2.msra.mxu0 0.0
    %1319 = vmatprep.subr.mxu0 0.0
    %1320 = vmatpush2.msra.mxu0 0.0
    %1321 = vmatprep.mubr.f32.mxu0 0.0
    %1322 = vmatmul.mubr.f32.gmra.mxu0 %v180
    %v1323 = vpop.f32.mrf.mxu0
    %v1324 = vadd.f32 0.0, %v1323
    %v1325 = vpop.f32.mrf.mxu0
    %v1326 = vadd.f32 0.0, %v1325
    %1327 = vmatprep.mubr.f32.mxu0 0.0
    %1328 = vmatmul.mubr.f32.gmra.mxu0 %v183
    %v1329 = vpop.f32.mrf.mxu0
    %v1330 = vadd.f32 0.0, %v1329
    %v1331 = vpop.f32.mrf.mxu0
    %v1332 = vadd.f32 0.0, %v1331
    %1333 = vdwg.mxu0
    %1334 = vmatprep.subr.mxu0 0.0
    %1335 = vmatpush1.msra.mxu0 0.0
    %1336 = vmatprep.subr.mxu0 0.0
    %1337 = vmatpush1.msra.mxu0 0.0
    %1338 = vmatprep.subr.mxu0 0.0
    %1339 = vmatpush1.msra.mxu0 0.0
    %1340 = vmatprep.subr.mxu0 0.0
    %1341 = vmatpush1.msra.mxu0 0.0
    %1342 = vmatprep.subr.mxu0 0.0
    %1343 = vmatpush1.msra.mxu0 0.0
    %1344 = vmatprep.subr.mxu0 0.0
    %1345 = vmatpush1.msra.mxu0 0.0
    %1346 = vmatprep.subr.mxu0 0.0
    %1347 = vmatpush1.msra.mxu0 0.0
    %1348 = vmatprep.subr.mxu0 0.0
    %1349 = vmatpush1.msra.mxu0 0.0
    %1350 = vmatprep.subr.mxu0 %v1256
    %1351 = vmatpush1.msra.mxu0 %v1255
    %1352 = vmatprep.subr.mxu0 %v1252
    %1353 = vmatpush1.msra.mxu0 %v1251
    %1354 = vmatprep.subr.mxu0 %v1248
    %1355 = vmatpush1.msra.mxu0 %v1247
    %1356 = vmatprep.subr.mxu0 %v1244
    %1357 = vmatpush1.msra.mxu0 %v1243
    %1358 = vmatprep.subr.mxu0 %v1240
    %1359 = vmatpush1.msra.mxu0 %v1239
    %1360 = vmatprep.subr.mxu0 %v1236
    %1361 = vmatpush1.msra.mxu0 %v1235
    %1362 = vmatprep.subr.mxu0 %v1232
    %1363 = vmatpush1.msra.mxu0 %v1231
    %1364 = vmatprep.subr.mxu0 %v1228
    %1365 = vmatpush1.msra.mxu0 %v1227
    %1366 = vmatprep.subr.mxu0 0.0
    %1367 = vmatpush2.msra.mxu0 0.0
    %1368 = vmatprep.subr.mxu0 0.0
    %1369 = vmatpush2.msra.mxu0 0.0
    %1370 = vmatprep.subr.mxu0 0.0
    %1371 = vmatpush2.msra.mxu0 0.0
    %1372 = vmatprep.subr.mxu0 0.0
    %1373 = vmatpush2.msra.mxu0 0.0
    %1374 = vmatprep.subr.mxu0 0.0
    %1375 = vmatpush2.msra.mxu0 0.0
    %1376 = vmatprep.subr.mxu0 0.0
    %1377 = vmatpush2.msra.mxu0 0.0
    %1378 = vmatprep.subr.mxu0 0.0
    %1379 = vmatpush2.msra.mxu0 0.0
    %1380 = vmatprep.subr.mxu0 0.0
    %1381 = vmatpush2.msra.mxu0 0.0
    %1382 = vmatprep.subr.mxu0 0.0
    %1383 = vmatpush2.msra.mxu0 0.0
    %1384 = vmatprep.subr.mxu0 0.0
    %1385 = vmatpush2.msra.mxu0 0.0
    %1386 = vmatprep.subr.mxu0 0.0
    %1387 = vmatpush2.msra.mxu0 0.0
    %1388 = vmatprep.subr.mxu0 0.0
    %1389 = vmatpush2.msra.mxu0 0.0
    %1390 = vmatprep.subr.mxu0 0.0
    %1391 = vmatpush2.msra.mxu0 0.0
    %1392 = vmatprep.subr.mxu0 0.0
    %1393 = vmatpush2.msra.mxu0 0.0
    %1394 = vmatprep.subr.mxu0 0.0
    %1395 = vmatpush2.msra.mxu0 0.0
    %1396 = vmatprep.subr.mxu0 0.0
    %1397 = vmatpush2.msra.mxu0 0.0
    %1398 = vmatprep.mubr.f32.mxu0 0.0
    %1399 = vmatmul.mubr.f32.gmra.mxu0 %v180
    %v1400 = vpop.f32.mrf.mxu0
    %v1401 = vadd.f32 0.0, %v1400
    %v1402 = vpop.f32.mrf.mxu0
    %v1403 = vadd.f32 0.0, %v1402
    %1404 = vmatprep.mubr.f32.mxu0 0.0
    %1405 = vmatmul.mubr.f32.gmra.mxu0 %v183
    %v1406 = vpop.f32.mrf.mxu0
    %v1407 = vadd.f32 0.0, %v1406
    %v1408 = vpop.f32.mrf.mxu0
    %v1409 = vadd.f32 0.0, %v1408
    %1410 = vdwg.mxu0
    %s1411 = scalar_lea.vmem %s6, 192
    %1412 = vst [vmem:[%s1411] sm:$0xff] %v1324
    %1413 = vst [vmem:[%s1411 + $0x8] sm:$0xff] %v1326
    %1414 = vst [vmem:[%s1411 + $0x10] sm:$0xff] %v1401
    %1415 = vst [vmem:[%s1411 + $0x18] sm:$0xff] %v1403
    %1416 = vst [vmem:[%s1411 + $0x20] sm:$0x1] %v1330
    %1417 = vst [vmem:[%s1411 + $0x28] sm:$0x1] %v1332
    %1418 = vst [vmem:[%s1411 + $0x30] sm:$0x1] %v1407
    %1419 = vst [vmem:[%s1411 + $0x38] sm:$0x1] %v1409
    %1420 = vmatprep.subr.mxu0 0.0
    %1421 = vmatpush1.msra.mxu0 %v95
    %1422 = vmatprep.subr.mxu0 0.0
    %1423 = vmatpush1.msra.mxu0 %v94
    %1424 = vmatprep.subr.mxu0 0.0
    %1425 = vmatpush1.msra.mxu0 %v93
    %1426 = vmatprep.subr.mxu0 0.0
    %1427 = vmatpush1.msra.mxu0 %v92
    %1428 = vmatprep.subr.mxu0 0.0
    %1429 = vmatpush1.msra.mxu0 %v91
    %1430 = vmatprep.subr.mxu0 0.0
    %1431 = vmatpush1.msra.mxu0 %v90
    %1432 = vmatprep.subr.mxu0 0.0
    %1433 = vmatpush1.msra.mxu0 %v89
    %1434 = vmatprep.subr.mxu0 0.0
    %1435 = vmatpush1.msra.mxu0 %v88
    %1436 = vmatprep.subr.mxu0 0.0
    %1437 = vmatpush1.msra.mxu0 %v87
    %1438 = vmatprep.subr.mxu0 0.0
    %1439 = vmatpush1.msra.mxu0 %v86
    %1440 = vmatprep.subr.mxu0 0.0
    %1441 = vmatpush1.msra.mxu0 %v85
    %1442 = vmatprep.subr.mxu0 0.0
    %1443 = vmatpush1.msra.mxu0 %v84
    %1444 = vmatprep.subr.mxu0 0.0
    %1445 = vmatpush1.msra.mxu0 %v83
    %1446 = vmatprep.subr.mxu0 0.0
    %1447 = vmatpush1.msra.mxu0 %v82
    %1448 = vmatprep.subr.mxu0 0.0
    %1449 = vmatpush1.msra.mxu0 %v81
    %1450 = vmatprep.subr.mxu0 0.0
    %1451 = vmatpush1.msra.mxu0 %v80
    %1452 = vmatprep.subr.mxu0 0.0
    %1453 = vmatpush2.msra.mxu0 %v111
    %1454 = vmatprep.subr.mxu0 0.0
    %1455 = vmatpush2.msra.mxu0 %v110
    %1456 = vmatprep.subr.mxu0 0.0
    %1457 = vmatpush2.msra.mxu0 %v109
    %1458 = vmatprep.subr.mxu0 0.0
    %1459 = vmatpush2.msra.mxu0 %v108
    %1460 = vmatprep.subr.mxu0 0.0
    %1461 = vmatpush2.msra.mxu0 %v107
    %1462 = vmatprep.subr.mxu0 0.0
    %1463 = vmatpush2.msra.mxu0 %v106
    %1464 = vmatprep.subr.mxu0 0.0
    %1465 = vmatpush2.msra.mxu0 %v105
    %1466 = vmatprep.subr.mxu0 0.0
    %1467 = vmatpush2.msra.mxu0 %v104
    %1468 = vmatprep.subr.mxu0 0.0
    %1469 = vmatpush2.msra.mxu0 %v103
    %1470 = vmatprep.subr.mxu0 0.0
    %1471 = vmatpush2.msra.mxu0 %v102
    %1472 = vmatprep.subr.mxu0 0.0
    %1473 = vmatpush2.msra.mxu0 %v101
    %1474 = vmatprep.subr.mxu0 0.0
    %1475 = vmatpush2.msra.mxu0 %v100
    %1476 = vmatprep.subr.mxu0 0.0
    %1477 = vmatpush2.msra.mxu0 %v99
    %1478 = vmatprep.subr.mxu0 0.0
    %1479 = vmatpush2.msra.mxu0 %v98
    %1480 = vmatprep.subr.mxu0 0.0
    %1481 = vmatpush2.msra.mxu0 %v97
    %1482 = vmatprep.subr.mxu0 0.0
    %1483 = vmatpush2.msra.mxu0 %v96
    %1484 = vmatprep.mubr.f32.mxu0 %v1326
    %1485 = vmatmul.mubr.f32.gmra.mxu0 %v1324
    %v1486 = vpop.f32.mrf.mxu0
    %v1487 = vadd.f32 0.0, %v1486
    %v1488 = vpop.f32.mrf.mxu0
    %1489 = vmatprep.mubr.f32.mxu0 %v1332
    %1490 = vmatmul.mubr.f32.gmra.mxu0 %v1330
    %v1491 = vpop.f32.mrf.mxu0
    %v1492 = vadd.f32 0.0, %v1491
    %v1493 = vpop.f32.mrf.mxu0
    %1494 = vdwg.mxu0
    %1495 = vmatprep.subr.mxu0 0.0
    %1496 = vmatpush1.msra.mxu0 %v127
    %1497 = vmatprep.subr.mxu0 0.0
    %1498 = vmatpush1.msra.mxu0 %v126
    %1499 = vmatprep.subr.mxu0 0.0
    %1500 = vmatpush1.msra.mxu0 %v125
    %1501 = vmatprep.subr.mxu0 0.0
    %1502 = vmatpush1.msra.mxu0 %v124
    %1503 = vmatprep.subr.mxu0 0.0
    %1504 = vmatpush1.msra.mxu0 %v123
    %1505 = vmatprep.subr.mxu0 0.0
    %1506 = vmatpush1.msra.mxu0 %v122
    %1507 = vmatprep.subr.mxu0 0.0
    %1508 = vmatpush1.msra.mxu0 %v121
    %1509 = vmatprep.subr.mxu0 0.0
    %1510 = vmatpush1.msra.mxu0 %v120
    %1511 = vmatprep.subr.mxu0 0.0
    %1512 = vmatpush1.msra.mxu0 %v119
    %1513 = vmatprep.subr.mxu0 0.0
    %1514 = vmatpush1.msra.mxu0 %v118
    %1515 = vmatprep.subr.mxu0 0.0
    %1516 = vmatpush1.msra.mxu0 %v117
    %1517 = vmatprep.subr.mxu0 0.0
    %1518 = vmatpush1.msra.mxu0 %v116
    %1519 = vmatprep.subr.mxu0 0.0
    %1520 = vmatpush1.msra.mxu0 %v115
    %1521 = vmatprep.subr.mxu0 0.0
    %1522 = vmatpush1.msra.mxu0 %v114
    %1523 = vmatprep.subr.mxu0 0.0
    %1524 = vmatpush1.msra.mxu0 %v113
    %1525 = vmatprep.subr.mxu0 0.0
    %1526 = vmatpush1.msra.mxu0 %v112
    %1527 = vmatprep.subr.mxu0 0.0
    %1528 = vmatpush2.msra.mxu0 %v143
    %1529 = vmatprep.subr.mxu0 0.0
    %1530 = vmatpush2.msra.mxu0 %v142
    %1531 = vmatprep.subr.mxu0 0.0
    %1532 = vmatpush2.msra.mxu0 %v141
    %1533 = vmatprep.subr.mxu0 0.0
    %1534 = vmatpush2.msra.mxu0 %v140
    %1535 = vmatprep.subr.mxu0 0.0
    %1536 = vmatpush2.msra.mxu0 %v139
    %1537 = vmatprep.subr.mxu0 0.0
    %1538 = vmatpush2.msra.mxu0 %v138
    %1539 = vmatprep.subr.mxu0 0.0
    %1540 = vmatpush2.msra.mxu0 %v137
    %1541 = vmatprep.subr.mxu0 0.0
    %1542 = vmatpush2.msra.mxu0 %v136
    %1543 = vmatprep.subr.mxu0 0.0
    %1544 = vmatpush2.msra.mxu0 %v135
    %1545 = vmatprep.subr.mxu0 0.0
    %1546 = vmatpush2.msra.mxu0 %v134
    %1547 = vmatprep.subr.mxu0 0.0
    %1548 = vmatpush2.msra.mxu0 %v133
    %1549 = vmatprep.subr.mxu0 0.0
    %1550 = vmatpush2.msra.mxu0 %v132
    %1551 = vmatprep.subr.mxu0 0.0
    %1552 = vmatpush2.msra.mxu0 %v131
    %1553 = vmatprep.subr.mxu0 0.0
    %1554 = vmatpush2.msra.mxu0 %v130
    %1555 = vmatprep.subr.mxu0 0.0
    %1556 = vmatpush2.msra.mxu0 %v129
    %1557 = vmatprep.subr.mxu0 0.0
    %1558 = vmatpush2.msra.mxu0 %v128
    %1559 = vmatprep.mubr.f32.mxu0 %v1403
    %1560 = vmatmul.mubr.f32.gmra.mxu0 %v1401
    %v1561 = vpop.f32.mrf.mxu0
    %v1562 = vadd.f32 %v1487, %v1561
    %v1563 = vpop.f32.mrf.mxu0
    %1564 = vmatprep.mubr.f32.mxu0 %v1409
    %1565 = vmatmul.mubr.f32.gmra.mxu0 %v1407
    %v1566 = vpop.f32.mrf.mxu0
    %v1567 = vadd.f32 %v1492, %v1566
    %v1568 = vpop.f32.mrf.mxu0
    %1569 = vdwg.mxu0
    %v1570 = vmul.f32 %v1562, %v144
    %v1571 = vmul.f32 %v1567, %v145
    %v1572 = vsel %vm499, %v1570, 0.0
    %v1573 = vsel %vm501, %v1571, 0.0
    %v1574 = vadd.f32 %v1572, %v1573
    %v1575 = vrot.slane %v1574, 4
    %v1576 = vadd.f32 %v1574, %v1575
    %v1577 = vrot.slane %v1576, 2
    %v1578 = vadd.f32 %v1576, %v1577
    %v1579 = vrot.slane %v1578, 1
    %v1580 = vadd.f32 %v1578, %v1579
    %vm1581 = vcmask 1040384
    %v1582 = vsel %vm1581, %v509, %v866
    %vm1583 = vcmask 1041408
    %v1584 = vsel %vm1583, %v1582, %v1223
    %vm1585 = vcmask 1042432
    %v1586 = vsel %vm1585, %v1584, %v1580
    %v1587 = vld [vmem:[#allocation6] sm:$0xff]
    %v1588 = vld [vmem:[#allocation6 + $0x8] sm:$0xff]
    %v1589 = vld [vmem:[#allocation6 + $0x10] sm:$0xff]
    %v1590 = vld [vmem:[#allocation6 + $0x18] sm:$0xff]
    %v1591 = vld [vmem:[#allocation6 + $0x20] sm:$0xff]
    %v1592 = vld [vmem:[#allocation6 + $0x28] sm:$0xff]
    %v1593 = vld [vmem:[#allocation6 + $0x30] sm:$0xff]
    %v1594 = vld [vmem:[#allocation6 + $0x38] sm:$0xff]
    %v1595 = vld [vmem:[#allocation6 + $0x40] sm:$0xff]
    %v1596 = vld [vmem:[#allocation6 + $0x48] sm:$0xff]
    %v1597 = vld [vmem:[#allocation6 + $0x50] sm:$0xff]
    %v1598 = vld [vmem:[#allocation6 + $0x58] sm:$0xff]
    %v1599 = vld [vmem:[#allocation6 + $0x60] sm:$0xff]
    %v1600 = vld [vmem:[#allocation6 + $0x68] sm:$0xff]
    %v1601 = vld [vmem:[#allocation6 + $0x70] sm:$0xff]
    %v1602 = vld [vmem:[#allocation6 + $0x78] sm:$0xff]
    %v1603 = vld [vmem:[#allocation6 + $0x80] sm:$0xff]
    %v1604 = vld [vmem:[#allocation6 + $0x88] sm:$0xff]
    %v1605 = vld [vmem:[#allocation6 + $0x90] sm:$0xff]
    %v1606 = vld [vmem:[#allocation6 + $0x98] sm:$0xff]
    %v1607 = vld [vmem:[#allocation6 + $0xa0] sm:$0xff]
    %v1608 = vld [vmem:[#allocation6 + $0xa8] sm:$0xff]
    %v1609 = vld [vmem:[#allocation6 + $0xb0] sm:$0xff]
    %v1610 = vld [vmem:[#allocation6 + $0xb8] sm:$0xff]
    %v1611 = vld [vmem:[#allocation6 + $0xc0] sm:$0xff]
    %v1612 = vld [vmem:[#allocation6 + $0xc8] sm:$0xff]
    %v1613 = vld [vmem:[#allocation6 + $0xd0] sm:$0xff]
    %v1614 = vld [vmem:[#allocation6 + $0xd8] sm:$0xff]
    %v1615 = vld [vmem:[#allocation6 + $0xe0] sm:$0xff]
    %v1616 = vld [vmem:[#allocation6 + $0xe8] sm:$0xff]
    %v1617 = vld [vmem:[#allocation6 + $0xf0] sm:$0xff]
    %v1618 = vld [vmem:[#allocation6 + $0xf8] sm:$0xff]
    %v1619 = vld [vmem:[#allocation6 + $0x100] sm:$0xff]
    %v1620 = vld [vmem:[#allocation6 + $0x108] sm:$0xff]
    %v1621 = vld [vmem:[#allocation6 + $0x110] sm:$0xff]
    %v1622 = vld [vmem:[#allocation6 + $0x118] sm:$0xff]
    %v1623 = vld [vmem:[#allocation6 + $0x120] sm:$0xff]
    %v1624 = vld [vmem:[#allocation6 + $0x128] sm:$0xff]
    %v1625 = vld [vmem:[#allocation6 + $0x130] sm:$0xff]
    %v1626 = vld [vmem:[#allocation6 + $0x138] sm:$0xff]
    %v1627 = vld [vmem:[#allocation6 + $0x140] sm:$0xff]
    %v1628 = vld [vmem:[#allocation6 + $0x148] sm:$0xff]
    %v1629 = vld [vmem:[#allocation6 + $0x150] sm:$0xff]
    %v1630 = vld [vmem:[#allocation6 + $0x158] sm:$0xff]
    %v1631 = vld [vmem:[#allocation6 + $0x160] sm:$0xff]
    %v1632 = vld [vmem:[#allocation6 + $0x168] sm:$0xff]
    %v1633 = vld [vmem:[#allocation6 + $0x170] sm:$0xff]
    %v1634 = vld [vmem:[#allocation6 + $0x178] sm:$0xff]
    %v1635 = vld [vmem:[#allocation6 + $0x180] sm:$0xff]
    %v1636 = vld [vmem:[#allocation6 + $0x188] sm:$0xff]
    %v1637 = vld [vmem:[#allocation6 + $0x190] sm:$0xff]
    %v1638 = vld [vmem:[#allocation6 + $0x198] sm:$0xff]
    %v1639 = vld [vmem:[#allocation6 + $0x1a0] sm:$0xff]
    %v1640 = vld [vmem:[#allocation6 + $0x1a8] sm:$0xff]
    %v1641 = vld [vmem:[#allocation6 + $0x1b0] sm:$0xff]
    %v1642 = vld [vmem:[#allocation6 + $0x1b8] sm:$0xff]
    %v1643 = vld [vmem:[#allocation6 + $0x1c0] sm:$0xff]
    %v1644 = vld [vmem:[#allocation6 + $0x1c8] sm:$0xff]
    %v1645 = vld [vmem:[#allocation6 + $0x1d0] sm:$0xff]
    %v1646 = vld [vmem:[#allocation6 + $0x1d8] sm:$0xff]
    %v1647 = vld [vmem:[#allocation6 + $0x1e0] sm:$0xff]
    %v1648 = vld [vmem:[#allocation6 + $0x1e8] sm:$0xff]
    %v1649 = vld [vmem:[#allocation6 + $0x1f0] sm:$0xff]
    %v1650 = vld [vmem:[#allocation6 + $0x1f8] sm:$0xff]
    %v1651 = vld [vmem:[#allocation6 + $0x200] sm:$0xff]
    %v1652 = vld [vmem:[#allocation6 + $0x208] sm:$0xff]
    %v1653 = vld [vmem:[#allocation6 + $0x210] sm:$0xff]
    %v1654 = vld [vmem:[#allocation6 + $0x218] sm:$0xff]
    %v1655 = vld [vmem:[#allocation6 + $0x220] sm:$0xff]
    %v1656 = vld [vmem:[#allocation6 + $0x228] sm:$0xff]
    %v1657 = vld [vmem:[#allocation6 + $0x230] sm:$0xff]
    %v1658 = vld [vmem:[#allocation6 + $0x238] sm:$0xff]
    %v1659 = vld [vmem:[#allocation6 + $0x240] sm:$0xff]
    %v1660 = vld [vmem:[#allocation6 + $0x248] sm:$0xff]
    %v1661 = vld [vmem:[#allocation6 + $0x250] sm:$0xff]
    %v1662 = vld [vmem:[#allocation6 + $0x258] sm:$0xff]
    %v1663 = vld [vmem:[#allocation6 + $0x260] sm:$0xff]
    %v1664 = vld [vmem:[#allocation6 + $0x268] sm:$0xff]
    %v1665 = vld [vmem:[#allocation6 + $0x270] sm:$0xff]
    %v1666 = vld [vmem:[#allocation6 + $0x278] sm:$0xff]
    %v1667 = vld [vmem:[#allocation6 + $0x280] sm:$0xff]
    %v1668 = vld [vmem:[#allocation6 + $0x288] sm:$0xff]
    %v1669 = vld [vmem:[#allocation6 + $0x290] sm:$0xff]
    %v1670 = vld [vmem:[#allocation6 + $0x298] sm:$0xff]
    %v1671 = vld [vmem:[#allocation6 + $0x2a0] sm:$0xff]
    %v1672 = vld [vmem:[#allocation6 + $0x2a8] sm:$0xff]
    %v1673 = vld [vmem:[#allocation6 + $0x2b0] sm:$0xff]
    %v1674 = vld [vmem:[#allocation6 + $0x2b8] sm:$0xff]
    %v1675 = vld [vmem:[#allocation6 + $0x2c0] sm:$0xff]
    %v1676 = vld [vmem:[#allocation6 + $0x2c8] sm:$0xff]
    %v1677 = vld [vmem:[#allocation6 + $0x2d0] sm:$0xff]
    %v1678 = vld [vmem:[#allocation6 + $0x2d8] sm:$0xff]
    %v1679 = vld [vmem:[#allocation6 + $0x2e0] sm:$0xff]
    %v1680 = vld [vmem:[#allocation6 + $0x2e8] sm:$0xff]
    %v1681 = vld [vmem:[#allocation6 + $0x2f0] sm:$0xff]
    %v1682 = vld [vmem:[#allocation6 + $0x2f8] sm:$0xff]
    %v1683 = vld [vmem:[#allocation6 + $0x300] sm:$0xff]
    %v1684 = vld [vmem:[#allocation6 + $0x308] sm:$0xff]
    %v1685 = vld [vmem:[#allocation6 + $0x310] sm:$0xff]
    %v1686 = vld [vmem:[#allocation6 + $0x318] sm:$0xff]
    %v1687 = vld [vmem:[#allocation6 + $0x320] sm:$0xff]
    %v1688 = vld [vmem:[#allocation6 + $0x328] sm:$0xff]
    %v1689 = vld [vmem:[#allocation6 + $0x330] sm:$0xff]
    %v1690 = vld [vmem:[#allocation6 + $0x338] sm:$0xff]
    %v1691 = vld [vmem:[#allocation6 + $0x340] sm:$0xff]
    %v1692 = vld [vmem:[#allocation6 + $0x348] sm:$0xff]
    %v1693 = vld [vmem:[#allocation6 + $0x350] sm:$0xff]
    %v1694 = vld [vmem:[#allocation6 + $0x358] sm:$0xff]
    %v1695 = vld [vmem:[#allocation6 + $0x360] sm:$0xff]
    %v1696 = vld [vmem:[#allocation6 + $0x368] sm:$0xff]
    %v1697 = vld [vmem:[#allocation6 + $0x370] sm:$0xff]
    %v1698 = vld [vmem:[#allocation6 + $0x378] sm:$0xff]
    %v1699 = vld [vmem:[#allocation6 + $0x380] sm:$0xff]
    %v1700 = vld [vmem:[#allocation6 + $0x388] sm:$0xff]
    %v1701 = vld [vmem:[#allocation6 + $0x390] sm:$0xff]
    %v1702 = vld [vmem:[#allocation6 + $0x398] sm:$0xff]
    %v1703 = vld [vmem:[#allocation6 + $0x3a0] sm:$0xff]
    %v1704 = vld [vmem:[#allocation6 + $0x3a8] sm:$0xff]
    %v1705 = vld [vmem:[#allocation6 + $0x3b0] sm:$0xff]
    %v1706 = vld [vmem:[#allocation6 + $0x3b8] sm:$0xff]
    %v1707 = vld [vmem:[#allocation6 + $0x3c0] sm:$0xff]
    %v1708 = vld [vmem:[#allocation6 + $0x3c8] sm:$0xff]
    %v1709 = vld [vmem:[#allocation6 + $0x3d0] sm:$0xff]
    %v1710 = vld [vmem:[#allocation6 + $0x3d8] sm:$0xff]
    %v1711 = vld [vmem:[#allocation6 + $0x3e0] sm:$0xff]
    %v1712 = vld [vmem:[#allocation6 + $0x3e8] sm:$0xff]
    %v1713 = vld [vmem:[#allocation6 + $0x3f0] sm:$0xff]
    %v1714 = vld [vmem:[#allocation6 + $0x3f8] sm:$0xff]
    %v1715 = vld [vmem:[#allocation6 + $0x400] sm:$0xff]
    %v1716 = vld [vmem:[#allocation6 + $0x408] sm:$0xff]
    %v1717 = vld [vmem:[#allocation6 + $0x410] sm:$0xff]
    %v1718 = vld [vmem:[#allocation6 + $0x418] sm:$0xff]
    %v1719 = vld [vmem:[#allocation6 + $0x420] sm:$0xff]
    %v1720 = vld [vmem:[#allocation6 + $0x428] sm:$0xff]
    %v1721 = vld [vmem:[#allocation6 + $0x430] sm:$0xff]
    %v1722 = vld [vmem:[#allocation6 + $0x438] sm:$0xff]
    %v1723 = vld [vmem:[#allocation6 + $0x440] sm:$0xff]
    %v1724 = vld [vmem:[#allocation6 + $0x448] sm:$0xff]
    %v1725 = vld [vmem:[#allocation6 + $0x450] sm:$0xff]
    %v1726 = vld [vmem:[#allocation6 + $0x458] sm:$0xff]
    %v1727 = vld [vmem:[#allocation6 + $0x460] sm:$0xff]
    %v1728 = vld [vmem:[#allocation6 + $0x468] sm:$0xff]
    %v1729 = vld [vmem:[#allocation6 + $0x470] sm:$0xff]
    %v1730 = vld [vmem:[#allocation6 + $0x478] sm:$0xff]
    %v1731 = vld [vmem:[#allocation6 + $0x480] sm:$0xff]
    %v1732 = vld [vmem:[#allocation6 + $0x488] sm:$0xff]
    %v1733 = vld [vmem:[#allocation6 + $0x490] sm:$0xff]
    %v1734 = vld [vmem:[#allocation6 + $0x498] sm:$0xff]
    %v1735 = vld [vmem:[#allocation6 + $0x4a0] sm:$0xff]
    %v1736 = vld [vmem:[#allocation6 + $0x4a8] sm:$0xff]
    %v1737 = vld [vmem:[#allocation6 + $0x4b0] sm:$0xff]
    %v1738 = vld [vmem:[#allocation6 + $0x4b8] sm:$0xff]
    %v1739 = vld [vmem:[#allocation6 + $0x4c0] sm:$0xff]
    %v1740 = vld [vmem:[#allocation6 + $0x4c8] sm:$0xff]
    %v1741 = vld [vmem:[#allocation6 + $0x4d0] sm:$0xff]
    %v1742 = vld [vmem:[#allocation6 + $0x4d8] sm:$0xff]
    %v1743 = vld [vmem:[#allocation6 + $0x4e0] sm:$0xff]
    %v1744 = vld [vmem:[#allocation6 + $0x4e8] sm:$0xff]
    %v1745 = vld [vmem:[#allocation6 + $0x4f0] sm:$0xff]
    %v1746 = vld [vmem:[#allocation6 + $0x4f8] sm:$0xff]
    %v1747 = vld [vmem:[#allocation6 + $0x500] sm:$0xff]
    %v1748 = vld [vmem:[#allocation6 + $0x508] sm:$0xff]
    %v1749 = vld [vmem:[#allocation6 + $0x510] sm:$0xff]
    %v1750 = vld [vmem:[#allocation6 + $0x518] sm:$0xff]
    %v1751 = vld [vmem:[#allocation6 + $0x520] sm:$0xff]
    %v1752 = vld [vmem:[#allocation6 + $0x528] sm:$0xff]
    %v1753 = vld [vmem:[#allocation6 + $0x530] sm:$0xff]
    %v1754 = vld [vmem:[#allocation6 + $0x538] sm:$0xff]
    %v1755 = vld [vmem:[#allocation6 + $0x540] sm:$0xff]
    %v1756 = vld [vmem:[#allocation6 + $0x548] sm:$0xff]
    %v1757 = vld [vmem:[#allocation6 + $0x550] sm:$0xff]
    %v1758 = vld [vmem:[#allocation6 + $0x558] sm:$0xff]
    %v1759 = vld [vmem:[#allocation6 + $0x560] sm:$0xff]
    %v1760 = vld [vmem:[#allocation6 + $0x568] sm:$0xff]
    %v1761 = vld [vmem:[#allocation6 + $0x570] sm:$0xff]
    %v1762 = vld [vmem:[#allocation6 + $0x578] sm:$0xff]
    %v1763 = vld [vmem:[#allocation6 + $0x580] sm:$0xff]
    %v1764 = vld [vmem:[#allocation6 + $0x588] sm:$0xff]
    %v1765 = vld [vmem:[#allocation6 + $0x590] sm:$0xff]
    %v1766 = vld [vmem:[#allocation6 + $0x598] sm:$0xff]
    %v1767 = vld [vmem:[#allocation6 + $0x5a0] sm:$0xff]
    %v1768 = vld [vmem:[#allocation6 + $0x5a8] sm:$0xff]
    %v1769 = vld [vmem:[#allocation6 + $0x5b0] sm:$0xff]
    %v1770 = vld [vmem:[#allocation6 + $0x5b8] sm:$0xff]
    %v1771 = vld [vmem:[#allocation6 + $0x5c0] sm:$0xff]
    %v1772 = vld [vmem:[#allocation6 + $0x5c8] sm:$0xff]
    %v1773 = vld [vmem:[#allocation6 + $0x5d0] sm:$0xff]
    %v1774 = vld [vmem:[#allocation6 + $0x5d8] sm:$0xff]
    %v1775 = vld [vmem:[#allocation6 + $0x5e0] sm:$0xff]
    %v1776 = vld [vmem:[#allocation6 + $0x5e8] sm:$0xff]
    %v1777 = vld [vmem:[#allocation6 + $0x5f0] sm:$0xff]
    %v1778 = vld [vmem:[#allocation6 + $0x5f8] sm:$0xff]
    %v1779 = vld [vmem:[#allocation6 + $0x600] sm:$0xff]
    %v1780 = vld [vmem:[#allocation6 + $0x608] sm:$0xff]
    %v1781 = vld [vmem:[#allocation6 + $0x610] sm:$0xff]
    %v1782 = vld [vmem:[#allocation6 + $0x618] sm:$0xff]
    %v1783 = vld [vmem:[#allocation6 + $0x620] sm:$0xff]
    %v1784 = vld [vmem:[#allocation6 + $0x628] sm:$0xff]
    %v1785 = vld [vmem:[#allocation6 + $0x630] sm:$0xff]
    %v1786 = vld [vmem:[#allocation6 + $0x638] sm:$0xff]
    %v1787 = vld [vmem:[#allocation6 + $0x640] sm:$0xff]
    %v1788 = vld [vmem:[#allocation6 + $0x648] sm:$0xff]
    %v1789 = vld [vmem:[#allocation6 + $0x650] sm:$0xff]
    %v1790 = vld [vmem:[#allocation6 + $0x658] sm:$0xff]
    %v1791 = vld [vmem:[#allocation6 + $0x660] sm:$0xff]
    %v1792 = vld [vmem:[#allocation6 + $0x668] sm:$0xff]
    %v1793 = vld [vmem:[#allocation6 + $0x670] sm:$0xff]
    %v1794 = vld [vmem:[#allocation6 + $0x678] sm:$0xff]
    %v1795 = vld [vmem:[#allocation6 + $0x680] sm:$0xff]
    %v1796 = vld [vmem:[#allocation6 + $0x688] sm:$0xff]
    %v1797 = vld [vmem:[#allocation6 + $0x690] sm:$0xff]
    %v1798 = vld [vmem:[#allocation6 + $0x698] sm:$0xff]
    %v1799 = vld [vmem:[#allocation6 + $0x6a0] sm:$0xff]
    %v1800 = vld [vmem:[#allocation6 + $0x6a8] sm:$0xff]
    %v1801 = vld [vmem:[#allocation6 + $0x6b0] sm:$0xff]
    %v1802 = vld [vmem:[#allocation6 + $0x6b8] sm:$0xff]
    %v1803 = vld [vmem:[#allocation6 + $0x6c0] sm:$0xff]
    %v1804 = vld [vmem:[#allocation6 + $0x6c8] sm:$0xff]
    %v1805 = vld [vmem:[#allocation6 + $0x6d0] sm:$0xff]
    %v1806 = vld [vmem:[#allocation6 + $0x6d8] sm:$0xff]
    %v1807 = vld [vmem:[#allocation6 + $0x6e0] sm:$0xff]
    %v1808 = vld [vmem:[#allocation6 + $0x6e8] sm:$0xff]
    %v1809 = vld [vmem:[#allocation6 + $0x6f0] sm:$0xff]
    %v1810 = vld [vmem:[#allocation6 + $0x6f8] sm:$0xff]
    %v1811 = vld [vmem:[#allocation6 + $0x700] sm:$0xff]
    %v1812 = vld [vmem:[#allocation6 + $0x708] sm:$0xff]
    %v1813 = vld [vmem:[#allocation6 + $0x710] sm:$0xff]
    %v1814 = vld [vmem:[#allocation6 + $0x718] sm:$0xff]
    %v1815 = vld [vmem:[#allocation6 + $0x720] sm:$0xff]
    %v1816 = vld [vmem:[#allocation6 + $0x728] sm:$0xff]
    %v1817 = vld [vmem:[#allocation6 + $0x730] sm:$0xff]
    %v1818 = vld [vmem:[#allocation6 + $0x738] sm:$0xff]
    %v1819 = vld [vmem:[#allocation6 + $0x740] sm:$0xff]
    %v1820 = vld [vmem:[#allocation6 + $0x748] sm:$0xff]
    %v1821 = vld [vmem:[#allocation6 + $0x750] sm:$0xff]
    %v1822 = vld [vmem:[#allocation6 + $0x758] sm:$0xff]
    %v1823 = vld [vmem:[#allocation6 + $0x760] sm:$0xff]
    %v1824 = vld [vmem:[#allocation6 + $0x768] sm:$0xff]
    %v1825 = vld [vmem:[#allocation6 + $0x770] sm:$0xff]
    %v1826 = vld [vmem:[#allocation6 + $0x778] sm:$0xff]
    %v1827 = vld [vmem:[#allocation6 + $0x780] sm:$0xff]
    %v1828 = vld [vmem:[#allocation6 + $0x788] sm:$0xff]
    %v1829 = vld [vmem:[#allocation6 + $0x790] sm:$0xff]
    %v1830 = vld [vmem:[#allocation6 + $0x798] sm:$0xff]
    %v1831 = vld [vmem:[#allocation6 + $0x7a0] sm:$0xff]
    %v1832 = vld [vmem:[#allocation6 + $0x7a8] sm:$0xff]
    %v1833 = vld [vmem:[#allocation6 + $0x7b0] sm:$0xff]
    %v1834 = vld [vmem:[#allocation6 + $0x7b8] sm:$0xff]
    %v1835 = vld [vmem:[#allocation6 + $0x7c0] sm:$0xff]
    %v1836 = vld [vmem:[#allocation6 + $0x7c8] sm:$0xff]
    %v1837 = vld [vmem:[#allocation6 + $0x7d0] sm:$0xff]
    %v1838 = vld [vmem:[#allocation6 + $0x7d8] sm:$0xff]
    %v1839 = vld [vmem:[#allocation6 + $0x7e0] sm:$0xff]
    %v1840 = vld [vmem:[#allocation6 + $0x7e8] sm:$0xff]
    %v1841 = vld [vmem:[#allocation6 + $0x7f0] sm:$0xff]
    %v1842 = vld [vmem:[#allocation6 + $0x7f8] sm:$0xff]
    %v1843 = vld [vmem:[#allocation6 + $0x800] sm:$0xff]
    %v1844 = vld [vmem:[#allocation6 + $0x808] sm:$0xff]
    %v1845 = vld [vmem:[#allocation6 + $0x810] sm:$0xff]
    %v1846 = vld [vmem:[#allocation6 + $0x818] sm:$0xff]
    %v1847 = vld [vmem:[#allocation6 + $0x820] sm:$0xff]
    %v1848 = vld [vmem:[#allocation6 + $0x828] sm:$0xff]
    %v1849 = vld [vmem:[#allocation6 + $0x830] sm:$0xff]
    %v1850 = vld [vmem:[#allocation6 + $0x838] sm:$0xff]
    %v1851 = vld [vmem:[#allocation6 + $0x840] sm:$0xff]
    %v1852 = vld [vmem:[#allocation6 + $0x848] sm:$0xff]
    %v1853 = vld [vmem:[#allocation6 + $0x850] sm:$0xff]
    %v1854 = vld [vmem:[#allocation6 + $0x858] sm:$0xff]
    %v1855 = vld [vmem:[#allocation6 + $0x860] sm:$0xff]
    %v1856 = vld [vmem:[#allocation6 + $0x868] sm:$0xff]
    %v1857 = vld [vmem:[#allocation6 + $0x870] sm:$0xff]
    %v1858 = vld [vmem:[#allocation6 + $0x878] sm:$0xff]
    %v1859 = vld [vmem:[#allocation6 + $0x880] sm:$0xff]
    %v1860 = vld [vmem:[#allocation6 + $0x888] sm:$0xff]
    %v1861 = vld [vmem:[#allocation6 + $0x890] sm:$0xff]
    %v1862 = vld [vmem:[#allocation6 + $0x898] sm:$0xff]
    %v1863 = vld [vmem:[#allocation6 + $0x8a0] sm:$0xff]
    %v1864 = vld [vmem:[#allocation6 + $0x8a8] sm:$0xff]
    %v1865 = vld [vmem:[#allocation6 + $0x8b0] sm:$0xff]
    %v1866 = vld [vmem:[#allocation6 + $0x8b8] sm:$0xff]
    %v1867 = vld [vmem:[#allocation6 + $0x8c0] sm:$0xff]
    %v1868 = vld [vmem:[#allocation6 + $0x8c8] sm:$0xff]
    %v1869 = vld [vmem:[#allocation6 + $0x8d0] sm:$0xff]
    %v1870 = vld [vmem:[#allocation6 + $0x8d8] sm:$0xff]
    %v1871 = vld [vmem:[#allocation6 + $0x8e0] sm:$0xff]
    %v1872 = vld [vmem:[#allocation6 + $0x8e8] sm:$0xff]
    %v1873 = vld [vmem:[#allocation6 + $0x8f0] sm:$0xff]
    %v1874 = vld [vmem:[#allocation6 + $0x8f8] sm:$0xff]
    %v1875 = vld [vmem:[#allocation6 + $0x900] sm:$0xff]
    %v1876 = vld [vmem:[#allocation6 + $0x908] sm:$0xff]
    %v1877 = vld [vmem:[#allocation6 + $0x910] sm:$0xff]
    %v1878 = vld [vmem:[#allocation6 + $0x918] sm:$0xff]
    %v1879 = vld [vmem:[#allocation6 + $0x920] sm:$0xff]
    %v1880 = vld [vmem:[#allocation6 + $0x928] sm:$0xff]
    %v1881 = vld [vmem:[#allocation6 + $0x930] sm:$0xff]
    %v1882 = vld [vmem:[#allocation6 + $0x938] sm:$0xff]
    %v1883 = vld [vmem:[#allocation6 + $0x940] sm:$0xff]
    %v1884 = vld [vmem:[#allocation6 + $0x948] sm:$0xff]
    %v1885 = vld [vmem:[#allocation6 + $0x950] sm:$0xff]
    %v1886 = vld [vmem:[#allocation6 + $0x958] sm:$0xff]
    %v1887 = vld [vmem:[#allocation6 + $0x960] sm:$0xff]
    %v1888 = vld [vmem:[#allocation6 + $0x968] sm:$0xff]
    %v1889 = vld [vmem:[#allocation6 + $0x970] sm:$0xff]
    %v1890 = vld [vmem:[#allocation6 + $0x978] sm:$0xff]
    %v1891 = vld [vmem:[#allocation6 + $0x980] sm:$0xff]
    %v1892 = vld [vmem:[#allocation6 + $0x988] sm:$0xff]
    %v1893 = vld [vmem:[#allocation6 + $0x990] sm:$0xff]
    %v1894 = vld [vmem:[#allocation6 + $0x998] sm:$0xff]
    %v1895 = vld [vmem:[#allocation6 + $0x9a0] sm:$0xff]
    %v1896 = vld [vmem:[#allocation6 + $0x9a8] sm:$0xff]
    %v1897 = vld [vmem:[#allocation6 + $0x9b0] sm:$0xff]
    %v1898 = vld [vmem:[#allocation6 + $0x9b8] sm:$0xff]
    %v1899 = vld [vmem:[#allocation6 + $0x9c0] sm:$0xff]
    %v1900 = vld [vmem:[#allocation6 + $0x9c8] sm:$0xff]
    %v1901 = vld [vmem:[#allocation6 + $0x9d0] sm:$0xff]
    %v1902 = vld [vmem:[#allocation6 + $0x9d8] sm:$0xff]
    %v1903 = vld [vmem:[#allocation6 + $0x9e0] sm:$0xff]
    %v1904 = vld [vmem:[#allocation6 + $0x9e8] sm:$0xff]
    %v1905 = vld [vmem:[#allocation6 + $0x9f0] sm:$0xff]
    %v1906 = vld [vmem:[#allocation6 + $0x9f8] sm:$0xff]
    %v1907 = vld [vmem:[#allocation6 + $0xa00] sm:$0xff]
    %v1908 = vld [vmem:[#allocation6 + $0xa08] sm:$0xff]
    %v1909 = vld [vmem:[#allocation6 + $0xa10] sm:$0xff]
    %v1910 = vld [vmem:[#allocation6 + $0xa18] sm:$0xff]
    %v1911 = vld [vmem:[#allocation7] sm:$0xff]
    %v1912 = vld [vmem:[#allocation7 + $0x8] sm:$0xff]
    %v1913 = vld [vmem:[#allocation7 + $0x10] sm:$0xff]
    %v1914 = vld [vmem:[#allocation7 + $0x18] sm:$0xff]
    %v1915 = vld [vmem:[#allocation7 + $0x20] sm:$0xf]
    %v1921 = vlaneseq
    %v1922 = vshrl.u32 %v1921, 7
    %v1923 = vsub.s32 0, %v1922
    %v1924 = vrot.slane %v1911, %v1923
    %v1925 = vlaneseq
    %v1926 = vshrl.u32 %v1925, 7
    %v1927 = vsub.s32 1, %v1926
    %v1928 = vrot.slane %v1911, %v1927
    %v1929 = vlaneseq
    %v1930 = vshrl.u32 %v1929, 7
    %v1931 = vsub.s32 2, %v1930
    %v1932 = vrot.slane %v1911, %v1931
    %v1933 = vlaneseq
    %v1934 = vshrl.u32 %v1933, 7
    %v1935 = vsub.s32 3, %v1934
    %v1936 = vrot.slane %v1911, %v1935
    %v1937 = vlaneseq
    %v1938 = vshrl.u32 %v1937, 7
    %v1939 = vsub.s32 4, %v1938
    %v1940 = vrot.slane %v1911, %v1939
    %v1941 = vlaneseq
    %v1942 = vshrl.u32 %v1941, 7
    %v1943 = vsub.s32 5, %v1942
    %v1944 = vrot.slane %v1911, %v1943
    %v1945 = vlaneseq
    %v1946 = vshrl.u32 %v1945, 7
    %v1947 = vsub.s32 6, %v1946
    %v1948 = vrot.slane %v1911, %v1947
    %v1949 = vlaneseq
    %v1950 = vshrl.u32 %v1949, 7
    %v1951 = vsub.s32 7, %v1950
    %v1952 = vrot.slane %v1911, %v1951
    %v1953 = vlaneseq
    %v1954 = vshrl.u32 %v1953, 7
    %v1955 = vsub.s32 0, %v1954
    %v1956 = vrot.slane %v1912, %v1955
    %v1957 = vlaneseq
    %v1958 = vshrl.u32 %v1957, 7
    %v1959 = vsub.s32 1, %v1958
    %v1960 = vrot.slane %v1912, %v1959
    %v1961 = vlaneseq
    %v1962 = vshrl.u32 %v1961, 7
    %v1963 = vsub.s32 2, %v1962
    %v1964 = vrot.slane %v1912, %v1963
    %v1965 = vlaneseq
    %v1966 = vshrl.u32 %v1965, 7
    %v1967 = vsub.s32 3, %v1966
    %v1968 = vrot.slane %v1912, %v1967
    %v1969 = vlaneseq
    %v1970 = vshrl.u32 %v1969, 7
    %v1971 = vsub.s32 4, %v1970
    %v1972 = vrot.slane %v1912, %v1971
    %v1973 = vlaneseq
    %v1974 = vshrl.u32 %v1973, 7
    %v1975 = vsub.s32 5, %v1974
    %v1976 = vrot.slane %v1912, %v1975
    %v1977 = vlaneseq
    %v1978 = vshrl.u32 %v1977, 7
    %v1979 = vsub.s32 6, %v1978
    %v1980 = vrot.slane %v1912, %v1979
    %v1981 = vlaneseq
    %v1982 = vshrl.u32 %v1981, 7
    %v1983 = vsub.s32 7, %v1982
    %v1984 = vrot.slane %v1912, %v1983
    %v1985 = vlaneseq
    %v1986 = vshrl.u32 %v1985, 7
    %v1987 = vsub.s32 0, %v1986
    %v1988 = vrot.slane %v1913, %v1987
    %v1989 = vlaneseq
    %v1990 = vshrl.u32 %v1989, 7
    %v1991 = vsub.s32 1, %v1990
    %v1992 = vrot.slane %v1913, %v1991
    %v1993 = vlaneseq
    %v1994 = vshrl.u32 %v1993, 7
    %v1995 = vsub.s32 2, %v1994
    %v1996 = vrot.slane %v1913, %v1995
    %v1997 = vlaneseq
    %v1998 = vshrl.u32 %v1997, 7
    %v1999 = vsub.s32 3, %v1998
    %v2000 = vrot.slane %v1913, %v1999
    %v2001 = vlaneseq
    %v2002 = vshrl.u32 %v2001, 7
    %v2003 = vsub.s32 4, %v2002
    %v2004 = vrot.slane %v1913, %v2003
    %v2005 = vlaneseq
    %v2006 = vshrl.u32 %v2005, 7
    %v2007 = vsub.s32 5, %v2006
    %v2008 = vrot.slane %v1913, %v2007
    %v2009 = vlaneseq
    %v2010 = vshrl.u32 %v2009, 7
    %v2011 = vsub.s32 6, %v2010
    %v2012 = vrot.slane %v1913, %v2011
    %v2013 = vlaneseq
    %v2014 = vshrl.u32 %v2013, 7
    %v2015 = vsub.s32 7, %v2014
    %v2016 = vrot.slane %v1913, %v2015
    %v2017 = vlaneseq
    %v2018 = vshrl.u32 %v2017, 7
    %v2019 = vsub.s32 0, %v2018
    %v2020 = vrot.slane %v1914, %v2019
    %v2021 = vlaneseq
    %v2022 = vshrl.u32 %v2021, 7
    %v2023 = vsub.s32 1, %v2022
    %v2024 = vrot.slane %v1914, %v2023
    %v2025 = vlaneseq
    %v2026 = vshrl.u32 %v2025, 7
    %v2027 = vsub.s32 2, %v2026
    %v2028 = vrot.slane %v1914, %v2027
    %v2029 = vlaneseq
    %v2030 = vshrl.u32 %v2029, 7
    %v2031 = vsub.s32 3, %v2030
    %v2032 = vrot.slane %v1914, %v2031
    %v2033 = vlaneseq
    %v2034 = vshrl.u32 %v2033, 7
    %v2035 = vsub.s32 4, %v2034
    %v2036 = vrot.slane %v1914, %v2035
    %v2037 = vlaneseq
    %v2038 = vshrl.u32 %v2037, 7
    %v2039 = vsub.s32 5, %v2038
    %v2040 = vrot.slane %v1914, %v2039
    %v2041 = vlaneseq
    %v2042 = vshrl.u32 %v2041, 7
    %v2043 = vsub.s32 6, %v2042
    %v2044 = vrot.slane %v1914, %v2043
    %v2045 = vlaneseq
    %v2046 = vshrl.u32 %v2045, 7
    %v2047 = vsub.s32 7, %v2046
    %v2048 = vrot.slane %v1914, %v2047
    %v2049 = vlaneseq
    %v2050 = vshrl.u32 %v2049, 7
    %v2051 = vsub.s32 0, %v2050
    %v2052 = vrot.slane %v1915, %v2051
    %v2053 = vlaneseq
    %v2054 = vshrl.u32 %v2053, 7
    %v2055 = vsub.s32 1, %v2054
    %v2056 = vrot.slane %v1915, %v2055
    %v2057 = vlaneseq
    %v2058 = vshrl.u32 %v2057, 7
    %v2059 = vsub.s32 2, %v2058
    %v2060 = vrot.slane %v1915, %v2059
    %v2061 = vlaneseq
    %v2062 = vshrl.u32 %v2061, 7
    %v2063 = vsub.s32 3, %v2062
    %v2064 = vrot.slane %v1915, %v2063
    %v2102 = vsel %vm499, %v1586, 0
    %2104 = vmatprep.subr.mxu0 0.0
    %2105 = vmatpush1.msra.mxu0 0.0
    %2106 = vmatprep.subr.mxu0 0.0
    %2107 = vmatpush1.msra.mxu0 0.0
    %2108 = vmatprep.subr.mxu0 0.0
    %2109 = vmatpush1.msra.mxu0 0.0
    %2110 = vmatprep.subr.mxu0 0.0
    %2111 = vmatpush1.msra.mxu0 0.0
    %2112 = vmatprep.subr.mxu0 0.0
    %2113 = vmatpush1.msra.mxu0 0.0
    %2114 = vmatprep.subr.mxu0 0.0
    %2115 = vmatpush1.msra.mxu0 0.0
    %2116 = vmatprep.subr.mxu0 0.0
    %2117 = vmatpush1.msra.mxu0 0.0
    %2118 = vmatprep.subr.mxu0 %v1876
    %2119 = vmatpush1.msra.mxu0 %v1875
    %2120 = vmatprep.subr.mxu0 %v1840
    %2121 = vmatpush1.msra.mxu0 %v1839
    %2122 = vmatprep.subr.mxu0 %v1804
    %2123 = vmatpush1.msra.mxu0 %v1803
    %2124 = vmatprep.subr.mxu0 %v1768
    %2125 = vmatpush1.msra.mxu0 %v1767
    %2126 = vmatprep.subr.mxu0 %v1732
    %2127 = vmatpush1.msra.mxu0 %v1731
    %2128 = vmatprep.subr.mxu0 %v1696
    %2129 = vmatpush1.msra.mxu0 %v1695
    %2130 = vmatprep.subr.mxu0 %v1660
    %2131 = vmatpush1.msra.mxu0 %v1659
    %2132 = vmatprep.subr.mxu0 %v1624
    %2133 = vmatpush1.msra.mxu0 %v1623
    %2134 = vmatprep.subr.mxu0 %v1588
    %2135 = vmatpush1.msra.mxu0 %v1587
    %2136 = vmatprep.subr.mxu0 0.0
    %2137 = vmatpush2.msra.mxu0 0.0
    %2138 = vmatprep.subr.mxu0 0.0
    %2139 = vmatpush2.msra.mxu0 0.0
    %2140 = vmatprep.subr.mxu0 0.0
    %2141 = vmatpush2.msra.mxu0 0.0
    %2142 = vmatprep.subr.mxu0 0.0
    %2143 = vmatpush2.msra.mxu0 0.0
    %2144 = vmatprep.subr.mxu0 0.0
    %2145 = vmatpush2.msra.mxu0 0.0
    %2146 = vmatprep.subr.mxu0 0.0
    %2147 = vmatpush2.msra.mxu0 0.0
    %2148 = vmatprep.subr.mxu0 0.0
    %2149 = vmatpush2.msra.mxu0 0.0
    %2150 = vmatprep.subr.mxu0 0.0
    %2151 = vmatpush2.msra.mxu0 0.0
    %2152 = vmatprep.subr.mxu0 0.0
    %2153 = vmatpush2.msra.mxu0 0.0
    %2154 = vmatprep.subr.mxu0 0.0
    %2155 = vmatpush2.msra.mxu0 0.0
    %2156 = vmatprep.subr.mxu0 0.0
    %2157 = vmatpush2.msra.mxu0 0.0
    %2158 = vmatprep.subr.mxu0 0.0
    %2159 = vmatpush2.msra.mxu0 0.0
    %2160 = vmatprep.subr.mxu0 0.0
    %2161 = vmatpush2.msra.mxu0 0.0
    %2162 = vmatprep.subr.mxu0 0.0
    %2163 = vmatpush2.msra.mxu0 0.0
    %2164 = vmatprep.subr.mxu0 0.0
    %2165 = vmatpush2.msra.mxu0 0.0
    %2166 = vmatprep.subr.mxu0 0.0
    %2167 = vmatpush2.msra.mxu0 0.0
    %2168 = vmatprep.mubr.f32.mxu0 0.0
    %2169 = vmatmul.mubr.f32.gmra.mxu0 %v2102
    %v2170 = vpop.f32.mrf.mxu0
    %v2171 = vadd.f32 %v1924, %v2170
    %v2172 = vpop.f32.mrf.mxu0
    %v2173 = vadd.f32 %v1928, %v2172
    %2174 = vdwg.mxu0
    %2175 = vmatprep.subr.mxu0 0.0
    %2176 = vmatpush1.msra.mxu0 0.0
    %2177 = vmatprep.subr.mxu0 0.0
    %2178 = vmatpush1.msra.mxu0 0.0
    %2179 = vmatprep.subr.mxu0 0.0
    %2180 = vmatpush1.msra.mxu0 0.0
    %2181 = vmatprep.subr.mxu0 0.0
    %2182 = vmatpush1.msra.mxu0 0.0
    %2183 = vmatprep.subr.mxu0 0.0
    %2184 = vmatpush1.msra.mxu0 0.0
    %2185 = vmatprep.subr.mxu0 0.0
    %2186 = vmatpush1.msra.mxu0 0.0
    %2187 = vmatprep.subr.mxu0 0.0
    %2188 = vmatpush1.msra.mxu0 0.0
    %2189 = vmatprep.subr.mxu0 %v1878
    %2190 = vmatpush1.msra.mxu0 %v1877
    %2191 = vmatprep.subr.mxu0 %v1842
    %2192 = vmatpush1.msra.mxu0 %v1841
    %2193 = vmatprep.subr.mxu0 %v1806
    %2194 = vmatpush1.msra.mxu0 %v1805
    %2195 = vmatprep.subr.mxu0 %v1770
    %2196 = vmatpush1.msra.mxu0 %v1769
    %2197 = vmatprep.subr.mxu0 %v1734
    %2198 = vmatpush1.msra.mxu0 %v1733
    %2199 = vmatprep.subr.mxu0 %v1698
    %2200 = vmatpush1.msra.mxu0 %v1697
    %2201 = vmatprep.subr.mxu0 %v1662
    %2202 = vmatpush1.msra.mxu0 %v1661
    %2203 = vmatprep.subr.mxu0 %v1626
    %2204 = vmatpush1.msra.mxu0 %v1625
    %2205 = vmatprep.subr.mxu0 %v1590
    %2206 = vmatpush1.msra.mxu0 %v1589
    %2207 = vmatprep.subr.mxu0 0.0
    %2208 = vmatpush2.msra.mxu0 0.0
    %2209 = vmatprep.subr.mxu0 0.0
    %2210 = vmatpush2.msra.mxu0 0.0
    %2211 = vmatprep.subr.mxu0 0.0
    %2212 = vmatpush2.msra.mxu0 0.0
    %2213 = vmatprep.subr.mxu0 0.0
    %2214 = vmatpush2.msra.mxu0 0.0
    %2215 = vmatprep.subr.mxu0 0.0
    %2216 = vmatpush2.msra.mxu0 0.0
    %2217 = vmatprep.subr.mxu0 0.0
    %2218 = vmatpush2.msra.mxu0 0.0
    %2219 = vmatprep.subr.mxu0 0.0
    %2220 = vmatpush2.msra.mxu0 0.0
    %2221 = vmatprep.subr.mxu0 0.0
    %2222 = vmatpush2.msra.mxu0 0.0
    %2223 = vmatprep.subr.mxu0 0.0
    %2224 = vmatpush2.msra.mxu0 0.0
    %2225 = vmatprep.subr.mxu0 0.0
    %2226 = vmatpush2.msra.mxu0 0.0
    %2227 = vmatprep.subr.mxu0 0.0
    %2228 = vmatpush2.msra.mxu0 0.0
    %2229 = vmatprep.subr.mxu0 0.0
    %2230 = vmatpush2.msra.mxu0 0.0
    %2231 = vmatprep.subr.mxu0 0.0
    %2232 = vmatpush2.msra.mxu0 0.0
    %2233 = vmatprep.subr.mxu0 0.0
    %2234 = vmatpush2.msra.mxu0 0.0
    %2235 = vmatprep.subr.mxu0 0.0
    %2236 = vmatpush2.msra.mxu0 0.0
    %2237 = vmatprep.subr.mxu0 0.0
    %2238 = vmatpush2.msra.mxu0 0.0
    %2239 = vmatprep.mubr.f32.mxu0 0.0
    %2240 = vmatmul.mubr.f32.gmra.mxu0 %v2102
    %v2241 = vpop.f32.mrf.mxu0
    %v2242 = vadd.f32 %v1932, %v2241
    %v2243 = vpop.f32.mrf.mxu0
    %v2244 = vadd.f32 %v1936, %v2243
    %2245 = vdwg.mxu0
    %2246 = vmatprep.subr.mxu0 0.0
    %2247 = vmatpush1.msra.mxu0 0.0
    %2248 = vmatprep.subr.mxu0 0.0
    %2249 = vmatpush1.msra.mxu0 0.0
    %2250 = vmatprep.subr.mxu0 0.0
    %2251 = vmatpush1.msra.mxu0 0.0
    %2252 = vmatprep.subr.mxu0 0.0
    %2253 = vmatpush1.msra.mxu0 0.0
    %2254 = vmatprep.subr.mxu0 0.0
    %2255 = vmatpush1.msra.mxu0 0.0
    %2256 = vmatprep.subr.mxu0 0.0
    %2257 = vmatpush1.msra.mxu0 0.0
    %2258 = vmatprep.subr.mxu0 0.0
    %2259 = vmatpush1.msra.mxu0 0.0
    %2260 = vmatprep.subr.mxu0 %v1880
    %2261 = vmatpush1.msra.mxu0 %v1879
    %2262 = vmatprep.subr.mxu0 %v1844
    %2263 = vmatpush1.msra.mxu0 %v1843
    %2264 = vmatprep.subr.mxu0 %v1808
    %2265 = vmatpush1.msra.mxu0 %v1807
    %2266 = vmatprep.subr.mxu0 %v1772
    %2267 = vmatpush1.msra.mxu0 %v1771
    %2268 = vmatprep.subr.mxu0 %v1736
    %2269 = vmatpush1.msra.mxu0 %v1735
    %2270 = vmatprep.subr.mxu0 %v1700
    %2271 = vmatpush1.msra.mxu0 %v1699
    %2272 = vmatprep.subr.mxu0 %v1664
    %2273 = vmatpush1.msra.mxu0 %v1663
    %2274 = vmatprep.subr.mxu0 %v1628
    %2275 = vmatpush1.msra.mxu0 %v1627
    %2276 = vmatprep.subr.mxu0 %v1592
    %2277 = vmatpush1.msra.mxu0 %v1591
    %2278 = vmatprep.subr.mxu0 0.0
    %2279 = vmatpush2.msra.mxu0 0.0
    %2280 = vmatprep.subr.mxu0 0.0
    %2281 = vmatpush2.msra.mxu0 0.0
    %2282 = vmatprep.subr.mxu0 0.0
    %2283 = vmatpush2.msra.mxu0 0.0
    %2284 = vmatprep.subr.mxu0 0.0
    %2285 = vmatpush2.msra.mxu0 0.0
    %2286 = vmatprep.subr.mxu0 0.0
    %2287 = vmatpush2.msra.mxu0 0.0
    %2288 = vmatprep.subr.mxu0 0.0
    %2289 = vmatpush2.msra.mxu0 0.0
    %2290 = vmatprep.subr.mxu0 0.0
    %2291 = vmatpush2.msra.mxu0 0.0
    %2292 = vmatprep.subr.mxu0 0.0
    %2293 = vmatpush2.msra.mxu0 0.0
    %2294 = vmatprep.subr.mxu0 0.0
    %2295 = vmatpush2.msra.mxu0 0.0
    %2296 = vmatprep.subr.mxu0 0.0
    %2297 = vmatpush2.msra.mxu0 0.0
    %2298 = vmatprep.subr.mxu0 0.0
    %2299 = vmatpush2.msra.mxu0 0.0
    %2300 = vmatprep.subr.mxu0 0.0
    %2301 = vmatpush2.msra.mxu0 0.0
    %2302 = vmatprep.subr.mxu0 0.0
    %2303 = vmatpush2.msra.mxu0 0.0
    %2304 = vmatprep.subr.mxu0 0.0
    %2305 = vmatpush2.msra.mxu0 0.0
    %2306 = vmatprep.subr.mxu0 0.0
    %2307 = vmatpush2.msra.mxu0 0.0
    %2308 = vmatprep.subr.mxu0 0.0
    %2309 = vmatpush2.msra.mxu0 0.0
    %2310 = vmatprep.mubr.f32.mxu0 0.0
    %2311 = vmatmul.mubr.f32.gmra.mxu0 %v2102
    %v2312 = vpop.f32.mrf.mxu0
    %v2313 = vadd.f32 %v1940, %v2312
    %v2314 = vpop.f32.mrf.mxu0
    %v2315 = vadd.f32 %v1944, %v2314
    %2316 = vdwg.mxu0
    %2317 = vmatprep.subr.mxu0 0.0
    %2318 = vmatpush1.msra.mxu0 0.0
    %2319 = vmatprep.subr.mxu0 0.0
    %2320 = vmatpush1.msra.mxu0 0.0
    %2321 = vmatprep.subr.mxu0 0.0
    %2322 = vmatpush1.msra.mxu0 0.0
    %2323 = vmatprep.subr.mxu0 0.0
    %2324 = vmatpush1.msra.mxu0 0.0
    %2325 = vmatprep.subr.mxu0 0.0
    %2326 = vmatpush1.msra.mxu0 0.0
    %2327 = vmatprep.subr.mxu0 0.0
    %2328 = vmatpush1.msra.mxu0 0.0
    %2329 = vmatprep.subr.mxu0 0.0
    %2330 = vmatpush1.msra.mxu0 0.0
    %2331 = vmatprep.subr.mxu0 %v1882
    %2332 = vmatpush1.msra.mxu0 %v1881
    %2333 = vmatprep.subr.mxu0 %v1846
    %2334 = vmatpush1.msra.mxu0 %v1845
    %2335 = vmatprep.subr.mxu0 %v1810
    %2336 = vmatpush1.msra.mxu0 %v1809
    %2337 = vmatprep.subr.mxu0 %v1774
    %2338 = vmatpush1.msra.mxu0 %v1773
    %2339 = vmatprep.subr.mxu0 %v1738
    %2340 = vmatpush1.msra.mxu0 %v1737
    %2341 = vmatprep.subr.mxu0 %v1702
    %2342 = vmatpush1.msra.mxu0 %v1701
    %2343 = vmatprep.subr.mxu0 %v1666
    %2344 = vmatpush1.msra.mxu0 %v1665
    %2345 = vmatprep.subr.mxu0 %v1630
    %2346 = vmatpush1.msra.mxu0 %v1629
    %2347 = vmatprep.subr.mxu0 %v1594
    %2348 = vmatpush1.msra.mxu0 %v1593
    %2349 = vmatprep.subr.mxu0 0.0
    %2350 = vmatpush2.msra.mxu0 0.0
    %2351 = vmatprep.subr.mxu0 0.0
    %2352 = vmatpush2.msra.mxu0 0.0
    %2353 = vmatprep.subr.mxu0 0.0
    %2354 = vmatpush2.msra.mxu0 0.0
    %2355 = vmatprep.subr.mxu0 0.0
    %2356 = vmatpush2.msra.mxu0 0.0
    %2357 = vmatprep.subr.mxu0 0.0
    %2358 = vmatpush2.msra.mxu0 0.0
    %2359 = vmatprep.subr.mxu0 0.0
    %2360 = vmatpush2.msra.mxu0 0.0
    %2361 = vmatprep.subr.mxu0 0.0
    %2362 = vmatpush2.msra.mxu0 0.0
    %2363 = vmatprep.subr.mxu0 0.0
    %2364 = vmatpush2.msra.mxu0 0.0
    %2365 = vmatprep.subr.mxu0 0.0
    %2366 = vmatpush2.msra.mxu0 0.0
    %2367 = vmatprep.subr.mxu0 0.0
    %2368 = vmatpush2.msra.mxu0 0.0
    %2369 = vmatprep.subr.mxu0 0.0
    %2370 = vmatpush2.msra.mxu0 0.0
    %2371 = vmatprep.subr.mxu0 0.0
    %2372 = vmatpush2.msra.mxu0 0.0
    %2373 = vmatprep.subr.mxu0 0.0
    %2374 = vmatpush2.msra.mxu0 0.0
    %2375 = vmatprep.subr.mxu0 0.0
    %2376 = vmatpush2.msra.mxu0 0.0
    %2377 = vmatprep.subr.mxu0 0.0
    %2378 = vmatpush2.msra.mxu0 0.0
    %2379 = vmatprep.subr.mxu0 0.0
    %2380 = vmatpush2.msra.mxu0 0.0
    %2381 = vmatprep.mubr.f32.mxu0 0.0
    %2382 = vmatmul.mubr.f32.gmra.mxu0 %v2102
    %v2383 = vpop.f32.mrf.mxu0
    %v2384 = vadd.f32 %v1948, %v2383
    %v2385 = vpop.f32.mrf.mxu0
    %v2386 = vadd.f32 %v1952, %v2385
    %2387 = vdwg.mxu0
    %2388 = vmatprep.subr.mxu0 0.0
    %2389 = vmatpush1.msra.mxu0 0.0
    %2390 = vmatprep.subr.mxu0 0.0
    %2391 = vmatpush1.msra.mxu0 0.0
    %2392 = vmatprep.subr.mxu0 0.0
    %2393 = vmatpush1.msra.mxu0 0.0
    %2394 = vmatprep.subr.mxu0 0.0
    %2395 = vmatpush1.msra.mxu0 0.0
    %2396 = vmatprep.subr.mxu0 0.0
    %2397 = vmatpush1.msra.mxu0 0.0
    %2398 = vmatprep.subr.mxu0 0.0
    %2399 = vmatpush1.msra.mxu0 0.0
    %2400 = vmatprep.subr.mxu0 0.0
    %2401 = vmatpush1.msra.mxu0 0.0
    %2402 = vmatprep.subr.mxu0 %v1884
    %2403 = vmatpush1.msra.mxu0 %v1883
    %2404 = vmatprep.subr.mxu0 %v1848
    %2405 = vmatpush1.msra.mxu0 %v1847
    %2406 = vmatprep.subr.mxu0 %v1812
    %2407 = vmatpush1.msra.mxu0 %v1811
    %2408 = vmatprep.subr.mxu0 %v1776
    %2409 = vmatpush1.msra.mxu0 %v1775
    %2410 = vmatprep.subr.mxu0 %v1740
    %2411 = vmatpush1.msra.mxu0 %v1739
    %2412 = vmatprep.subr.mxu0 %v1704
    %2413 = vmatpush1.msra.mxu0 %v1703
    %2414 = vmatprep.subr.mxu0 %v1668
    %2415 = vmatpush1.msra.mxu0 %v1667
    %2416 = vmatprep.subr.mxu0 %v1632
    %2417 = vmatpush1.msra.mxu0 %v1631
    %2418 = vmatprep.subr.mxu0 %v1596
    %2419 = vmatpush1.msra.mxu0 %v1595
    %2420 = vmatprep.subr.mxu0 0.0
    %2421 = vmatpush2.msra.mxu0 0.0
    %2422 = vmatprep.subr.mxu0 0.0
    %2423 = vmatpush2.msra.mxu0 0.0
    %2424 = vmatprep.subr.mxu0 0.0
    %2425 = vmatpush2.msra.mxu0 0.0
    %2426 = vmatprep.subr.mxu0 0.0
    %2427 = vmatpush2.msra.mxu0 0.0
    %2428 = vmatprep.subr.mxu0 0.0
    %2429 = vmatpush2.msra.mxu0 0.0
    %2430 = vmatprep.subr.mxu0 0.0
    %2431 = vmatpush2.msra.mxu0 0.0
    %2432 = vmatprep.subr.mxu0 0.0
    %2433 = vmatpush2.msra.mxu0 0.0
    %2434 = vmatprep.subr.mxu0 0.0
    %2435 = vmatpush2.msra.mxu0 0.0
    %2436 = vmatprep.subr.mxu0 0.0
    %2437 = vmatpush2.msra.mxu0 0.0
    %2438 = vmatprep.subr.mxu0 0.0
    %2439 = vmatpush2.msra.mxu0 0.0
    %2440 = vmatprep.subr.mxu0 0.0
    %2441 = vmatpush2.msra.mxu0 0.0
    %2442 = vmatprep.subr.mxu0 0.0
    %2443 = vmatpush2.msra.mxu0 0.0
    %2444 = vmatprep.subr.mxu0 0.0
    %2445 = vmatpush2.msra.mxu0 0.0
    %2446 = vmatprep.subr.mxu0 0.0
    %2447 = vmatpush2.msra.mxu0 0.0
    %2448 = vmatprep.subr.mxu0 0.0
    %2449 = vmatpush2.msra.mxu0 0.0
    %2450 = vmatprep.subr.mxu0 0.0
    %2451 = vmatpush2.msra.mxu0 0.0
    %2452 = vmatprep.mubr.f32.mxu0 0.0
    %2453 = vmatmul.mubr.f32.gmra.mxu0 %v2102
    %v2454 = vpop.f32.mrf.mxu0
    %v2455 = vadd.f32 %v1956, %v2454
    %v2456 = vpop.f32.mrf.mxu0
    %v2457 = vadd.f32 %v1960, %v2456
    %2458 = vdwg.mxu0
    %2459 = vmatprep.subr.mxu0 0.0
    %2460 = vmatpush1.msra.mxu0 0.0
    %2461 = vmatprep.subr.mxu0 0.0
    %2462 = vmatpush1.msra.mxu0 0.0
    %2463 = vmatprep.subr.mxu0 0.0
    %2464 = vmatpush1.msra.mxu0 0.0
    %2465 = vmatprep.subr.mxu0 0.0
    %2466 = vmatpush1.msra.mxu0 0.0
    %2467 = vmatprep.subr.mxu0 0.0
    %2468 = vmatpush1.msra.mxu0 0.0
    %2469 = vmatprep.subr.mxu0 0.0
    %2470 = vmatpush1.msra.mxu0 0.0
    %2471 = vmatprep.subr.mxu0 0.0
    %2472 = vmatpush1.msra.mxu0 0.0
    %2473 = vmatprep.subr.mxu0 %v1886
    %2474 = vmatpush1.msra.mxu0 %v1885
    %2475 = vmatprep.subr.mxu0 %v1850
    %2476 = vmatpush1.msra.mxu0 %v1849
    %2477 = vmatprep.subr.mxu0 %v1814
    %2478 = vmatpush1.msra.mxu0 %v1813
    %2479 = vmatprep.subr.mxu0 %v1778
    %2480 = vmatpush1.msra.mxu0 %v1777
    %2481 = vmatprep.subr.mxu0 %v1742
    %2482 = vmatpush1.msra.mxu0 %v1741
    %2483 = vmatprep.subr.mxu0 %v1706
    %2484 = vmatpush1.msra.mxu0 %v1705
    %2485 = vmatprep.subr.mxu0 %v1670
    %2486 = vmatpush1.msra.mxu0 %v1669
    %2487 = vmatprep.subr.mxu0 %v1634
    %2488 = vmatpush1.msra.mxu0 %v1633
    %2489 = vmatprep.subr.mxu0 %v1598
    %2490 = vmatpush1.msra.mxu0 %v1597
    %2491 = vmatprep.subr.mxu0 0.0
    %2492 = vmatpush2.msra.mxu0 0.0
    %2493 = vmatprep.subr.mxu0 0.0
    %2494 = vmatpush2.msra.mxu0 0.0
    %2495 = vmatprep.subr.mxu0 0.0
    %2496 = vmatpush2.msra.mxu0 0.0
    %2497 = vmatprep.subr.mxu0 0.0
    %2498 = vmatpush2.msra.mxu0 0.0
    %2499 = vmatprep.subr.mxu0 0.0
    %2500 = vmatpush2.msra.mxu0 0.0
    %2501 = vmatprep.subr.mxu0 0.0
    %2502 = vmatpush2.msra.mxu0 0.0
    %2503 = vmatprep.subr.mxu0 0.0
    %2504 = vmatpush2.msra.mxu0 0.0
    %2505 = vmatprep.subr.mxu0 0.0
    %2506 = vmatpush2.msra.mxu0 0.0
    %2507 = vmatprep.subr.mxu0 0.0
    %2508 = vmatpush2.msra.mxu0 0.0
    %2509 = vmatprep.subr.mxu0 0.0
    %2510 = vmatpush2.msra.mxu0 0.0
    %2511 = vmatprep.subr.mxu0 0.0
    %2512 = vmatpush2.msra.mxu0 0.0
    %2513 = vmatprep.subr.mxu0 0.0
    %2514 = vmatpush2.msra.mxu0 0.0
    %2515 = vmatprep.subr.mxu0 0.0
    %2516 = vmatpush2.msra.mxu0 0.0
    %2517 = vmatprep.subr.mxu0 0.0
    %2518 = vmatpush2.msra.mxu0 0.0
    %2519 = vmatprep.subr.mxu0 0.0
    %2520 = vmatpush2.msra.mxu0 0.0
    %2521 = vmatprep.subr.mxu0 0.0
    %2522 = vmatpush2.msra.mxu0 0.0
    %2523 = vmatprep.mubr.f32.mxu0 0.0
    %2524 = vmatmul.mubr.f32.gmra.mxu0 %v2102
    %v2525 = vpop.f32.mrf.mxu0
    %v2526 = vadd.f32 %v1964, %v2525
    %v2527 = vpop.f32.mrf.mxu0
    %v2528 = vadd.f32 %v1968, %v2527
    %2529 = vdwg.mxu0
    %2530 = vmatprep.subr.mxu0 0.0
    %2531 = vmatpush1.msra.mxu0 0.0
    %2532 = vmatprep.subr.mxu0 0.0
    %2533 = vmatpush1.msra.mxu0 0.0
    %2534 = vmatprep.subr.mxu0 0.0
    %2535 = vmatpush1.msra.mxu0 0.0
    %2536 = vmatprep.subr.mxu0 0.0
    %2537 = vmatpush1.msra.mxu0 0.0
    %2538 = vmatprep.subr.mxu0 0.0
    %2539 = vmatpush1.msra.mxu0 0.0
    %2540 = vmatprep.subr.mxu0 0.0
    %2541 = vmatpush1.msra.mxu0 0.0
    %2542 = vmatprep.subr.mxu0 0.0
    %2543 = vmatpush1.msra.mxu0 0.0
    %2544 = vmatprep.subr.mxu0 %v1888
    %2545 = vmatpush1.msra.mxu0 %v1887
    %2546 = vmatprep.subr.mxu0 %v1852
    %2547 = vmatpush1.msra.mxu0 %v1851
    %2548 = vmatprep.subr.mxu0 %v1816
    %2549 = vmatpush1.msra.mxu0 %v1815
    %2550 = vmatprep.subr.mxu0 %v1780
    %2551 = vmatpush1.msra.mxu0 %v1779
    %2552 = vmatprep.subr.mxu0 %v1744
    %2553 = vmatpush1.msra.mxu0 %v1743
    %2554 = vmatprep.subr.mxu0 %v1708
    %2555 = vmatpush1.msra.mxu0 %v1707
    %2556 = vmatprep.subr.mxu0 %v1672
    %2557 = vmatpush1.msra.mxu0 %v1671
    %2558 = vmatprep.subr.mxu0 %v1636
    %2559 = vmatpush1.msra.mxu0 %v1635
    %2560 = vmatprep.subr.mxu0 %v1600
    %2561 = vmatpush1.msra.mxu0 %v1599
    %2562 = vmatprep.subr.mxu0 0.0
    %2563 = vmatpush2.msra.mxu0 0.0
    %2564 = vmatprep.subr.mxu0 0.0
    %2565 = vmatpush2.msra.mxu0 0.0
    %2566 = vmatprep.subr.mxu0 0.0
    %2567 = vmatpush2.msra.mxu0 0.0
    %2568 = vmatprep.subr.mxu0 0.0
    %2569 = vmatpush2.msra.mxu0 0.0
    %2570 = vmatprep.subr.mxu0 0.0
    %2571 = vmatpush2.msra.mxu0 0.0
    %2572 = vmatprep.subr.mxu0 0.0
    %2573 = vmatpush2.msra.mxu0 0.0
    %2574 = vmatprep.subr.mxu0 0.0
    %2575 = vmatpush2.msra.mxu0 0.0
    %2576 = vmatprep.subr.mxu0 0.0
    %2577 = vmatpush2.msra.mxu0 0.0
    %2578 = vmatprep.subr.mxu0 0.0
    %2579 = vmatpush2.msra.mxu0 0.0
    %2580 = vmatprep.subr.mxu0 0.0
    %2581 = vmatpush2.msra.mxu0 0.0
    %2582 = vmatprep.subr.mxu0 0.0
    %2583 = vmatpush2.msra.mxu0 0.0
    %2584 = vmatprep.subr.mxu0 0.0
    %2585 = vmatpush2.msra.mxu0 0.0
    %2586 = vmatprep.subr.mxu0 0.0
    %2587 = vmatpush2.msra.mxu0 0.0
    %2588 = vmatprep.subr.mxu0 0.0
    %2589 = vmatpush2.msra.mxu0 0.0
    %2590 = vmatprep.subr.mxu0 0.0
    %2591 = vmatpush2.msra.mxu0 0.0
    %2592 = vmatprep.subr.mxu0 0.0
    %2593 = vmatpush2.msra.mxu0 0.0
    %2594 = vmatprep.mubr.f32.mxu0 0.0
    %2595 = vmatmul.mubr.f32.gmra.mxu0 %v2102
    %v2596 = vpop.f32.mrf.mxu0
    %v2597 = vadd.f32 %v1972, %v2596
    %v2598 = vpop.f32.mrf.mxu0
    %v2599 = vadd.f32 %v1976, %v2598
    %2600 = vdwg.mxu0
    %2601 = vmatprep.subr.mxu0 0.0
    %2602 = vmatpush1.msra.mxu0 0.0
    %2603 = vmatprep.subr.mxu0 0.0
    %2604 = vmatpush1.msra.mxu0 0.0
    %2605 = vmatprep.subr.mxu0 0.0
    %2606 = vmatpush1.msra.mxu0 0.0
    %2607 = vmatprep.subr.mxu0 0.0
    %2608 = vmatpush1.msra.mxu0 0.0
    %2609 = vmatprep.subr.mxu0 0.0
    %2610 = vmatpush1.msra.mxu0 0.0
    %2611 = vmatprep.subr.mxu0 0.0
    %2612 = vmatpush1.msra.mxu0 0.0
    %2613 = vmatprep.subr.mxu0 0.0
    %2614 = vmatpush1.msra.mxu0 0.0
    %2615 = vmatprep.subr.mxu0 %v1890
    %2616 = vmatpush1.msra.mxu0 %v1889
    %2617 = vmatprep.subr.mxu0 %v1854
    %2618 = vmatpush1.msra.mxu0 %v1853
    %2619 = vmatprep.subr.mxu0 %v1818
    %2620 = vmatpush1.msra.mxu0 %v1817
    %2621 = vmatprep.subr.mxu0 %v1782
    %2622 = vmatpush1.msra.mxu0 %v1781
    %2623 = vmatprep.subr.mxu0 %v1746
    %2624 = vmatpush1.msra.mxu0 %v1745
    %2625 = vmatprep.subr.mxu0 %v1710
    %2626 = vmatpush1.msra.mxu0 %v1709
    %2627 = vmatprep.subr.mxu0 %v1674
    %2628 = vmatpush1.msra.mxu0 %v1673
    %2629 = vmatprep.subr.mxu0 %v1638
    %2630 = vmatpush1.msra.mxu0 %v1637
    %2631 = vmatprep.subr.mxu0 %v1602
    %2632 = vmatpush1.msra.mxu0 %v1601
    %2633 = vmatprep.subr.mxu0 0.0
    %2634 = vmatpush2.msra.mxu0 0.0
    %2635 = vmatprep.subr.mxu0 0.0
    %2636 = vmatpush2.msra.mxu0 0.0
    %2637 = vmatprep.subr.mxu0 0.0
    %2638 = vmatpush2.msra.mxu0 0.0
    %2639 = vmatprep.subr.mxu0 0.0
    %2640 = vmatpush2.msra.mxu0 0.0
    %2641 = vmatprep.subr.mxu0 0.0
    %2642 = vmatpush2.msra.mxu0 0.0
    %2643 = vmatprep.subr.mxu0 0.0
    %2644 = vmatpush2.msra.mxu0 0.0
    %2645 = vmatprep.subr.mxu0 0.0
    %2646 = vmatpush2.msra.mxu0 0.0
    %2647 = vmatprep.subr.mxu0 0.0
    %2648 = vmatpush2.msra.mxu0 0.0
    %2649 = vmatprep.subr.mxu0 0.0
    %2650 = vmatpush2.msra.mxu0 0.0
    %2651 = vmatprep.subr.mxu0 0.0
    %2652 = vmatpush2.msra.mxu0 0.0
    %2653 = vmatprep.subr.mxu0 0.0
    %2654 = vmatpush2.msra.mxu0 0.0
    %2655 = vmatprep.subr.mxu0 0.0
    %2656 = vmatpush2.msra.mxu0 0.0
    %2657 = vmatprep.subr.mxu0 0.0
    %2658 = vmatpush2.msra.mxu0 0.0
    %2659 = vmatprep.subr.mxu0 0.0
    %2660 = vmatpush2.msra.mxu0 0.0
    %2661 = vmatprep.subr.mxu0 0.0
    %2662 = vmatpush2.msra.mxu0 0.0
    %2663 = vmatprep.subr.mxu0 0.0
    %2664 = vmatpush2.msra.mxu0 0.0
    %2665 = vmatprep.mubr.f32.mxu0 0.0
    %2666 = vmatmul.mubr.f32.gmra.mxu0 %v2102
    %v2667 = vpop.f32.mrf.mxu0
    %v2668 = vadd.f32 %v1980, %v2667
    %v2669 = vpop.f32.mrf.mxu0
    %v2670 = vadd.f32 %v1984, %v2669
    %2671 = vdwg.mxu0
    %2672 = vmatprep.subr.mxu0 0.0
    %2673 = vmatpush1.msra.mxu0 0.0
    %2674 = vmatprep.subr.mxu0 0.0
    %2675 = vmatpush1.msra.mxu0 0.0
    %2676 = vmatprep.subr.mxu0 0.0
    %2677 = vmatpush1.msra.mxu0 0.0
    %2678 = vmatprep.subr.mxu0 0.0
    %2679 = vmatpush1.msra.mxu0 0.0
    %2680 = vmatprep.subr.mxu0 0.0
    %2681 = vmatpush1.msra.mxu0 0.0
    %2682 = vmatprep.subr.mxu0 0.0
    %2683 = vmatpush1.msra.mxu0 0.0
    %2684 = vmatprep.subr.mxu0 0.0
    %2685 = vmatpush1.msra.mxu0 0.0
    %2686 = vmatprep.subr.mxu0 %v1892
    %2687 = vmatpush1.msra.mxu0 %v1891
    %2688 = vmatprep.subr.mxu0 %v1856
    %2689 = vmatpush1.msra.mxu0 %v1855
    %2690 = vmatprep.subr.mxu0 %v1820
    %2691 = vmatpush1.msra.mxu0 %v1819
    %2692 = vmatprep.subr.mxu0 %v1784
    %2693 = vmatpush1.msra.mxu0 %v1783
    %2694 = vmatprep.subr.mxu0 %v1748
    %2695 = vmatpush1.msra.mxu0 %v1747
    %2696 = vmatprep.subr.mxu0 %v1712
    %2697 = vmatpush1.msra.mxu0 %v1711
    %2698 = vmatprep.subr.mxu0 %v1676
    %2699 = vmatpush1.msra.mxu0 %v1675
    %2700 = vmatprep.subr.mxu0 %v1640
    %2701 = vmatpush1.msra.mxu0 %v1639
    %2702 = vmatprep.subr.mxu0 %v1604
    %2703 = vmatpush1.msra.mxu0 %v1603
    %2704 = vmatprep.subr.mxu0 0.0
    %2705 = vmatpush2.msra.mxu0 0.0
    %2706 = vmatprep.subr.mxu0 0.0
    %2707 = vmatpush2.msra.mxu0 0.0
    %2708 = vmatprep.subr.mxu0 0.0
    %2709 = vmatpush2.msra.mxu0 0.0
    %2710 = vmatprep.subr.mxu0 0.0
    %2711 = vmatpush2.msra.mxu0 0.0
    %2712 = vmatprep.subr.mxu0 0.0
    %2713 = vmatpush2.msra.mxu0 0.0
    %2714 = vmatprep.subr.mxu0 0.0
    %2715 = vmatpush2.msra.mxu0 0.0
    %2716 = vmatprep.subr.mxu0 0.0
    %2717 = vmatpush2.msra.mxu0 0.0
    %2718 = vmatprep.subr.mxu0 0.0
    %2719 = vmatpush2.msra.mxu0 0.0
    %2720 = vmatprep.subr.mxu0 0.0
    %2721 = vmatpush2.msra.mxu0 0.0
    %2722 = vmatprep.subr.mxu0 0.0
    %2723 = vmatpush2.msra.mxu0 0.0
    %2724 = vmatprep.subr.mxu0 0.0
    %2725 = vmatpush2.msra.mxu0 0.0
    %2726 = vmatprep.subr.mxu0 0.0
    %2727 = vmatpush2.msra.mxu0 0.0
    %2728 = vmatprep.subr.mxu0 0.0
    %2729 = vmatpush2.msra.mxu0 0.0
    %2730 = vmatprep.subr.mxu0 0.0
    %2731 = vmatpush2.msra.mxu0 0.0
    %2732 = vmatprep.subr.mxu0 0.0
    %2733 = vmatpush2.msra.mxu0 0.0
    %2734 = vmatprep.subr.mxu0 0.0
    %2735 = vmatpush2.msra.mxu0 0.0
    %2736 = vmatprep.mubr.f32.mxu0 0.0
    %2737 = vmatmul.mubr.f32.gmra.mxu0 %v2102
    %v2738 = vpop.f32.mrf.mxu0
    %v2739 = vadd.f32 %v1988, %v2738
    %v2740 = vpop.f32.mrf.mxu0
    %v2741 = vadd.f32 %v1992, %v2740
    %2742 = vdwg.mxu0
    %2743 = vmatprep.subr.mxu0 0.0
    %2744 = vmatpush1.msra.mxu0 0.0
    %2745 = vmatprep.subr.mxu0 0.0
    %2746 = vmatpush1.msra.mxu0 0.0
    %2747 = vmatprep.subr.mxu0 0.0
    %2748 = vmatpush1.msra.mxu0 0.0
    %2749 = vmatprep.subr.mxu0 0.0
    %2750 = vmatpush1.msra.mxu0 0.0
    %2751 = vmatprep.subr.mxu0 0.0
    %2752 = vmatpush1.msra.mxu0 0.0
    %2753 = vmatprep.subr.mxu0 0.0
    %2754 = vmatpush1.msra.mxu0 0.0
    %2755 = vmatprep.subr.mxu0 0.0
    %2756 = vmatpush1.msra.mxu0 0.0
    %2757 = vmatprep.subr.mxu0 %v1894
    %2758 = vmatpush1.msra.mxu0 %v1893
    %2759 = vmatprep.subr.mxu0 %v1858
    %2760 = vmatpush1.msra.mxu0 %v1857
    %2761 = vmatprep.subr.mxu0 %v1822
    %2762 = vmatpush1.msra.mxu0 %v1821
    %2763 = vmatprep.subr.mxu0 %v1786
    %2764 = vmatpush1.msra.mxu0 %v1785
    %2765 = vmatprep.subr.mxu0 %v1750
    %2766 = vmatpush1.msra.mxu0 %v1749
    %2767 = vmatprep.subr.mxu0 %v1714
    %2768 = vmatpush1.msra.mxu0 %v1713
    %2769 = vmatprep.subr.mxu0 %v1678
    %2770 = vmatpush1.msra.mxu0 %v1677
    %2771 = vmatprep.subr.mxu0 %v1642
    %2772 = vmatpush1.msra.mxu0 %v1641
    %2773 = vmatprep.subr.mxu0 %v1606
    %2774 = vmatpush1.msra.mxu0 %v1605
    %2775 = vmatprep.subr.mxu0 0.0
    %2776 = vmatpush2.msra.mxu0 0.0
    %2777 = vmatprep.subr.mxu0 0.0
    %2778 = vmatpush2.msra.mxu0 0.0
    %2779 = vmatprep.subr.mxu0 0.0
    %2780 = vmatpush2.msra.mxu0 0.0
    %2781 = vmatprep.subr.mxu0 0.0
    %2782 = vmatpush2.msra.mxu0 0.0
    %2783 = vmatprep.subr.mxu0 0.0
    %2784 = vmatpush2.msra.mxu0 0.0
    %2785 = vmatprep.subr.mxu0 0.0
    %2786 = vmatpush2.msra.mxu0 0.0
    %2787 = vmatprep.subr.mxu0 0.0
    %2788 = vmatpush2.msra.mxu0 0.0
    %2789 = vmatprep.subr.mxu0 0.0
    %2790 = vmatpush2.msra.mxu0 0.0
    %2791 = vmatprep.subr.mxu0 0.0
    %2792 = vmatpush2.msra.mxu0 0.0
    %2793 = vmatprep.subr.mxu0 0.0
    %2794 = vmatpush2.msra.mxu0 0.0
    %2795 = vmatprep.subr.mxu0 0.0
    %2796 = vmatpush2.msra.mxu0 0.0
    %2797 = vmatprep.subr.mxu0 0.0
    %2798 = vmatpush2.msra.mxu0 0.0
    %2799 = vmatprep.subr.mxu0 0.0
    %2800 = vmatpush2.msra.mxu0 0.0
    %2801 = vmatprep.subr.mxu0 0.0
    %2802 = vmatpush2.msra.mxu0 0.0
    %2803 = vmatprep.subr.mxu0 0.0
    %2804 = vmatpush2.msra.mxu0 0.0
    %2805 = vmatprep.subr.mxu0 0.0
    %2806 = vmatpush2.msra.mxu0 0.0
    %2807 = vmatprep.mubr.f32.mxu0 0.0
    %2808 = vmatmul.mubr.f32.gmra.mxu0 %v2102
    %v2809 = vpop.f32.mrf.mxu0
    %v2810 = vadd.f32 %v1996, %v2809
    %v2811 = vpop.f32.mrf.mxu0
    %v2812 = vadd.f32 %v2000, %v2811
    %2813 = vdwg.mxu0
    %2814 = vmatprep.subr.mxu0 0.0
    %2815 = vmatpush1.msra.mxu0 0.0
    %2816 = vmatprep.subr.mxu0 0.0
    %2817 = vmatpush1.msra.mxu0 0.0
    %2818 = vmatprep.subr.mxu0 0.0
    %2819 = vmatpush1.msra.mxu0 0.0
    %2820 = vmatprep.subr.mxu0 0.0
    %2821 = vmatpush1.msra.mxu0 0.0
    %2822 = vmatprep.subr.mxu0 0.0
    %2823 = vmatpush1.msra.mxu0 0.0
    %2824 = vmatprep.subr.mxu0 0.0
    %2825 = vmatpush1.msra.mxu0 0.0
    %2826 = vmatprep.subr.mxu0 0.0
    %2827 = vmatpush1.msra.mxu0 0.0
    %2828 = vmatprep.subr.mxu0 %v1896
    %2829 = vmatpush1.msra.mxu0 %v1895
    %2830 = vmatprep.subr.mxu0 %v1860
    %2831 = vmatpush1.msra.mxu0 %v1859
    %2832 = vmatprep.subr.mxu0 %v1824
    %2833 = vmatpush1.msra.mxu0 %v1823
    %2834 = vmatprep.subr.mxu0 %v1788
    %2835 = vmatpush1.msra.mxu0 %v1787
    %2836 = vmatprep.subr.mxu0 %v1752
    %2837 = vmatpush1.msra.mxu0 %v1751
    %2838 = vmatprep.subr.mxu0 %v1716
    %2839 = vmatpush1.msra.mxu0 %v1715
    %2840 = vmatprep.subr.mxu0 %v1680
    %2841 = vmatpush1.msra.mxu0 %v1679
    %2842 = vmatprep.subr.mxu0 %v1644
    %2843 = vmatpush1.msra.mxu0 %v1643
    %2844 = vmatprep.subr.mxu0 %v1608
    %2845 = vmatpush1.msra.mxu0 %v1607
    %2846 = vmatprep.subr.mxu0 0.0
    %2847 = vmatpush2.msra.mxu0 0.0
    %2848 = vmatprep.subr.mxu0 0.0
    %2849 = vmatpush2.msra.mxu0 0.0
    %2850 = vmatprep.subr.mxu0 0.0
    %2851 = vmatpush2.msra.mxu0 0.0
    %2852 = vmatprep.subr.mxu0 0.0
    %2853 = vmatpush2.msra.mxu0 0.0
    %2854 = vmatprep.subr.mxu0 0.0
    %2855 = vmatpush2.msra.mxu0 0.0
    %2856 = vmatprep.subr.mxu0 0.0
    %2857 = vmatpush2.msra.mxu0 0.0
    %2858 = vmatprep.subr.mxu0 0.0
    %2859 = vmatpush2.msra.mxu0 0.0
    %2860 = vmatprep.subr.mxu0 0.0
    %2861 = vmatpush2.msra.mxu0 0.0
    %2862 = vmatprep.subr.mxu0 0.0
    %2863 = vmatpush2.msra.mxu0 0.0
    %2864 = vmatprep.subr.mxu0 0.0
    %2865 = vmatpush2.msra.mxu0 0.0
    %2866 = vmatprep.subr.mxu0 0.0
    %2867 = vmatpush2.msra.mxu0 0.0
    %2868 = vmatprep.subr.mxu0 0.0
    %2869 = vmatpush2.msra.mxu0 0.0
    %2870 = vmatprep.subr.mxu0 0.0
    %2871 = vmatpush2.msra.mxu0 0.0
    %2872 = vmatprep.subr.mxu0 0.0
    %2873 = vmatpush2.msra.mxu0 0.0
    %2874 = vmatprep.subr.mxu0 0.0
    %2875 = vmatpush2.msra.mxu0 0.0
    %2876 = vmatprep.subr.mxu0 0.0
    %2877 = vmatpush2.msra.mxu0 0.0
    %2878 = vmatprep.mubr.f32.mxu0 0.0
    %2879 = vmatmul.mubr.f32.gmra.mxu0 %v2102
    %v2880 = vpop.f32.mrf.mxu0
    %v2881 = vadd.f32 %v2004, %v2880
    %v2882 = vpop.f32.mrf.mxu0
    %v2883 = vadd.f32 %v2008, %v2882
    %2884 = vdwg.mxu0
    %2885 = vmatprep.subr.mxu0 0.0
    %2886 = vmatpush1.msra.mxu0 0.0
    %2887 = vmatprep.subr.mxu0 0.0
    %2888 = vmatpush1.msra.mxu0 0.0
    %2889 = vmatprep.subr.mxu0 0.0
    %2890 = vmatpush1.msra.mxu0 0.0
    %2891 = vmatprep.subr.mxu0 0.0
    %2892 = vmatpush1.msra.mxu0 0.0
    %2893 = vmatprep.subr.mxu0 0.0
    %2894 = vmatpush1.msra.mxu0 0.0
    %2895 = vmatprep.subr.mxu0 0.0
    %2896 = vmatpush1.msra.mxu0 0.0
    %2897 = vmatprep.subr.mxu0 0.0
    %2898 = vmatpush1.msra.mxu0 0.0
    %2899 = vmatprep.subr.mxu0 %v1898
    %2900 = vmatpush1.msra.mxu0 %v1897
    %2901 = vmatprep.subr.mxu0 %v1862
    %2902 = vmatpush1.msra.mxu0 %v1861
    %2903 = vmatprep.subr.mxu0 %v1826
    %2904 = vmatpush1.msra.mxu0 %v1825
    %2905 = vmatprep.subr.mxu0 %v1790
    %2906 = vmatpush1.msra.mxu0 %v1789
    %2907 = vmatprep.subr.mxu0 %v1754
    %2908 = vmatpush1.msra.mxu0 %v1753
    %2909 = vmatprep.subr.mxu0 %v1718
    %2910 = vmatpush1.msra.mxu0 %v1717
    %2911 = vmatprep.subr.mxu0 %v1682
    %2912 = vmatpush1.msra.mxu0 %v1681
    %2913 = vmatprep.subr.mxu0 %v1646
    %2914 = vmatpush1.msra.mxu0 %v1645
    %2915 = vmatprep.subr.mxu0 %v1610
    %2916 = vmatpush1.msra.mxu0 %v1609
    %2917 = vmatprep.subr.mxu0 0.0
    %2918 = vmatpush2.msra.mxu0 0.0
    %2919 = vmatprep.subr.mxu0 0.0
    %2920 = vmatpush2.msra.mxu0 0.0
    %2921 = vmatprep.subr.mxu0 0.0
    %2922 = vmatpush2.msra.mxu0 0.0
    %2923 = vmatprep.subr.mxu0 0.0
    %2924 = vmatpush2.msra.mxu0 0.0
    %2925 = vmatprep.subr.mxu0 0.0
    %2926 = vmatpush2.msra.mxu0 0.0
    %2927 = vmatprep.subr.mxu0 0.0
    %2928 = vmatpush2.msra.mxu0 0.0
    %2929 = vmatprep.subr.mxu0 0.0
    %2930 = vmatpush2.msra.mxu0 0.0
    %2931 = vmatprep.subr.mxu0 0.0
    %2932 = vmatpush2.msra.mxu0 0.0
    %2933 = vmatprep.subr.mxu0 0.0
    %2934 = vmatpush2.msra.mxu0 0.0
    %2935 = vmatprep.subr.mxu0 0.0
    %2936 = vmatpush2.msra.mxu0 0.0
    %2937 = vmatprep.subr.mxu0 0.0
    %2938 = vmatpush2.msra.mxu0 0.0
    %2939 = vmatprep.subr.mxu0 0.0
    %2940 = vmatpush2.msra.mxu0 0.0
    %2941 = vmatprep.subr.mxu0 0.0
    %2942 = vmatpush2.msra.mxu0 0.0
    %2943 = vmatprep.subr.mxu0 0.0
    %2944 = vmatpush2.msra.mxu0 0.0
    %2945 = vmatprep.subr.mxu0 0.0
    %2946 = vmatpush2.msra.mxu0 0.0
    %2947 = vmatprep.subr.mxu0 0.0
    %2948 = vmatpush2.msra.mxu0 0.0
    %2949 = vmatprep.mubr.f32.mxu0 0.0
    %2950 = vmatmul.mubr.f32.gmra.mxu0 %v2102
    %v2951 = vpop.f32.mrf.mxu0
    %v2952 = vadd.f32 %v2012, %v2951
    %v2953 = vpop.f32.mrf.mxu0
    %v2954 = vadd.f32 %v2016, %v2953
    %2955 = vdwg.mxu0
    %2956 = vmatprep.subr.mxu0 0.0
    %2957 = vmatpush1.msra.mxu0 0.0
    %2958 = vmatprep.subr.mxu0 0.0
    %2959 = vmatpush1.msra.mxu0 0.0
    %2960 = vmatprep.subr.mxu0 0.0
    %2961 = vmatpush1.msra.mxu0 0.0
    %2962 = vmatprep.subr.mxu0 0.0
    %2963 = vmatpush1.msra.mxu0 0.0
    %2964 = vmatprep.subr.mxu0 0.0
    %2965 = vmatpush1.msra.mxu0 0.0
    %2966 = vmatprep.subr.mxu0 0.0
    %2967 = vmatpush1.msra.mxu0 0.0
    %2968 = vmatprep.subr.mxu0 0.0
    %2969 = vmatpush1.msra.mxu0 0.0
    %2970 = vmatprep.subr.mxu0 %v1900
    %2971 = vmatpush1.msra.mxu0 %v1899
    %2972 = vmatprep.subr.mxu0 %v1864
    %2973 = vmatpush1.msra.mxu0 %v1863
    %2974 = vmatprep.subr.mxu0 %v1828
    %2975 = vmatpush1.msra.mxu0 %v1827
    %2976 = vmatprep.subr.mxu0 %v1792
    %2977 = vmatpush1.msra.mxu0 %v1791
    %2978 = vmatprep.subr.mxu0 %v1756
    %2979 = vmatpush1.msra.mxu0 %v1755
    %2980 = vmatprep.subr.mxu0 %v1720
    %2981 = vmatpush1.msra.mxu0 %v1719
    %2982 = vmatprep.subr.mxu0 %v1684
    %2983 = vmatpush1.msra.mxu0 %v1683
    %2984 = vmatprep.subr.mxu0 %v1648
    %2985 = vmatpush1.msra.mxu0 %v1647
    %2986 = vmatprep.subr.mxu0 %v1612
    %2987 = vmatpush1.msra.mxu0 %v1611
    %2988 = vmatprep.subr.mxu0 0.0
    %2989 = vmatpush2.msra.mxu0 0.0
    %2990 = vmatprep.subr.mxu0 0.0
    %2991 = vmatpush2.msra.mxu0 0.0
    %2992 = vmatprep.subr.mxu0 0.0
    %2993 = vmatpush2.msra.mxu0 0.0
    %2994 = vmatprep.subr.mxu0 0.0
    %2995 = vmatpush2.msra.mxu0 0.0
    %2996 = vmatprep.subr.mxu0 0.0
    %2997 = vmatpush2.msra.mxu0 0.0
    %2998 = vmatprep.subr.mxu0 0.0
    %2999 = vmatpush2.msra.mxu0 0.0
    %3000 = vmatprep.subr.mxu0 0.0
    %3001 = vmatpush2.msra.mxu0 0.0
    %3002 = vmatprep.subr.mxu0 0.0
    %3003 = vmatpush2.msra.mxu0 0.0
    %3004 = vmatprep.subr.mxu0 0.0
    %3005 = vmatpush2.msra.mxu0 0.0
    %3006 = vmatprep.subr.mxu0 0.0
    %3007 = vmatpush2.msra.mxu0 0.0
    %3008 = vmatprep.subr.mxu0 0.0
    %3009 = vmatpush2.msra.mxu0 0.0
    %3010 = vmatprep.subr.mxu0 0.0
    %3011 = vmatpush2.msra.mxu0 0.0
    %3012 = vmatprep.subr.mxu0 0.0
    %3013 = vmatpush2.msra.mxu0 0.0
    %3014 = vmatprep.subr.mxu0 0.0
    %3015 = vmatpush2.msra.mxu0 0.0
    %3016 = vmatprep.subr.mxu0 0.0
    %3017 = vmatpush2.msra.mxu0 0.0
    %3018 = vmatprep.subr.mxu0 0.0
    %3019 = vmatpush2.msra.mxu0 0.0
    %3020 = vmatprep.mubr.f32.mxu0 0.0
    %3021 = vmatmul.mubr.f32.gmra.mxu0 %v2102
    %v3022 = vpop.f32.mrf.mxu0
    %v3023 = vadd.f32 %v2020, %v3022
    %v3024 = vpop.f32.mrf.mxu0
    %v3025 = vadd.f32 %v2024, %v3024
    %3026 = vdwg.mxu0
    %3027 = vmatprep.subr.mxu0 0.0
    %3028 = vmatpush1.msra.mxu0 0.0
    %3029 = vmatprep.subr.mxu0 0.0
    %3030 = vmatpush1.msra.mxu0 0.0
    %3031 = vmatprep.subr.mxu0 0.0
    %3032 = vmatpush1.msra.mxu0 0.0
    %3033 = vmatprep.subr.mxu0 0.0
    %3034 = vmatpush1.msra.mxu0 0.0
    %3035 = vmatprep.subr.mxu0 0.0
    %3036 = vmatpush1.msra.mxu0 0.0
    %3037 = vmatprep.subr.mxu0 0.0
    %3038 = vmatpush1.msra.mxu0 0.0
    %3039 = vmatprep.subr.mxu0 0.0
    %3040 = vmatpush1.msra.mxu0 0.0
    %3041 = vmatprep.subr.mxu0 %v1902
    %3042 = vmatpush1.msra.mxu0 %v1901
    %3043 = vmatprep.subr.mxu0 %v1866
    %3044 = vmatpush1.msra.mxu0 %v1865
    %3045 = vmatprep.subr.mxu0 %v1830
    %3046 = vmatpush1.msra.mxu0 %v1829
    %3047 = vmatprep.subr.mxu0 %v1794
    %3048 = vmatpush1.msra.mxu0 %v1793
    %3049 = vmatprep.subr.mxu0 %v1758
    %3050 = vmatpush1.msra.mxu0 %v1757
    %3051 = vmatprep.subr.mxu0 %v1722
    %3052 = vmatpush1.msra.mxu0 %v1721
    %3053 = vmatprep.subr.mxu0 %v1686
    %3054 = vmatpush1.msra.mxu0 %v1685
    %3055 = vmatprep.subr.mxu0 %v1650
    %3056 = vmatpush1.msra.mxu0 %v1649
    %3057 = vmatprep.subr.mxu0 %v1614
    %3058 = vmatpush1.msra.mxu0 %v1613
    %3059 = vmatprep.subr.mxu0 0.0
    %3060 = vmatpush2.msra.mxu0 0.0
    %3061 = vmatprep.subr.mxu0 0.0
    %3062 = vmatpush2.msra.mxu0 0.0
    %3063 = vmatprep.subr.mxu0 0.0
    %3064 = vmatpush2.msra.mxu0 0.0
    %3065 = vmatprep.subr.mxu0 0.0
    %3066 = vmatpush2.msra.mxu0 0.0
    %3067 = vmatprep.subr.mxu0 0.0
    %3068 = vmatpush2.msra.mxu0 0.0
    %3069 = vmatprep.subr.mxu0 0.0
    %3070 = vmatpush2.msra.mxu0 0.0
    %3071 = vmatprep.subr.mxu0 0.0
    %3072 = vmatpush2.msra.mxu0 0.0
    %3073 = vmatprep.subr.mxu0 0.0
    %3074 = vmatpush2.msra.mxu0 0.0
    %3075 = vmatprep.subr.mxu0 0.0
    %3076 = vmatpush2.msra.mxu0 0.0
    %3077 = vmatprep.subr.mxu0 0.0
    %3078 = vmatpush2.msra.mxu0 0.0
    %3079 = vmatprep.subr.mxu0 0.0
    %3080 = vmatpush2.msra.mxu0 0.0
    %3081 = vmatprep.subr.mxu0 0.0
    %3082 = vmatpush2.msra.mxu0 0.0
    %3083 = vmatprep.subr.mxu0 0.0
    %3084 = vmatpush2.msra.mxu0 0.0
    %3085 = vmatprep.subr.mxu0 0.0
    %3086 = vmatpush2.msra.mxu0 0.0
    %3087 = vmatprep.subr.mxu0 0.0
    %3088 = vmatpush2.msra.mxu0 0.0
    %3089 = vmatprep.subr.mxu0 0.0
    %3090 = vmatpush2.msra.mxu0 0.0
    %3091 = vmatprep.mubr.f32.mxu0 0.0
    %3092 = vmatmul.mubr.f32.gmra.mxu0 %v2102
    %v3093 = vpop.f32.mrf.mxu0
    %v3094 = vadd.f32 %v2028, %v3093
    %v3095 = vpop.f32.mrf.mxu0
    %v3096 = vadd.f32 %v2032, %v3095
    %3097 = vdwg.mxu0
    %3098 = vmatprep.subr.mxu0 0.0
    %3099 = vmatpush1.msra.mxu0 0.0
    %3100 = vmatprep.subr.mxu0 0.0
    %3101 = vmatpush1.msra.mxu0 0.0
    %3102 = vmatprep.subr.mxu0 0.0
    %3103 = vmatpush1.msra.mxu0 0.0
    %3104 = vmatprep.subr.mxu0 0.0
    %3105 = vmatpush1.msra.mxu0 0.0
    %3106 = vmatprep.subr.mxu0 0.0
    %3107 = vmatpush1.msra.mxu0 0.0
    %3108 = vmatprep.subr.mxu0 0.0
    %3109 = vmatpush1.msra.mxu0 0.0
    %3110 = vmatprep.subr.mxu0 0.0
    %3111 = vmatpush1.msra.mxu0 0.0
    %3112 = vmatprep.subr.mxu0 %v1904
    %3113 = vmatpush1.msra.mxu0 %v1903
    %3114 = vmatprep.subr.mxu0 %v1868
    %3115 = vmatpush1.msra.mxu0 %v1867
    %3116 = vmatprep.subr.mxu0 %v1832
    %3117 = vmatpush1.msra.mxu0 %v1831
    %3118 = vmatprep.subr.mxu0 %v1796
    %3119 = vmatpush1.msra.mxu0 %v1795
    %3120 = vmatprep.subr.mxu0 %v1760
    %3121 = vmatpush1.msra.mxu0 %v1759
    %3122 = vmatprep.subr.mxu0 %v1724
    %3123 = vmatpush1.msra.mxu0 %v1723
    %3124 = vmatprep.subr.mxu0 %v1688
    %3125 = vmatpush1.msra.mxu0 %v1687
    %3126 = vmatprep.subr.mxu0 %v1652
    %3127 = vmatpush1.msra.mxu0 %v1651
    %3128 = vmatprep.subr.mxu0 %v1616
    %3129 = vmatpush1.msra.mxu0 %v1615
    %3130 = vmatprep.subr.mxu0 0.0
    %3131 = vmatpush2.msra.mxu0 0.0
    %3132 = vmatprep.subr.mxu0 0.0
    %3133 = vmatpush2.msra.mxu0 0.0
    %3134 = vmatprep.subr.mxu0 0.0
    %3135 = vmatpush2.msra.mxu0 0.0
    %3136 = vmatprep.subr.mxu0 0.0
    %3137 = vmatpush2.msra.mxu0 0.0
    %3138 = vmatprep.subr.mxu0 0.0
    %3139 = vmatpush2.msra.mxu0 0.0
    %3140 = vmatprep.subr.mxu0 0.0
    %3141 = vmatpush2.msra.mxu0 0.0
    %3142 = vmatprep.subr.mxu0 0.0
    %3143 = vmatpush2.msra.mxu0 0.0
    %3144 = vmatprep.subr.mxu0 0.0
    %3145 = vmatpush2.msra.mxu0 0.0
    %3146 = vmatprep.subr.mxu0 0.0
    %3147 = vmatpush2.msra.mxu0 0.0
    %3148 = vmatprep.subr.mxu0 0.0
    %3149 = vmatpush2.msra.mxu0 0.0
    %3150 = vmatprep.subr.mxu0 0.0
    %3151 = vmatpush2.msra.mxu0 0.0
    %3152 = vmatprep.subr.mxu0 0.0
    %3153 = vmatpush2.msra.mxu0 0.0
    %3154 = vmatprep.subr.mxu0 0.0
    %3155 = vmatpush2.msra.mxu0 0.0
    %3156 = vmatprep.subr.mxu0 0.0
    %3157 = vmatpush2.msra.mxu0 0.0
    %3158 = vmatprep.subr.mxu0 0.0
    %3159 = vmatpush2.msra.mxu0 0.0
    %3160 = vmatprep.subr.mxu0 0.0
    %3161 = vmatpush2.msra.mxu0 0.0
    %3162 = vmatprep.mubr.f32.mxu0 0.0
    %3163 = vmatmul.mubr.f32.gmra.mxu0 %v2102
    %v3164 = vpop.f32.mrf.mxu0
    %v3165 = vadd.f32 %v2036, %v3164
    %v3166 = vpop.f32.mrf.mxu0
    %v3167 = vadd.f32 %v2040, %v3166
    %3168 = vdwg.mxu0
    %3169 = vmatprep.subr.mxu0 0.0
    %3170 = vmatpush1.msra.mxu0 0.0
    %3171 = vmatprep.subr.mxu0 0.0
    %3172 = vmatpush1.msra.mxu0 0.0
    %3173 = vmatprep.subr.mxu0 0.0
    %3174 = vmatpush1.msra.mxu0 0.0
    %3175 = vmatprep.subr.mxu0 0.0
    %3176 = vmatpush1.msra.mxu0 0.0
    %3177 = vmatprep.subr.mxu0 0.0
    %3178 = vmatpush1.msra.mxu0 0.0
    %3179 = vmatprep.subr.mxu0 0.0
    %3180 = vmatpush1.msra.mxu0 0.0
    %3181 = vmatprep.subr.mxu0 0.0
    %3182 = vmatpush1.msra.mxu0 0.0
    %3183 = vmatprep.subr.mxu0 %v1906
    %3184 = vmatpush1.msra.mxu0 %v1905
    %3185 = vmatprep.subr.mxu0 %v1870
    %3186 = vmatpush1.msra.mxu0 %v1869
    %3187 = vmatprep.subr.mxu0 %v1834
    %3188 = vmatpush1.msra.mxu0 %v1833
    %3189 = vmatprep.subr.mxu0 %v1798
    %3190 = vmatpush1.msra.mxu0 %v1797
    %3191 = vmatprep.subr.mxu0 %v1762
    %3192 = vmatpush1.msra.mxu0 %v1761
    %3193 = vmatprep.subr.mxu0 %v1726
    %3194 = vmatpush1.msra.mxu0 %v1725
    %3195 = vmatprep.subr.mxu0 %v1690
    %3196 = vmatpush1.msra.mxu0 %v1689
    %3197 = vmatprep.subr.mxu0 %v1654
    %3198 = vmatpush1.msra.mxu0 %v1653
    %3199 = vmatprep.subr.mxu0 %v1618
    %3200 = vmatpush1.msra.mxu0 %v1617
    %3201 = vmatprep.subr.mxu0 0.0
    %3202 = vmatpush2.msra.mxu0 0.0
    %3203 = vmatprep.subr.mxu0 0.0
    %3204 = vmatpush2.msra.mxu0 0.0
    %3205 = vmatprep.subr.mxu0 0.0
    %3206 = vmatpush2.msra.mxu0 0.0
    %3207 = vmatprep.subr.mxu0 0.0
    %3208 = vmatpush2.msra.mxu0 0.0
    %3209 = vmatprep.subr.mxu0 0.0
    %3210 = vmatpush2.msra.mxu0 0.0
    %3211 = vmatprep.subr.mxu0 0.0
    %3212 = vmatpush2.msra.mxu0 0.0
    %3213 = vmatprep.subr.mxu0 0.0
    %3214 = vmatpush2.msra.mxu0 0.0
    %3215 = vmatprep.subr.mxu0 0.0
    %3216 = vmatpush2.msra.mxu0 0.0
    %3217 = vmatprep.subr.mxu0 0.0
    %3218 = vmatpush2.msra.mxu0 0.0
    %3219 = vmatprep.subr.mxu0 0.0
    %3220 = vmatpush2.msra.mxu0 0.0
    %3221 = vmatprep.subr.mxu0 0.0
    %3222 = vmatpush2.msra.mxu0 0.0
    %3223 = vmatprep.subr.mxu0 0.0
    %3224 = vmatpush2.msra.mxu0 0.0
    %3225 = vmatprep.subr.mxu0 0.0
    %3226 = vmatpush2.msra.mxu0 0.0
    %3227 = vmatprep.subr.mxu0 0.0
    %3228 = vmatpush2.msra.mxu0 0.0
    %3229 = vmatprep.subr.mxu0 0.0
    %3230 = vmatpush2.msra.mxu0 0.0
    %3231 = vmatprep.subr.mxu0 0.0
    %3232 = vmatpush2.msra.mxu0 0.0
    %3233 = vmatprep.mubr.f32.mxu0 0.0
    %3234 = vmatmul.mubr.f32.gmra.mxu0 %v2102
    %v3235 = vpop.f32.mrf.mxu0
    %v3236 = vadd.f32 %v2044, %v3235
    %v3237 = vpop.f32.mrf.mxu0
    %v3238 = vadd.f32 %v2048, %v3237
    %3239 = vdwg.mxu0
    %3240 = vmatprep.subr.mxu0 0.0
    %3241 = vmatpush1.msra.mxu0 0.0
    %3242 = vmatprep.subr.mxu0 0.0
    %3243 = vmatpush1.msra.mxu0 0.0
    %3244 = vmatprep.subr.mxu0 0.0
    %3245 = vmatpush1.msra.mxu0 0.0
    %3246 = vmatprep.subr.mxu0 0.0
    %3247 = vmatpush1.msra.mxu0 0.0
    %3248 = vmatprep.subr.mxu0 0.0
    %3249 = vmatpush1.msra.mxu0 0.0
    %3250 = vmatprep.subr.mxu0 0.0
    %3251 = vmatpush1.msra.mxu0 0.0
    %3252 = vmatprep.subr.mxu0 0.0
    %3253 = vmatpush1.msra.mxu0 0.0
    %3254 = vmatprep.subr.mxu0 %v1908
    %3255 = vmatpush1.msra.mxu0 %v1907
    %3256 = vmatprep.subr.mxu0 %v1872
    %3257 = vmatpush1.msra.mxu0 %v1871
    %3258 = vmatprep.subr.mxu0 %v1836
    %3259 = vmatpush1.msra.mxu0 %v1835
    %3260 = vmatprep.subr.mxu0 %v1800
    %3261 = vmatpush1.msra.mxu0 %v1799
    %3262 = vmatprep.subr.mxu0 %v1764
    %3263 = vmatpush1.msra.mxu0 %v1763
    %3264 = vmatprep.subr.mxu0 %v1728
    %3265 = vmatpush1.msra.mxu0 %v1727
    %3266 = vmatprep.subr.mxu0 %v1692
    %3267 = vmatpush1.msra.mxu0 %v1691
    %3268 = vmatprep.subr.mxu0 %v1656
    %3269 = vmatpush1.msra.mxu0 %v1655
    %3270 = vmatprep.subr.mxu0 %v1620
    %3271 = vmatpush1.msra.mxu0 %v1619
    %3272 = vmatprep.subr.mxu0 0.0
    %3273 = vmatpush2.msra.mxu0 0.0
    %3274 = vmatprep.subr.mxu0 0.0
    %3275 = vmatpush2.msra.mxu0 0.0
    %3276 = vmatprep.subr.mxu0 0.0
    %3277 = vmatpush2.msra.mxu0 0.0
    %3278 = vmatprep.subr.mxu0 0.0
    %3279 = vmatpush2.msra.mxu0 0.0
    %3280 = vmatprep.subr.mxu0 0.0
    %3281 = vmatpush2.msra.mxu0 0.0
    %3282 = vmatprep.subr.mxu0 0.0
    %3283 = vmatpush2.msra.mxu0 0.0
    %3284 = vmatprep.subr.mxu0 0.0
    %3285 = vmatpush2.msra.mxu0 0.0
    %3286 = vmatprep.subr.mxu0 0.0
    %3287 = vmatpush2.msra.mxu0 0.0
    %3288 = vmatprep.subr.mxu0 0.0
    %3289 = vmatpush2.msra.mxu0 0.0
    %3290 = vmatprep.subr.mxu0 0.0
    %3291 = vmatpush2.msra.mxu0 0.0
    %3292 = vmatprep.subr.mxu0 0.0
    %3293 = vmatpush2.msra.mxu0 0.0
    %3294 = vmatprep.subr.mxu0 0.0
    %3295 = vmatpush2.msra.mxu0 0.0
    %3296 = vmatprep.subr.mxu0 0.0
    %3297 = vmatpush2.msra.mxu0 0.0
    %3298 = vmatprep.subr.mxu0 0.0
    %3299 = vmatpush2.msra.mxu0 0.0
    %3300 = vmatprep.subr.mxu0 0.0
    %3301 = vmatpush2.msra.mxu0 0.0
    %3302 = vmatprep.subr.mxu0 0.0
    %3303 = vmatpush2.msra.mxu0 0.0
    %3304 = vmatprep.mubr.f32.mxu0 0.0
    %3305 = vmatmul.mubr.f32.gmra.mxu0 %v2102
    %v3306 = vpop.f32.mrf.mxu0
    %v3307 = vadd.f32 %v2052, %v3306
    %v3308 = vpop.f32.mrf.mxu0
    %v3309 = vadd.f32 %v2056, %v3308
    %3310 = vdwg.mxu0
    %3311 = vmatprep.subr.mxu0 0.0
    %3312 = vmatpush1.msra.mxu0 0.0
    %3313 = vmatprep.subr.mxu0 0.0
    %3314 = vmatpush1.msra.mxu0 0.0
    %3315 = vmatprep.subr.mxu0 0.0
    %3316 = vmatpush1.msra.mxu0 0.0
    %3317 = vmatprep.subr.mxu0 0.0
    %3318 = vmatpush1.msra.mxu0 0.0
    %3319 = vmatprep.subr.mxu0 0.0
    %3320 = vmatpush1.msra.mxu0 0.0
    %3321 = vmatprep.subr.mxu0 0.0
    %3322 = vmatpush1.msra.mxu0 0.0
    %3323 = vmatprep.subr.mxu0 0.0
    %3324 = vmatpush1.msra.mxu0 0.0
    %3325 = vmatprep.subr.mxu0 %v1910
    %3326 = vmatpush1.msra.mxu0 %v1909
    %3327 = vmatprep.subr.mxu0 %v1874
    %3328 = vmatpush1.msra.mxu0 %v1873
    %3329 = vmatprep.subr.mxu0 %v1838
    %3330 = vmatpush1.msra.mxu0 %v1837
    %3331 = vmatprep.subr.mxu0 %v1802
    %3332 = vmatpush1.msra.mxu0 %v1801
    %3333 = vmatprep.subr.mxu0 %v1766
    %3334 = vmatpush1.msra.mxu0 %v1765
    %3335 = vmatprep.subr.mxu0 %v1730
    %3336 = vmatpush1.msra.mxu0 %v1729
    %3337 = vmatprep.subr.mxu0 %v1694
    %3338 = vmatpush1.msra.mxu0 %v1693
    %3339 = vmatprep.subr.mxu0 %v1658
    %3340 = vmatpush1.msra.mxu0 %v1657
    %3341 = vmatprep.subr.mxu0 %v1622
    %3342 = vmatpush1.msra.mxu0 %v1621
    %3343 = vmatprep.subr.mxu0 0.0
    %3344 = vmatpush2.msra.mxu0 0.0
    %3345 = vmatprep.subr.mxu0 0.0
    %3346 = vmatpush2.msra.mxu0 0.0
    %3347 = vmatprep.subr.mxu0 0.0
    %3348 = vmatpush2.msra.mxu0 0.0
    %3349 = vmatprep.subr.mxu0 0.0
    %3350 = vmatpush2.msra.mxu0 0.0
    %3351 = vmatprep.subr.mxu0 0.0
    %3352 = vmatpush2.msra.mxu0 0.0
    %3353 = vmatprep.subr.mxu0 0.0
    %3354 = vmatpush2.msra.mxu0 0.0
    %3355 = vmatprep.subr.mxu0 0.0
    %3356 = vmatpush2.msra.mxu0 0.0
    %3357 = vmatprep.subr.mxu0 0.0
    %3358 = vmatpush2.msra.mxu0 0.0
    %3359 = vmatprep.subr.mxu0 0.0
    %3360 = vmatpush2.msra.mxu0 0.0
    %3361 = vmatprep.subr.mxu0 0.0
    %3362 = vmatpush2.msra.mxu0 0.0
    %3363 = vmatprep.subr.mxu0 0.0
    %3364 = vmatpush2.msra.mxu0 0.0
    %3365 = vmatprep.subr.mxu0 0.0
    %3366 = vmatpush2.msra.mxu0 0.0
    %3367 = vmatprep.subr.mxu0 0.0
    %3368 = vmatpush2.msra.mxu0 0.0
    %3369 = vmatprep.subr.mxu0 0.0
    %3370 = vmatpush2.msra.mxu0 0.0
    %3371 = vmatprep.subr.mxu0 0.0
    %3372 = vmatpush2.msra.mxu0 0.0
    %3373 = vmatprep.subr.mxu0 0.0
    %3374 = vmatpush2.msra.mxu0 0.0
    %3375 = vmatprep.mubr.f32.mxu0 0.0
    %3376 = vmatmul.mubr.f32.gmra.mxu0 %v2102
    %v3377 = vpop.f32.mrf.mxu0
    %v3378 = vadd.f32 %v2060, %v3377
    %v3379 = vpop.f32.mrf.mxu0
    %v3380 = vadd.f32 %v2064, %v3379
    %3381 = vdwg.mxu0
    %v3382 = vmax.f32 %v2171, 0.0
    %v3383 = vmax.f32 %v2173, 0.0
    %v3384 = vmax.f32 %v2242, 0.0
    %v3385 = vmax.f32 %v2244, 0.0
    %v3386 = vmax.f32 %v2313, 0.0
    %v3387 = vmax.f32 %v2315, 0.0
    %v3388 = vmax.f32 %v2384, 0.0
    %v3389 = vmax.f32 %v2386, 0.0
    %v3390 = vmax.f32 %v2455, 0.0
    %v3391 = vmax.f32 %v2457, 0.0
    %v3392 = vmax.f32 %v2526, 0.0
    %v3393 = vmax.f32 %v2528, 0.0
    %v3394 = vmax.f32 %v2597, 0.0
    %v3395 = vmax.f32 %v2599, 0.0
    %v3396 = vmax.f32 %v2668, 0.0
    %v3397 = vmax.f32 %v2670, 0.0
    %v3398 = vmax.f32 %v2739, 0.0
    %v3399 = vmax.f32 %v2741, 0.0
    %v3400 = vmax.f32 %v2810, 0.0
    %v3401 = vmax.f32 %v2812, 0.0
    %v3402 = vmax.f32 %v2881, 0.0
    %v3403 = vmax.f32 %v2883, 0.0
    %v3404 = vmax.f32 %v2952, 0.0
    %v3405 = vmax.f32 %v2954, 0.0
    %v3406 = vmax.f32 %v3023, 0.0
    %v3407 = vmax.f32 %v3025, 0.0
    %v3408 = vmax.f32 %v3094, 0.0
    %v3409 = vmax.f32 %v3096, 0.0
    %v3410 = vmax.f32 %v3165, 0.0
    %v3411 = vmax.f32 %v3167, 0.0
    %v3412 = vmax.f32 %v3236, 0.0
    %v3413 = vmax.f32 %v3238, 0.0
    %v3414 = vmax.f32 %v3307, 0.0
    %v3415 = vmax.f32 %v3309, 0.0
    %v3416 = vmax.f32 %v3378, 0.0
    %v3417 = vmax.f32 %v3380, 0.0
    %v3454 = vcombine.low %v3382, %v3383
    %v3455 = vcombine.low %v3384, %v3385
    %v3456 = vcombine.low %v3386, %v3387
    %v3457 = vcombine.low %v3388, %v3389
    %v3458 = vcombine.low %v3390, %v3391
    %v3459 = vcombine.low %v3392, %v3393
    %v3460 = vcombine.low %v3394, %v3395
    %v3461 = vcombine.low %v3396, %v3397
    %v3462 = vcombine.low %v3398, %v3399
    %v3463 = vcombine.low %v3400, %v3401
    %v3464 = vcombine.low %v3402, %v3403
    %v3465 = vcombine.low %v3404, %v3405
    %v3466 = vcombine.low %v3406, %v3407
    %v3467 = vcombine.low %v3408, %v3409
    %v3468 = vcombine.low %v3410, %v3411
    %v3469 = vcombine.low %v3412, %v3413
    %v3470 = vcombine.low %v3414, %v3415
    %v3471 = vcombine.low %v3416, %v3417
    %3490 = vst [vmem:[%s7] sm:$0xff] %v3454
    %3491 = vst [vmem:[%s7 + $0x8] sm:$0xff] %v3455
    %3492 = vst [vmem:[%s7 + $0x10] sm:$0xff] %v3456
    %3493 = vst [vmem:[%s7 + $0x18] sm:$0xff] %v3457
    %3494 = vst [vmem:[%s7 + $0x20] sm:$0xff] %v3458
    %3495 = vst [vmem:[%s7 + $0x28] sm:$0xff] %v3459
    %3496 = vst [vmem:[%s7 + $0x30] sm:$0xff] %v3460
    %3497 = vst [vmem:[%s7 + $0x38] sm:$0xff] %v3461
    %3498 = vst [vmem:[%s7 + $0x40] sm:$0xff] %v3462
    %3499 = vst [vmem:[%s7 + $0x48] sm:$0xff] %v3463
    %3500 = vst [vmem:[%s7 + $0x50] sm:$0xff] %v3464
    %3501 = vst [vmem:[%s7 + $0x58] sm:$0xff] %v3465
    %3502 = vst [vmem:[%s7 + $0x60] sm:$0xff] %v3466
    %3503 = vst [vmem:[%s7 + $0x68] sm:$0xff] %v3467
    %3504 = vst [vmem:[%s7 + $0x70] sm:$0xff] %v3468
    %3505 = vst [vmem:[%s7 + $0x78] sm:$0xff] %v3469
    %3506 = vst [vmem:[%s7 + $0x80] sm:$0xff] %v3470
    %3507 = vst [vmem:[%s7 + $0x88] sm:$0xff] %v3471
    // Predicated region
    $region42: #{abstracter_forward.1} parent=1 // pred_check
      _
    $region43: #{abstracter_forward.1} parent=1 // pred_check_branch
      %3509 = sbr.rel (0) target = $region45
    $region44: #{abstracter_forward.1} parent=1 // pred_region
      _
    $region45: #{abstracter_forward.1} parent=1 // pred_fallthru
      _
    // Predicated region
    $region46: #{abstracter_forward.1} parent=1 // pred_check
      _
    $region47: #{abstracter_forward.1} parent=1 // pred_check_branch
      %3511 = sbr.rel (0) target = $region49
    $region48: #{abstracter_forward.1} parent=1 // pred_region
      _
    $region49: #{abstracter_forward.1} parent=1 // pred_fallthru
      _
    // Predicated region
    $region50: #{abstracter_forward.1} parent=1 // pred_check
      _
    $region51: #{abstracter_forward.1} parent=1 // pred_check_branch
      %3513 = sbr.rel (0) target = $region53
    $region52: #{abstracter_forward.1} parent=1 // pred_region
      _
    $region53: #{abstracter_forward.1} parent=1 // pred_fallthru
      _
    // Predicated region
    $region54: #{abstracter_forward.1} parent=1 // pred_check
      _
    $region55: #{abstracter_forward.1} parent=1 // pred_check_branch
      %3515 = sbr.rel (0) target = $region57
    $region56: #{abstracter_forward.1} parent=1 // pred_region
      _
    $region57: #{abstracter_forward.1} parent=1 // pred_fallthru
      _
    %3516 = vsyncpa [#allocation3], 1
    %3517 = vsyncpa [#allocation5], 1
    %3518 = vsyncpa [#allocation8], 1

</llo_original>
